<compile_context>
chip_gen: v7x
topology: tpu7x:2x2x1
jax: 0.10.0
libtpu: 0.0.40
codegen_flags: <defaults>
</compile_context>

<pallas_src>
import math
from functools import partial

import jax
import jax.numpy as jnp
from jax.experimental import pallas as pl
from jax.experimental.pallas import tpu as pltpu

# Whole-array-in-VMEM spec (shapes here are tiny; no tiling/grid needed).
VMEM = pl.BlockSpec(memory_space=pltpu.MemorySpace.VMEM)

_REFS_PER_LAYER = 16  # ln1(g,b) qkv(w,b)x3 wo bo ln2(g,b) ffn(w,b)x2


# ----------------------------------------------------------------------------
# Fused kernel
# ----------------------------------------------------------------------------
def _layernorm(v, g, b):
    mu = jnp.mean(v, axis=-1, keepdims=True)
    var = jnp.mean(jnp.square(v - mu), axis=-1, keepdims=True)
    return (v - mu) * jax.lax.rsqrt(var + 1e-5) * g + b


def _fused_forward_kernel(*refs, num_layers, num_heads, batch, seq):
    bf16 = jnp.bfloat16
    f32 = jnp.float32

    obs_ref, emb_w_ref, emb_b_ref = refs[0], refs[1], refs[2]
    layer_refs = refs[3:3 + _REFS_PER_LAYER * num_layers]
    n_in = 3 + _REFS_PER_LAYER * num_layers + 2
    out_w_ref, out_b_ref = refs[n_in - 2], refs[n_in - 1]
    o_ref = refs[n_in]

    B, S = batch, seq
    T = B * S
    Din = obs_ref.shape[-1]
    D = emb_w_ref.shape[1]
    Dh = D // num_heads
    scale = 1.0 / math.sqrt(Dh)

    # ---- embedding Linear: [B,S,Din] -> [T,D] (bf16 operands, f32 acc) ----
    obs2d = obs_ref[...].reshape(T, Din).astype(bf16)
    x = jnp.dot(obs2d, emb_w_ref[...], preferred_element_type=f32) + emb_b_ref[...]

    # ---- transformer blocks (unrolled; weights resident in VMEM) ----------
    for li in range(num_layers):
        (g1_ref, b1_ref,
         wq_ref, bq_ref, wk_ref, bk_ref, wv_ref, bv_ref,
         wo_ref, bo_ref,
         g2_ref, b2_ref,
         wf1_ref, bf1_ref, wf2_ref, bf2_ref) = layer_refs[
            _REFS_PER_LAYER * li: _REFS_PER_LAYER * (li + 1)]

        # attention branch: attn(norm1(x))
        h = _layernorm(x, g1_ref[...], b1_ref[...]).astype(bf16)  # [T,D]

        attn = jnp.zeros((T, D), f32)
        for hh in range(num_heads):
            # per-head projection weights indexed on the (free) leading dim
            q = (jnp.dot(h, wq_ref[hh], preferred_element_type=f32)
                 + bq_ref[hh]) * scale                       # scale folded on q
            k = jnp.dot(h, wk_ref[hh], preferred_element_type=f32) + bk_ref[hh]
            v = jnp.dot(h, wv_ref[hh], preferred_element_type=f32) + bv_ref[hh]

            q3 = q.astype(bf16).reshape(B, S, Dh)
            k3 = k.astype(bf16).reshape(B, S, Dh)
            v3 = v.astype(bf16).reshape(B, S, Dh)

            sc = jnp.einsum("bqd,bkd->bqk", q3, k3,
                            preferred_element_type=f32)      # [B,S,S] f32
            sc = sc - jnp.max(sc, axis=-1, keepdims=True)
            p = jnp.exp(sc)
            p = p * pl.reciprocal(jnp.sum(p, axis=-1, keepdims=True),
                                  approx=True)

            ctx = jnp.einsum("bqk,bkd->bqd", p.astype(bf16), v3,
                             preferred_element_type=f32)     # [B,S,Dh]
            # accumulate the output projection per head (no concatenate)
            attn = attn + jnp.dot(ctx.reshape(T, Dh).astype(bf16), wo_ref[hh],
                                  preferred_element_type=f32)

        x = x + attn + bo_ref[...]                            # residual (f32)

        # FFN branch: ffn(norm2(x))
        h2 = _layernorm(x, g2_ref[...], b2_ref[...]).astype(bf16)
        f = jnp.dot(h2, wf1_ref[...], preferred_element_type=f32) + bf1_ref[...]
        f = jnp.maximum(f, 0.0).astype(bf16)
        f = jnp.dot(f, wf2_ref[...], preferred_element_type=f32) + bf2_ref[...]
        x = x + f                                             # residual (f32)

    # ---- mean over seq + output Linear ------------------------------------
    pooled = jnp.mean(x.reshape(B, S, D), axis=1)             # [B,D] f32
    o_ref[...] = (jnp.dot(pooled.astype(bf16), out_w_ref[...],
                          preferred_element_type=f32) + out_b_ref[...])


# ----------------------------------------------------------------------------
# Wrapper
# ----------------------------------------------------------------------------
def psead_policy_forward(params, observation, *, num_heads):
    bf16 = jnp.bfloat16
    B, S, Din = observation.shape
    D = params["emb_w"].shape[1]
    A = params["out_w"].shape[1]
    L = len(params["layers"])
    Dh = D // num_heads
    T = B * S

    # Layout-only weight prep: per-head slabs, bf16 matmul operands,
    # f32 biases / LN params.
    args = [
        observation,
        params["emb_w"].astype(bf16),
        params["emb_b"].reshape(1, D),
    ]
    for p in params["layers"]:
        args += [
            p["ln1_g"].reshape(1, D), p["ln1_b"].reshape(1, D),
            p["wq"].reshape(D, num_heads, Dh).transpose(1, 0, 2).astype(bf16),
            p["bq"].reshape(num_heads, 1, Dh),
            p["wk"].reshape(D, num_heads, Dh).transpose(1, 0, 2).astype(bf16),
            p["bk"].reshape(num_heads, 1, Dh),
            p["wv"].reshape(D, num_heads, Dh).transpose(1, 0, 2).astype(bf16),
            p["bv"].reshape(num_heads, 1, Dh),
            p["wo"].reshape(num_heads, Dh, D).astype(bf16),
            p["bo"].reshape(1, D),
            p["ln2_g"].reshape(1, D), p["ln2_b"].reshape(1, D),
            p["wf1"].astype(bf16), p["bf1"].reshape(1, 4 * D),
            p["wf2"].astype(bf16), p["bf2"].reshape(1, D),
        ]
    args += [params["out_w"].astype(bf16), params["out_b"].reshape(1, A)]

    # Advisory cost estimate for XLA scheduling around the fused call.
    per_layer_flops = (
        2 * T * D * D * 3            # q,k,v projections
        + 2 * B * num_heads * S * S * Dh * 2  # scores + context
        + 2 * T * D * D              # output projection
        + 2 * T * D * (4 * D) * 2    # FFN
    )
    flops = 2 * T * Din * D + L * per_layer_flops + 2 * B * D * A
    transcendentals = L * (B * num_heads * S * S       # exp
                           + B * num_heads * S          # reciprocal
                           + 2 * T)                     # rsqrt (2 LayerNorms)
    bytes_accessed = sum(int(a.size) * a.dtype.itemsize for a in args) + B * A * 4
    cost = pl.CostEstimate(flops=flops, transcendentals=transcendentals,
                           bytes_accessed=bytes_accessed)

    kernel = partial(_fused_forward_kernel, num_layers=L, num_heads=num_heads,
                     batch=B, seq=S)

    # NOTE: gridless, fully VMEM-resident (everything here is a few tens of
    # KiB). If B (or B*S) grows for batched RL rollouts, add a grid over row
    # tiles with dimension_semantics=("parallel",) so v7x's 2 TensorCores
    # share the work, and budget weights against v7x's 64 MiB VMEM.
    return pl.pallas_call(
        kernel,
        out_shape=jax.ShapeDtypeStruct((B, A), jnp.float32),
        in_specs=[VMEM] * len(args),
        out_specs=VMEM,
        cost_estimate=cost,
    )(*args)


# ----------------------------------------------------------------------------
# Deterministic parameter init (PyTorch-style Linear uniform(-1/sqrt(fan_in)))
# ----------------------------------------------------------------------------
def _linear_init(key, fan_in, fan_out):
    kw, kb = jax.random.split(key)
    bound = 1.0 / math.sqrt(fan_in)
    w = jax.random.uniform(kw, (fan_in, fan_out), jnp.float32, -bound, bound)
    b = jax.random.uniform(kb, (fan_out,), jnp.float32, -bound, bound)
    return w, b


def init_params(key, input_dim, hidden_dim, num_layers, action_dim):
    keys = jax.random.split(key, 2 + num_layers)
    emb_w, emb_b = _linear_init(keys[0], input_dim, hidden_dim)
    out_w, out_b = _linear_init(keys[1], hidden_dim, action_dim)

    layers = []
    for li in range(num_layers):
        lk = jax.random.split(keys[2 + li], 6)
        wq, bq = _linear_init(lk[0], hidden_dim, hidden_dim)
        wk, bk = _linear_init(lk[1], hidden_dim, hidden_dim)
        wv, bv = _linear_init(lk[2], hidden_dim, hidden_dim)
        wo, bo = _linear_init(lk[3], hidden_dim, hidden_dim)
        wf1, bf1 = _linear_init(lk[4], hidden_dim, 4 * hidden_dim)
        wf2, bf2 = _linear_init(lk[5], 4 * hidden_dim, hidden_dim)
        layers.append(dict(
            ln1_g=jnp.ones((hidden_dim,), jnp.float32),
            ln1_b=jnp.zeros((hidden_dim,), jnp.float32),
            wq=wq, bq=bq, wk=wk, bk=bk, wv=wv, bv=bv, wo=wo, bo=bo,
            ln2_g=jnp.ones((hidden_dim,), jnp.float32),
            ln2_b=jnp.zeros((hidden_dim,), jnp.float32),
            wf1=wf1, bf1=bf1, wf2=wf2, bf2=bf2,
        ))

    return dict(emb_w=emb_w, emb_b=emb_b, layers=layers,
                out_w=out_w, out_b=out_b)


# ----------------------------------------------------------------------------
if __name__ == "__main__":
    # PSEADPolicyNetwork(input_dim=16, hidden_dim=32, num_heads=4, num_layers=2,
    #                    group_type='C4', window_size=8, action_dim=6)
    B, S = 2, 8               # seq length == window_size
    INPUT_DIM, HIDDEN, HEADS, LAYERS, ACTION = 16, 32, 4, 2, 6

    key = jax.random.PRNGKey(0)
    pkey, okey = jax.random.split(key)
    params = init_params(pkey, INPUT_DIM, HIDDEN, LAYERS, ACTION)
    observation = jax.random.normal(okey, (B, S, INPUT_DIM), jnp.float32)

    logits = psead_policy_forward(params, observation, num_heads=HEADS)
    logits = jax.block_until_ready(logits)

    assert logits.shape == (B, ACTION), logits.shape
    assert jnp.all(jnp.isfinite(logits))
    print("KERNEL_OK")
</pallas_src>

<mosaic_0001>
module attributes {stable_mosaic.version = 11 : i64} {
  func.func @_fused_forward_kernel(%arg0: memref<2x8x16xf32, #tpu.memory_space<vmem>>, %arg1: memref<16x32xbf16, #tpu.memory_space<vmem>>, %arg2: memref<1x32xf32, #tpu.memory_space<vmem>>, %arg3: memref<1x32xf32, #tpu.memory_space<vmem>>, %arg4: memref<1x32xf32, #tpu.memory_space<vmem>>, %arg5: memref<4x32x8xbf16, #tpu.memory_space<vmem>>, %arg6: memref<4x1x8xf32, #tpu.memory_space<vmem>>, %arg7: memref<4x32x8xbf16, #tpu.memory_space<vmem>>, %arg8: memref<4x1x8xf32, #tpu.memory_space<vmem>>, %arg9: memref<4x32x8xbf16, #tpu.memory_space<vmem>>, %arg10: memref<4x1x8xf32, #tpu.memory_space<vmem>>, %arg11: memref<4x8x32xbf16, #tpu.memory_space<vmem>>, %arg12: memref<1x32xf32, #tpu.memory_space<vmem>>, %arg13: memref<1x32xf32, #tpu.memory_space<vmem>>, %arg14: memref<1x32xf32, #tpu.memory_space<vmem>>, %arg15: memref<32x128xbf16, #tpu.memory_space<vmem>>, %arg16: memref<1x128xf32, #tpu.memory_space<vmem>>, %arg17: memref<128x32xbf16, #tpu.memory_space<vmem>>, %arg18: memref<1x32xf32, #tpu.memory_space<vmem>>, %arg19: memref<1x32xf32, #tpu.memory_space<vmem>>, %arg20: memref<1x32xf32, #tpu.memory_space<vmem>>, %arg21: memref<4x32x8xbf16, #tpu.memory_space<vmem>>, %arg22: memref<4x1x8xf32, #tpu.memory_space<vmem>>, %arg23: memref<4x32x8xbf16, #tpu.memory_space<vmem>>, %arg24: memref<4x1x8xf32, #tpu.memory_space<vmem>>, %arg25: memref<4x32x8xbf16, #tpu.memory_space<vmem>>, %arg26: memref<4x1x8xf32, #tpu.memory_space<vmem>>, %arg27: memref<4x8x32xbf16, #tpu.memory_space<vmem>>, %arg28: memref<1x32xf32, #tpu.memory_space<vmem>>, %arg29: memref<1x32xf32, #tpu.memory_space<vmem>>, %arg30: memref<1x32xf32, #tpu.memory_space<vmem>>, %arg31: memref<32x128xbf16, #tpu.memory_space<vmem>>, %arg32: memref<1x128xf32, #tpu.memory_space<vmem>>, %arg33: memref<128x32xbf16, #tpu.memory_space<vmem>>, %arg34: memref<1x32xf32, #tpu.memory_space<vmem>>, %arg35: memref<32x6xbf16, #tpu.memory_space<vmem>>, %arg36: memref<1x6xf32, #tpu.memory_space<vmem>>, %arg37: memref<2x6xf32, #tpu.memory_space<vmem>>) attributes {dimension_semantics = [], scalar_prefetch = 0 : i64, scratch_operands = 0 : i64, tpu.core_type = #tpu.core_type<tc>} {
    %c0 = arith.constant 0 : index
    %c0_0 = arith.constant 0 : index
    %c0_1 = arith.constant 0 : index
    %0 = vector.load %arg0[%c0, %c0_0, %c0_1] : memref<2x8x16xf32, #tpu.memory_space<vmem>>, vector<2x8x16xf32>
    %1 = vector.shape_cast %0 : vector<2x8x16xf32> to vector<16x16xf32>
    %2 = arith.truncf %1 : vector<16x16xf32> to vector<16x16xbf16>
    %c0_2 = arith.constant 0 : index
    %c0_3 = arith.constant 0 : index
    %3 = vector.load %arg1[%c0_2, %c0_3] : memref<16x32xbf16, #tpu.memory_space<vmem>>, vector<16x32xbf16>
    %cst = arith.constant dense<0.000000e+00> : vector<16x32xf32>
    %4 = tpu.matmul %2, %3, %cst {dimension_numbers = #tpu.dot_dimension_numbers<[1], [0], [0], [1], [0, 0, 1, 1], [], []>} : vector<16x16xbf16>, vector<16x32xbf16>, vector<16x32xf32> -> vector<16x32xf32>
    %c0_4 = arith.constant 0 : index
    %c0_5 = arith.constant 0 : index
    %5 = vector.load %arg2[%c0_4, %c0_5] : memref<1x32xf32, #tpu.memory_space<vmem>>, vector<1x32xf32>
    %6 = vector.broadcast %5 : vector<1x32xf32> to vector<16x32xf32>
    %7 = arith.addf %4, %6 : vector<16x32xf32>
    %c0_6 = arith.constant 0 : index
    %c0_7 = arith.constant 0 : index
    %8 = vector.load %arg3[%c0_6, %c0_7] : memref<1x32xf32, #tpu.memory_space<vmem>>, vector<1x32xf32>
    %c0_8 = arith.constant 0 : index
    %c0_9 = arith.constant 0 : index
    %9 = vector.load %arg4[%c0_8, %c0_9] : memref<1x32xf32, #tpu.memory_space<vmem>>, vector<1x32xf32>
    %cst_10 = arith.constant dense<0.000000e+00> : vector<16xf32>
    %10 = vector.multi_reduction <add>, %7, %cst_10 [1] : vector<16x32xf32> to vector<16xf32>
    %11 = vector.shape_cast %10 : vector<16xf32> to vector<16x1xf32>
    %cst_11 = arith.constant 3.200000e+01 : f32
    %12 = vector.broadcast %cst_11 : f32 to vector<16x1xf32>
    %13 = arith.divf %11, %12 : vector<16x1xf32>
    %14 = vector.broadcast %13 : vector<16x1xf32> to vector<16x32xf32>
    %15 = arith.subf %7, %14 : vector<16x32xf32>
    %16 = arith.mulf %15, %15 : vector<16x32xf32>
    %cst_12 = arith.constant dense<0.000000e+00> : vector<16xf32>
    %17 = vector.multi_reduction <add>, %16, %cst_12 [1] : vector<16x32xf32> to vector<16xf32>
    %18 = vector.shape_cast %17 : vector<16xf32> to vector<16x1xf32>
    %cst_13 = arith.constant 3.200000e+01 : f32
    %19 = vector.broadcast %cst_13 : f32 to vector<16x1xf32>
    %20 = arith.divf %18, %19 : vector<16x1xf32>
    %21 = vector.broadcast %13 : vector<16x1xf32> to vector<16x32xf32>
    %22 = arith.subf %7, %21 : vector<16x32xf32>
    %cst_14 = arith.constant 9.99999974E-6 : f32
    %23 = vector.broadcast %cst_14 : f32 to vector<16x1xf32>
    %24 = arith.addf %20, %23 : vector<16x1xf32>
    %25 = math.rsqrt %24 : vector<16x1xf32>
    %26 = vector.broadcast %25 : vector<16x1xf32> to vector<16x32xf32>
    %27 = arith.mulf %22, %26 : vector<16x32xf32>
    %28 = vector.broadcast %8 : vector<1x32xf32> to vector<16x32xf32>
    %29 = arith.mulf %27, %28 : vector<16x32xf32>
    %30 = vector.broadcast %9 : vector<1x32xf32> to vector<16x32xf32>
    %31 = arith.addf %29, %30 : vector<16x32xf32>
    %32 = arith.truncf %31 : vector<16x32xf32> to vector<16x32xbf16>
    %cst_15 = arith.constant 0.000000e+00 : f32
    %33 = vector.broadcast %cst_15 : f32 to vector<16x32xf32>
    %c0_16 = arith.constant 0 : index
    %c0_17 = arith.constant 0 : index
    %c0_18 = arith.constant 0 : index
    %34 = vector.load %arg5[%c0_16, %c0_17, %c0_18] : memref<4x32x8xbf16, #tpu.memory_space<vmem>>, vector<1x32x8xbf16>
    %35 = vector.shape_cast %34 : vector<1x32x8xbf16> to vector<32x8xbf16>
    %cst_19 = arith.constant dense<0.000000e+00> : vector<16x8xf32>
    %36 = tpu.matmul %32, %35, %cst_19 {dimension_numbers = #tpu.dot_dimension_numbers<[1], [0], [0], [1], [0, 0, 1, 1], [], []>} : vector<16x32xbf16>, vector<32x8xbf16>, vector<16x8xf32> -> vector<16x8xf32>
    %c0_20 = arith.constant 0 : index
    %c0_21 = arith.constant 0 : index
    %c0_22 = arith.constant 0 : index
    %37 = vector.load %arg6[%c0_20, %c0_21, %c0_22] : memref<4x1x8xf32, #tpu.memory_space<vmem>>, vector<1x1x8xf32>
    %38 = vector.shape_cast %37 : vector<1x1x8xf32> to vector<1x8xf32>
    %39 = vector.broadcast %38 : vector<1x8xf32> to vector<16x8xf32>
    %40 = arith.addf %36, %39 : vector<16x8xf32>
    %cst_23 = arith.constant 0.353553385 : f32
    %41 = vector.broadcast %cst_23 : f32 to vector<16x8xf32>
    %42 = arith.mulf %40, %41 : vector<16x8xf32>
    %c0_24 = arith.constant 0 : index
    %c0_25 = arith.constant 0 : index
    %c0_26 = arith.constant 0 : index
    %43 = vector.load %arg7[%c0_24, %c0_25, %c0_26] : memref<4x32x8xbf16, #tpu.memory_space<vmem>>, vector<1x32x8xbf16>
    %44 = vector.shape_cast %43 : vector<1x32x8xbf16> to vector<32x8xbf16>
    %cst_27 = arith.constant dense<0.000000e+00> : vector<16x8xf32>
    %45 = tpu.matmul %32, %44, %cst_27 {dimension_numbers = #tpu.dot_dimension_numbers<[1], [0], [0], [1], [0, 0, 1, 1], [], []>} : vector<16x32xbf16>, vector<32x8xbf16>, vector<16x8xf32> -> vector<16x8xf32>
    %c0_28 = arith.constant 0 : index
    %c0_29 = arith.constant 0 : index
    %c0_30 = arith.constant 0 : index
    %46 = vector.load %arg8[%c0_28, %c0_29, %c0_30] : memref<4x1x8xf32, #tpu.memory_space<vmem>>, vector<1x1x8xf32>
    %47 = vector.shape_cast %46 : vector<1x1x8xf32> to vector<1x8xf32>
    %48 = vector.broadcast %47 : vector<1x8xf32> to vector<16x8xf32>
    %49 = arith.addf %45, %48 : vector<16x8xf32>
    %c0_31 = arith.constant 0 : index
    %c0_32 = arith.constant 0 : index
    %c0_33 = arith.constant 0 : index
    %50 = vector.load %arg9[%c0_31, %c0_32, %c0_33] : memref<4x32x8xbf16, #tpu.memory_space<vmem>>, vector<1x32x8xbf16>
    %51 = vector.shape_cast %50 : vector<1x32x8xbf16> to vector<32x8xbf16>
    %cst_34 = arith.constant dense<0.000000e+00> : vector<16x8xf32>
    %52 = tpu.matmul %32, %51, %cst_34 {dimension_numbers = #tpu.dot_dimension_numbers<[1], [0], [0], [1], [0, 0, 1, 1], [], []>} : vector<16x32xbf16>, vector<32x8xbf16>, vector<16x8xf32> -> vector<16x8xf32>
    %c0_35 = arith.constant 0 : index
    %c0_36 = arith.constant 0 : index
    %c0_37 = arith.constant 0 : index
    %53 = vector.load %arg10[%c0_35, %c0_36, %c0_37] : memref<4x1x8xf32, #tpu.memory_space<vmem>>, vector<1x1x8xf32>
    %54 = vector.shape_cast %53 : vector<1x1x8xf32> to vector<1x8xf32>
    %55 = vector.broadcast %54 : vector<1x8xf32> to vector<16x8xf32>
    %56 = arith.addf %52, %55 : vector<16x8xf32>
    %57 = arith.truncf %42 : vector<16x8xf32> to vector<16x8xbf16>
    %58 = vector.shape_cast %57 : vector<16x8xbf16> to vector<2x8x8xbf16>
    %59 = arith.truncf %49 : vector<16x8xf32> to vector<16x8xbf16>
    %60 = vector.shape_cast %59 : vector<16x8xbf16> to vector<2x8x8xbf16>
    %61 = arith.truncf %56 : vector<16x8xf32> to vector<16x8xbf16>
    %62 = vector.shape_cast %61 : vector<16x8xbf16> to vector<2x8x8xbf16>
    "tpu.trace_start"() <{level = 10 : i32, message = "bqd,bkd->bqk"}> : () -> ()
    %cst_38 = arith.constant dense<0.000000e+00> : vector<2x8x8xf32>
    %63 = tpu.matmul %58, %60, %cst_38 {dimension_numbers = #tpu.dot_dimension_numbers<[2], [2], [1], [1], [0, 0, 0, 1, 1, 1], [0], [0]>} : vector<2x8x8xbf16>, vector<2x8x8xbf16>, vector<2x8x8xf32> -> vector<2x8x8xf32>
    "tpu.trace_stop"() : () -> ()
    %cst_39 = arith.constant dense<0xFF800000> : vector<2x8xf32>
    %64 = vector.multi_reduction <maximumf>, %63, %cst_39 [2] : vector<2x8x8xf32> to vector<2x8xf32>
    %65 = vector.shape_cast %64 : vector<2x8xf32> to vector<2x8x1xf32>
    %66 = vector.broadcast %65 : vector<2x8x1xf32> to vector<2x8x8xf32>
    %67 = arith.subf %63, %66 : vector<2x8x8xf32>
    %68 = math.exp %67 : vector<2x8x8xf32>
    %cst_40 = arith.constant dense<0.000000e+00> : vector<2x8xf32>
    %69 = vector.multi_reduction <add>, %68, %cst_40 [2] : vector<2x8x8xf32> to vector<2x8xf32>
    %70 = vector.shape_cast %69 : vector<2x8xf32> to vector<2x8x1xf32>
    %71 = tpu.reciprocal %70 {approx = true} : vector<2x8x1xf32> -> vector<2x8x1xf32>
    %72 = vector.broadcast %71 : vector<2x8x1xf32> to vector<2x8x8xf32>
    %73 = arith.mulf %68, %72 : vector<2x8x8xf32>
    %74 = arith.truncf %73 : vector<2x8x8xf32> to vector<2x8x8xbf16>
    "tpu.trace_start"() <{level = 10 : i32, message = "bqk,bkd->bqd"}> : () -> ()
    %cst_41 = arith.constant dense<0.000000e+00> : vector<2x8x8xf32>
    %75 = tpu.matmul %74, %62, %cst_41 {dimension_numbers = #tpu.dot_dimension_numbers<[2], [1], [1], [2], [0, 0, 0, 1, 1, 2], [0], [0]>} : vector<2x8x8xbf16>, vector<2x8x8xbf16>, vector<2x8x8xf32> -> vector<2x8x8xf32>
    "tpu.trace_stop"() : () -> ()
    %76 = vector.shape_cast %75 : vector<2x8x8xf32> to vector<16x8xf32>
    %77 = arith.truncf %76 : vector<16x8xf32> to vector<16x8xbf16>
    %c0_42 = arith.constant 0 : index
    %c0_43 = arith.constant 0 : index
    %c0_44 = arith.constant 0 : index
    %78 = vector.load %arg11[%c0_42, %c0_43, %c0_44] : memref<4x8x32xbf16, #tpu.memory_space<vmem>>, vector<1x8x32xbf16>
    %79 = vector.shape_cast %78 : vector<1x8x32xbf16> to vector<8x32xbf16>
    %cst_45 = arith.constant dense<0.000000e+00> : vector<16x32xf32>
    %80 = tpu.matmul %77, %79, %cst_45 {dimension_numbers = #tpu.dot_dimension_numbers<[1], [0], [0], [1], [0, 0, 1, 1], [], []>} : vector<16x8xbf16>, vector<8x32xbf16>, vector<16x32xf32> -> vector<16x32xf32>
    %81 = arith.addf %33, %80 : vector<16x32xf32>
    %c1 = arith.constant 1 : index
    %c0_46 = arith.constant 0 : index
    %c0_47 = arith.constant 0 : index
    %82 = vector.load %arg5[%c1, %c0_46, %c0_47] : memref<4x32x8xbf16, #tpu.memory_space<vmem>>, vector<1x32x8xbf16>
    %83 = vector.shape_cast %82 : vector<1x32x8xbf16> to vector<32x8xbf16>
    %cst_48 = arith.constant dense<0.000000e+00> : vector<16x8xf32>
    %84 = tpu.matmul %32, %83, %cst_48 {dimension_numbers = #tpu.dot_dimension_numbers<[1], [0], [0], [1], [0, 0, 1, 1], [], []>} : vector<16x32xbf16>, vector<32x8xbf16>, vector<16x8xf32> -> vector<16x8xf32>
    %c1_49 = arith.constant 1 : index
    %c0_50 = arith.constant 0 : index
    %c0_51 = arith.constant 0 : index
    %85 = vector.load %arg6[%c1_49, %c0_50, %c0_51] : memref<4x1x8xf32, #tpu.memory_space<vmem>>, vector<1x1x8xf32>
    %86 = vector.shape_cast %85 : vector<1x1x8xf32> to vector<1x8xf32>
    %87 = vector.broadcast %86 : vector<1x8xf32> to vector<16x8xf32>
    %88 = arith.addf %84, %87 : vector<16x8xf32>
    %cst_52 = arith.constant 0.353553385 : f32
    %89 = vector.broadcast %cst_52 : f32 to vector<16x8xf32>
    %90 = arith.mulf %88, %89 : vector<16x8xf32>
    %c1_53 = arith.constant 1 : index
    %c0_54 = arith.constant 0 : index
    %c0_55 = arith.constant 0 : index
    %91 = vector.load %arg7[%c1_53, %c0_54, %c0_55] : memref<4x32x8xbf16, #tpu.memory_space<vmem>>, vector<1x32x8xbf16>
    %92 = vector.shape_cast %91 : vector<1x32x8xbf16> to vector<32x8xbf16>
    %cst_56 = arith.constant dense<0.000000e+00> : vector<16x8xf32>
    %93 = tpu.matmul %32, %92, %cst_56 {dimension_numbers = #tpu.dot_dimension_numbers<[1], [0], [0], [1], [0, 0, 1, 1], [], []>} : vector<16x32xbf16>, vector<32x8xbf16>, vector<16x8xf32> -> vector<16x8xf32>
    %c1_57 = arith.constant 1 : index
    %c0_58 = arith.constant 0 : index
    %c0_59 = arith.constant 0 : index
    %94 = vector.load %arg8[%c1_57, %c0_58, %c0_59] : memref<4x1x8xf32, #tpu.memory_space<vmem>>, vector<1x1x8xf32>
    %95 = vector.shape_cast %94 : vector<1x1x8xf32> to vector<1x8xf32>
    %96 = vector.broadcast %95 : vector<1x8xf32> to vector<16x8xf32>
    %97 = arith.addf %93, %96 : vector<16x8xf32>
    %c1_60 = arith.constant 1 : index
    %c0_61 = arith.constant 0 : index
    %c0_62 = arith.constant 0 : index
    %98 = vector.load %arg9[%c1_60, %c0_61, %c0_62] : memref<4x32x8xbf16, #tpu.memory_space<vmem>>, vector<1x32x8xbf16>
    %99 = vector.shape_cast %98 : vector<1x32x8xbf16> to vector<32x8xbf16>
    %cst_63 = arith.constant dense<0.000000e+00> : vector<16x8xf32>
    %100 = tpu.matmul %32, %99, %cst_63 {dimension_numbers = #tpu.dot_dimension_numbers<[1], [0], [0], [1], [0, 0, 1, 1], [], []>} : vector<16x32xbf16>, vector<32x8xbf16>, vector<16x8xf32> -> vector<16x8xf32>
    %c1_64 = arith.constant 1 : index
    %c0_65 = arith.constant 0 : index
    %c0_66 = arith.constant 0 : index
    %101 = vector.load %arg10[%c1_64, %c0_65, %c0_66] : memref<4x1x8xf32, #tpu.memory_space<vmem>>, vector<1x1x8xf32>
    %102 = vector.shape_cast %101 : vector<1x1x8xf32> to vector<1x8xf32>
    %103 = vector.broadcast %102 : vector<1x8xf32> to vector<16x8xf32>
    %104 = arith.addf %100, %103 : vector<16x8xf32>
    %105 = arith.truncf %90 : vector<16x8xf32> to vector<16x8xbf16>
    %106 = vector.shape_cast %105 : vector<16x8xbf16> to vector<2x8x8xbf16>
    %107 = arith.truncf %97 : vector<16x8xf32> to vector<16x8xbf16>
    %108 = vector.shape_cast %107 : vector<16x8xbf16> to vector<2x8x8xbf16>
    %109 = arith.truncf %104 : vector<16x8xf32> to vector<16x8xbf16>
    %110 = vector.shape_cast %109 : vector<16x8xbf16> to vector<2x8x8xbf16>
    "tpu.trace_start"() <{level = 10 : i32, message = "bqd,bkd->bqk"}> : () -> ()
    %cst_67 = arith.constant dense<0.000000e+00> : vector<2x8x8xf32>
    %111 = tpu.matmul %106, %108, %cst_67 {dimension_numbers = #tpu.dot_dimension_numbers<[2], [2], [1], [1], [0, 0, 0, 1, 1, 1], [0], [0]>} : vector<2x8x8xbf16>, vector<2x8x8xbf16>, vector<2x8x8xf32> -> vector<2x8x8xf32>
    "tpu.trace_stop"() : () -> ()
    %cst_68 = arith.constant dense<0xFF800000> : vector<2x8xf32>
    %112 = vector.multi_reduction <maximumf>, %111, %cst_68 [2] : vector<2x8x8xf32> to vector<2x8xf32>
    %113 = vector.shape_cast %112 : vector<2x8xf32> to vector<2x8x1xf32>
    %114 = vector.broadcast %113 : vector<2x8x1xf32> to vector<2x8x8xf32>
    %115 = arith.subf %111, %114 : vector<2x8x8xf32>
    %116 = math.exp %115 : vector<2x8x8xf32>
    %cst_69 = arith.constant dense<0.000000e+00> : vector<2x8xf32>
    %117 = vector.multi_reduction <add>, %116, %cst_69 [2] : vector<2x8x8xf32> to vector<2x8xf32>
    %118 = vector.shape_cast %117 : vector<2x8xf32> to vector<2x8x1xf32>
    %119 = tpu.reciprocal %118 {approx = true} : vector<2x8x1xf32> -> vector<2x8x1xf32>
    %120 = vector.broadcast %119 : vector<2x8x1xf32> to vector<2x8x8xf32>
    %121 = arith.mulf %116, %120 : vector<2x8x8xf32>
    %122 = arith.truncf %121 : vector<2x8x8xf32> to vector<2x8x8xbf16>
    "tpu.trace_start"() <{level = 10 : i32, message = "bqk,bkd->bqd"}> : () -> ()
    %cst_70 = arith.constant dense<0.000000e+00> : vector<2x8x8xf32>
    %123 = tpu.matmul %122, %110, %cst_70 {dimension_numbers = #tpu.dot_dimension_numbers<[2], [1], [1], [2], [0, 0, 0, 1, 1, 2], [0], [0]>} : vector<2x8x8xbf16>, vector<2x8x8xbf16>, vector<2x8x8xf32> -> vector<2x8x8xf32>
    "tpu.trace_stop"() : () -> ()
    %124 = vector.shape_cast %123 : vector<2x8x8xf32> to vector<16x8xf32>
    %125 = arith.truncf %124 : vector<16x8xf32> to vector<16x8xbf16>
    %c1_71 = arith.constant 1 : index
    %c0_72 = arith.constant 0 : index
    %c0_73 = arith.constant 0 : index
    %126 = vector.load %arg11[%c1_71, %c0_72, %c0_73] : memref<4x8x32xbf16, #tpu.memory_space<vmem>>, vector<1x8x32xbf16>
    %127 = vector.shape_cast %126 : vector<1x8x32xbf16> to vector<8x32xbf16>
    %cst_74 = arith.constant dense<0.000000e+00> : vector<16x32xf32>
    %128 = tpu.matmul %125, %127, %cst_74 {dimension_numbers = #tpu.dot_dimension_numbers<[1], [0], [0], [1], [0, 0, 1, 1], [], []>} : vector<16x8xbf16>, vector<8x32xbf16>, vector<16x32xf32> -> vector<16x32xf32>
    %129 = arith.addf %81, %128 : vector<16x32xf32>
    %c2 = arith.constant 2 : index
    %c0_75 = arith.constant 0 : index
    %c0_76 = arith.constant 0 : index
    %130 = vector.load %arg5[%c2, %c0_75, %c0_76] : memref<4x32x8xbf16, #tpu.memory_space<vmem>>, vector<1x32x8xbf16>
    %131 = vector.shape_cast %130 : vector<1x32x8xbf16> to vector<32x8xbf16>
    %cst_77 = arith.constant dense<0.000000e+00> : vector<16x8xf32>
    %132 = tpu.matmul %32, %131, %cst_77 {dimension_numbers = #tpu.dot_dimension_numbers<[1], [0], [0], [1], [0, 0, 1, 1], [], []>} : vector<16x32xbf16>, vector<32x8xbf16>, vector<16x8xf32> -> vector<16x8xf32>
    %c2_78 = arith.constant 2 : index
    %c0_79 = arith.constant 0 : index
    %c0_80 = arith.constant 0 : index
    %133 = vector.load %arg6[%c2_78, %c0_79, %c0_80] : memref<4x1x8xf32, #tpu.memory_space<vmem>>, vector<1x1x8xf32>
    %134 = vector.shape_cast %133 : vector<1x1x8xf32> to vector<1x8xf32>
    %135 = vector.broadcast %134 : vector<1x8xf32> to vector<16x8xf32>
    %136 = arith.addf %132, %135 : vector<16x8xf32>
    %cst_81 = arith.constant 0.353553385 : f32
    %137 = vector.broadcast %cst_81 : f32 to vector<16x8xf32>
    %138 = arith.mulf %136, %137 : vector<16x8xf32>
    %c2_82 = arith.constant 2 : index
    %c0_83 = arith.constant 0 : index
    %c0_84 = arith.constant 0 : index
    %139 = vector.load %arg7[%c2_82, %c0_83, %c0_84] : memref<4x32x8xbf16, #tpu.memory_space<vmem>>, vector<1x32x8xbf16>
    %140 = vector.shape_cast %139 : vector<1x32x8xbf16> to vector<32x8xbf16>
    %cst_85 = arith.constant dense<0.000000e+00> : vector<16x8xf32>
    %141 = tpu.matmul %32, %140, %cst_85 {dimension_numbers = #tpu.dot_dimension_numbers<[1], [0], [0], [1], [0, 0, 1, 1], [], []>} : vector<16x32xbf16>, vector<32x8xbf16>, vector<16x8xf32> -> vector<16x8xf32>
    %c2_86 = arith.constant 2 : index
    %c0_87 = arith.constant 0 : index
    %c0_88 = arith.constant 0 : index
    %142 = vector.load %arg8[%c2_86, %c0_87, %c0_88] : memref<4x1x8xf32, #tpu.memory_space<vmem>>, vector<1x1x8xf32>
    %143 = vector.shape_cast %142 : vector<1x1x8xf32> to vector<1x8xf32>
    %144 = vector.broadcast %143 : vector<1x8xf32> to vector<16x8xf32>
    %145 = arith.addf %141, %144 : vector<16x8xf32>
    %c2_89 = arith.constant 2 : index
    %c0_90 = arith.constant 0 : index
    %c0_91 = arith.constant 0 : index
    %146 = vector.load %arg9[%c2_89, %c0_90, %c0_91] : memref<4x32x8xbf16, #tpu.memory_space<vmem>>, vector<1x32x8xbf16>
    %147 = vector.shape_cast %146 : vector<1x32x8xbf16> to vector<32x8xbf16>
    %cst_92 = arith.constant dense<0.000000e+00> : vector<16x8xf32>
    %148 = tpu.matmul %32, %147, %cst_92 {dimension_numbers = #tpu.dot_dimension_numbers<[1], [0], [0], [1], [0, 0, 1, 1], [], []>} : vector<16x32xbf16>, vector<32x8xbf16>, vector<16x8xf32> -> vector<16x8xf32>
    %c2_93 = arith.constant 2 : index
    %c0_94 = arith.constant 0 : index
    %c0_95 = arith.constant 0 : index
    %149 = vector.load %arg10[%c2_93, %c0_94, %c0_95] : memref<4x1x8xf32, #tpu.memory_space<vmem>>, vector<1x1x8xf32>
    %150 = vector.shape_cast %149 : vector<1x1x8xf32> to vector<1x8xf32>
    %151 = vector.broadcast %150 : vector<1x8xf32> to vector<16x8xf32>
    %152 = arith.addf %148, %151 : vector<16x8xf32>
    %153 = arith.truncf %138 : vector<16x8xf32> to vector<16x8xbf16>
    %154 = vector.shape_cast %153 : vector<16x8xbf16> to vector<2x8x8xbf16>
    %155 = arith.truncf %145 : vector<16x8xf32> to vector<16x8xbf16>
    %156 = vector.shape_cast %155 : vector<16x8xbf16> to vector<2x8x8xbf16>
    %157 = arith.truncf %152 : vector<16x8xf32> to vector<16x8xbf16>
    %158 = vector.shape_cast %157 : vector<16x8xbf16> to vector<2x8x8xbf16>
    "tpu.trace_start"() <{level = 10 : i32, message = "bqd,bkd->bqk"}> : () -> ()
    %cst_96 = arith.constant dense<0.000000e+00> : vector<2x8x8xf32>
    %159 = tpu.matmul %154, %156, %cst_96 {dimension_numbers = #tpu.dot_dimension_numbers<[2], [2], [1], [1], [0, 0, 0, 1, 1, 1], [0], [0]>} : vector<2x8x8xbf16>, vector<2x8x8xbf16>, vector<2x8x8xf32> -> vector<2x8x8xf32>
    "tpu.trace_stop"() : () -> ()
    %cst_97 = arith.constant dense<0xFF800000> : vector<2x8xf32>
    %160 = vector.multi_reduction <maximumf>, %159, %cst_97 [2] : vector<2x8x8xf32> to vector<2x8xf32>
    %161 = vector.shape_cast %160 : vector<2x8xf32> to vector<2x8x1xf32>
    %162 = vector.broadcast %161 : vector<2x8x1xf32> to vector<2x8x8xf32>
    %163 = arith.subf %159, %162 : vector<2x8x8xf32>
    %164 = math.exp %163 : vector<2x8x8xf32>
    %cst_98 = arith.constant dense<0.000000e+00> : vector<2x8xf32>
    %165 = vector.multi_reduction <add>, %164, %cst_98 [2] : vector<2x8x8xf32> to vector<2x8xf32>
    %166 = vector.shape_cast %165 : vector<2x8xf32> to vector<2x8x1xf32>
    %167 = tpu.reciprocal %166 {approx = true} : vector<2x8x1xf32> -> vector<2x8x1xf32>
    %168 = vector.broadcast %167 : vector<2x8x1xf32> to vector<2x8x8xf32>
    %169 = arith.mulf %164, %168 : vector<2x8x8xf32>
    %170 = arith.truncf %169 : vector<2x8x8xf32> to vector<2x8x8xbf16>
    "tpu.trace_start"() <{level = 10 : i32, message = "bqk,bkd->bqd"}> : () -> ()
    %cst_99 = arith.constant dense<0.000000e+00> : vector<2x8x8xf32>
    %171 = tpu.matmul %170, %158, %cst_99 {dimension_numbers = #tpu.dot_dimension_numbers<[2], [1], [1], [2], [0, 0, 0, 1, 1, 2], [0], [0]>} : vector<2x8x8xbf16>, vector<2x8x8xbf16>, vector<2x8x8xf32> -> vector<2x8x8xf32>
    "tpu.trace_stop"() : () -> ()
    %172 = vector.shape_cast %171 : vector<2x8x8xf32> to vector<16x8xf32>
    %173 = arith.truncf %172 : vector<16x8xf32> to vector<16x8xbf16>
    %c2_100 = arith.constant 2 : index
    %c0_101 = arith.constant 0 : index
    %c0_102 = arith.constant 0 : index
    %174 = vector.load %arg11[%c2_100, %c0_101, %c0_102] : memref<4x8x32xbf16, #tpu.memory_space<vmem>>, vector<1x8x32xbf16>
    %175 = vector.shape_cast %174 : vector<1x8x32xbf16> to vector<8x32xbf16>
    %cst_103 = arith.constant dense<0.000000e+00> : vector<16x32xf32>
    %176 = tpu.matmul %173, %175, %cst_103 {dimension_numbers = #tpu.dot_dimension_numbers<[1], [0], [0], [1], [0, 0, 1, 1], [], []>} : vector<16x8xbf16>, vector<8x32xbf16>, vector<16x32xf32> -> vector<16x32xf32>
    %177 = arith.addf %129, %176 : vector<16x32xf32>
    %c3 = arith.constant 3 : index
    %c0_104 = arith.constant 0 : index
    %c0_105 = arith.constant 0 : index
    %178 = vector.load %arg5[%c3, %c0_104, %c0_105] : memref<4x32x8xbf16, #tpu.memory_space<vmem>>, vector<1x32x8xbf16>
    %179 = vector.shape_cast %178 : vector<1x32x8xbf16> to vector<32x8xbf16>
    %cst_106 = arith.constant dense<0.000000e+00> : vector<16x8xf32>
    %180 = tpu.matmul %32, %179, %cst_106 {dimension_numbers = #tpu.dot_dimension_numbers<[1], [0], [0], [1], [0, 0, 1, 1], [], []>} : vector<16x32xbf16>, vector<32x8xbf16>, vector<16x8xf32> -> vector<16x8xf32>
    %c3_107 = arith.constant 3 : index
    %c0_108 = arith.constant 0 : index
    %c0_109 = arith.constant 0 : index
    %181 = vector.load %arg6[%c3_107, %c0_108, %c0_109] : memref<4x1x8xf32, #tpu.memory_space<vmem>>, vector<1x1x8xf32>
    %182 = vector.shape_cast %181 : vector<1x1x8xf32> to vector<1x8xf32>
    %183 = vector.broadcast %182 : vector<1x8xf32> to vector<16x8xf32>
    %184 = arith.addf %180, %183 : vector<16x8xf32>
    %cst_110 = arith.constant 0.353553385 : f32
    %185 = vector.broadcast %cst_110 : f32 to vector<16x8xf32>
    %186 = arith.mulf %184, %185 : vector<16x8xf32>
    %c3_111 = arith.constant 3 : index
    %c0_112 = arith.constant 0 : index
    %c0_113 = arith.constant 0 : index
    %187 = vector.load %arg7[%c3_111, %c0_112, %c0_113] : memref<4x32x8xbf16, #tpu.memory_space<vmem>>, vector<1x32x8xbf16>
    %188 = vector.shape_cast %187 : vector<1x32x8xbf16> to vector<32x8xbf16>
    %cst_114 = arith.constant dense<0.000000e+00> : vector<16x8xf32>
    %189 = tpu.matmul %32, %188, %cst_114 {dimension_numbers = #tpu.dot_dimension_numbers<[1], [0], [0], [1], [0, 0, 1, 1], [], []>} : vector<16x32xbf16>, vector<32x8xbf16>, vector<16x8xf32> -> vector<16x8xf32>
    %c3_115 = arith.constant 3 : index
    %c0_116 = arith.constant 0 : index
    %c0_117 = arith.constant 0 : index
    %190 = vector.load %arg8[%c3_115, %c0_116, %c0_117] : memref<4x1x8xf32, #tpu.memory_space<vmem>>, vector<1x1x8xf32>
    %191 = vector.shape_cast %190 : vector<1x1x8xf32> to vector<1x8xf32>
    %192 = vector.broadcast %191 : vector<1x8xf32> to vector<16x8xf32>
    %193 = arith.addf %189, %192 : vector<16x8xf32>
    %c3_118 = arith.constant 3 : index
    %c0_119 = arith.constant 0 : index
    %c0_120 = arith.constant 0 : index
    %194 = vector.load %arg9[%c3_118, %c0_119, %c0_120] : memref<4x32x8xbf16, #tpu.memory_space<vmem>>, vector<1x32x8xbf16>
    %195 = vector.shape_cast %194 : vector<1x32x8xbf16> to vector<32x8xbf16>
    %cst_121 = arith.constant dense<0.000000e+00> : vector<16x8xf32>
    %196 = tpu.matmul %32, %195, %cst_121 {dimension_numbers = #tpu.dot_dimension_numbers<[1], [0], [0], [1], [0, 0, 1, 1], [], []>} : vector<16x32xbf16>, vector<32x8xbf16>, vector<16x8xf32> -> vector<16x8xf32>
    %c3_122 = arith.constant 3 : index
    %c0_123 = arith.constant 0 : index
    %c0_124 = arith.constant 0 : index
    %197 = vector.load %arg10[%c3_122, %c0_123, %c0_124] : memref<4x1x8xf32, #tpu.memory_space<vmem>>, vector<1x1x8xf32>
    %198 = vector.shape_cast %197 : vector<1x1x8xf32> to vector<1x8xf32>
    %199 = vector.broadcast %198 : vector<1x8xf32> to vector<16x8xf32>
    %200 = arith.addf %196, %199 : vector<16x8xf32>
    %201 = arith.truncf %186 : vector<16x8xf32> to vector<16x8xbf16>
    %202 = vector.shape_cast %201 : vector<16x8xbf16> to vector<2x8x8xbf16>
    %203 = arith.truncf %193 : vector<16x8xf32> to vector<16x8xbf16>
    %204 = vector.shape_cast %203 : vector<16x8xbf16> to vector<2x8x8xbf16>
    %205 = arith.truncf %200 : vector<16x8xf32> to vector<16x8xbf16>
    %206 = vector.shape_cast %205 : vector<16x8xbf16> to vector<2x8x8xbf16>
    "tpu.trace_start"() <{level = 10 : i32, message = "bqd,bkd->bqk"}> : () -> ()
    %cst_125 = arith.constant dense<0.000000e+00> : vector<2x8x8xf32>
    %207 = tpu.matmul %202, %204, %cst_125 {dimension_numbers = #tpu.dot_dimension_numbers<[2], [2], [1], [1], [0, 0, 0, 1, 1, 1], [0], [0]>} : vector<2x8x8xbf16>, vector<2x8x8xbf16>, vector<2x8x8xf32> -> vector<2x8x8xf32>
    "tpu.trace_stop"() : () -> ()
    %cst_126 = arith.constant dense<0xFF800000> : vector<2x8xf32>
    %208 = vector.multi_reduction <maximumf>, %207, %cst_126 [2] : vector<2x8x8xf32> to vector<2x8xf32>
    %209 = vector.shape_cast %208 : vector<2x8xf32> to vector<2x8x1xf32>
    %210 = vector.broadcast %209 : vector<2x8x1xf32> to vector<2x8x8xf32>
    %211 = arith.subf %207, %210 : vector<2x8x8xf32>
    %212 = math.exp %211 : vector<2x8x8xf32>
    %cst_127 = arith.constant dense<0.000000e+00> : vector<2x8xf32>
    %213 = vector.multi_reduction <add>, %212, %cst_127 [2] : vector<2x8x8xf32> to vector<2x8xf32>
    %214 = vector.shape_cast %213 : vector<2x8xf32> to vector<2x8x1xf32>
    %215 = tpu.reciprocal %214 {approx = true} : vector<2x8x1xf32> -> vector<2x8x1xf32>
    %216 = vector.broadcast %215 : vector<2x8x1xf32> to vector<2x8x8xf32>
    %217 = arith.mulf %212, %216 : vector<2x8x8xf32>
    %218 = arith.truncf %217 : vector<2x8x8xf32> to vector<2x8x8xbf16>
    "tpu.trace_start"() <{level = 10 : i32, message = "bqk,bkd->bqd"}> : () -> ()
    %cst_128 = arith.constant dense<0.000000e+00> : vector<2x8x8xf32>
    %219 = tpu.matmul %218, %206, %cst_128 {dimension_numbers = #tpu.dot_dimension_numbers<[2], [1], [1], [2], [0, 0, 0, 1, 1, 2], [0], [0]>} : vector<2x8x8xbf16>, vector<2x8x8xbf16>, vector<2x8x8xf32> -> vector<2x8x8xf32>
    "tpu.trace_stop"() : () -> ()
    %220 = vector.shape_cast %219 : vector<2x8x8xf32> to vector<16x8xf32>
    %221 = arith.truncf %220 : vector<16x8xf32> to vector<16x8xbf16>
    %c3_129 = arith.constant 3 : index
    %c0_130 = arith.constant 0 : index
    %c0_131 = arith.constant 0 : index
    %222 = vector.load %arg11[%c3_129, %c0_130, %c0_131] : memref<4x8x32xbf16, #tpu.memory_space<vmem>>, vector<1x8x32xbf16>
    %223 = vector.shape_cast %222 : vector<1x8x32xbf16> to vector<8x32xbf16>
    %cst_132 = arith.constant dense<0.000000e+00> : vector<16x32xf32>
    %224 = tpu.matmul %221, %223, %cst_132 {dimension_numbers = #tpu.dot_dimension_numbers<[1], [0], [0], [1], [0, 0, 1, 1], [], []>} : vector<16x8xbf16>, vector<8x32xbf16>, vector<16x32xf32> -> vector<16x32xf32>
    %225 = arith.addf %177, %224 : vector<16x32xf32>
    %226 = arith.addf %7, %225 : vector<16x32xf32>
    %c0_133 = arith.constant 0 : index
    %c0_134 = arith.constant 0 : index
    %227 = vector.load %arg12[%c0_133, %c0_134] : memref<1x32xf32, #tpu.memory_space<vmem>>, vector<1x32xf32>
    %228 = vector.broadcast %227 : vector<1x32xf32> to vector<16x32xf32>
    %229 = arith.addf %226, %228 : vector<16x32xf32>
    %c0_135 = arith.constant 0 : index
    %c0_136 = arith.constant 0 : index
    %230 = vector.load %arg13[%c0_135, %c0_136] : memref<1x32xf32, #tpu.memory_space<vmem>>, vector<1x32xf32>
    %c0_137 = arith.constant 0 : index
    %c0_138 = arith.constant 0 : index
    %231 = vector.load %arg14[%c0_137, %c0_138] : memref<1x32xf32, #tpu.memory_space<vmem>>, vector<1x32xf32>
    %cst_139 = arith.constant dense<0.000000e+00> : vector<16xf32>
    %232 = vector.multi_reduction <add>, %229, %cst_139 [1] : vector<16x32xf32> to vector<16xf32>
    %233 = vector.shape_cast %232 : vector<16xf32> to vector<16x1xf32>
    %cst_140 = arith.constant 3.200000e+01 : f32
    %234 = vector.broadcast %cst_140 : f32 to vector<16x1xf32>
    %235 = arith.divf %233, %234 : vector<16x1xf32>
    %236 = vector.broadcast %235 : vector<16x1xf32> to vector<16x32xf32>
    %237 = arith.subf %229, %236 : vector<16x32xf32>
    %238 = arith.mulf %237, %237 : vector<16x32xf32>
    %cst_141 = arith.constant dense<0.000000e+00> : vector<16xf32>
    %239 = vector.multi_reduction <add>, %238, %cst_141 [1] : vector<16x32xf32> to vector<16xf32>
    %240 = vector.shape_cast %239 : vector<16xf32> to vector<16x1xf32>
    %cst_142 = arith.constant 3.200000e+01 : f32
    %241 = vector.broadcast %cst_142 : f32 to vector<16x1xf32>
    %242 = arith.divf %240, %241 : vector<16x1xf32>
    %243 = vector.broadcast %235 : vector<16x1xf32> to vector<16x32xf32>
    %244 = arith.subf %229, %243 : vector<16x32xf32>
    %cst_143 = arith.constant 9.99999974E-6 : f32
    %245 = vector.broadcast %cst_143 : f32 to vector<16x1xf32>
    %246 = arith.addf %242, %245 : vector<16x1xf32>
    %247 = math.rsqrt %246 : vector<16x1xf32>
    %248 = vector.broadcast %247 : vector<16x1xf32> to vector<16x32xf32>
    %249 = arith.mulf %244, %248 : vector<16x32xf32>
    %250 = vector.broadcast %230 : vector<1x32xf32> to vector<16x32xf32>
    %251 = arith.mulf %249, %250 : vector<16x32xf32>
    %252 = vector.broadcast %231 : vector<1x32xf32> to vector<16x32xf32>
    %253 = arith.addf %251, %252 : vector<16x32xf32>
    %254 = arith.truncf %253 : vector<16x32xf32> to vector<16x32xbf16>
    %c0_144 = arith.constant 0 : index
    %c0_145 = arith.constant 0 : index
    %255 = vector.load %arg15[%c0_144, %c0_145] : memref<32x128xbf16, #tpu.memory_space<vmem>>, vector<32x128xbf16>
    %cst_146 = arith.constant dense<0.000000e+00> : vector<16x128xf32>
    %256 = tpu.matmul %254, %255, %cst_146 {dimension_numbers = #tpu.dot_dimension_numbers<[1], [0], [0], [1], [0, 0, 1, 1], [], []>} : vector<16x32xbf16>, vector<32x128xbf16>, vector<16x128xf32> -> vector<16x128xf32>
    %c0_147 = arith.constant 0 : index
    %c0_148 = arith.constant 0 : index
    %257 = vector.load %arg16[%c0_147, %c0_148] : memref<1x128xf32, #tpu.memory_space<vmem>>, vector<1x128xf32>
    %258 = vector.broadcast %257 : vector<1x128xf32> to vector<16x128xf32>
    %259 = arith.addf %256, %258 : vector<16x128xf32>
    %cst_149 = arith.constant 0.000000e+00 : f32
    %260 = vector.broadcast %cst_149 : f32 to vector<16x128xf32>
    %261 = arith.maximumf %259, %260 : vector<16x128xf32>
    %262 = arith.truncf %261 : vector<16x128xf32> to vector<16x128xbf16>
    %c0_150 = arith.constant 0 : index
    %c0_151 = arith.constant 0 : index
    %263 = vector.load %arg17[%c0_150, %c0_151] : memref<128x32xbf16, #tpu.memory_space<vmem>>, vector<128x32xbf16>
    %cst_152 = arith.constant dense<0.000000e+00> : vector<16x32xf32>
    %264 = tpu.matmul %262, %263, %cst_152 {dimension_numbers = #tpu.dot_dimension_numbers<[1], [0], [0], [1], [0, 0, 1, 1], [], []>} : vector<16x128xbf16>, vector<128x32xbf16>, vector<16x32xf32> -> vector<16x32xf32>
    %c0_153 = arith.constant 0 : index
    %c0_154 = arith.constant 0 : index
    %265 = vector.load %arg18[%c0_153, %c0_154] : memref<1x32xf32, #tpu.memory_space<vmem>>, vector<1x32xf32>
    %266 = vector.broadcast %265 : vector<1x32xf32> to vector<16x32xf32>
    %267 = arith.addf %264, %266 : vector<16x32xf32>
    %268 = arith.addf %229, %267 : vector<16x32xf32>
    %c0_155 = arith.constant 0 : index
    %c0_156 = arith.constant 0 : index
    %269 = vector.load %arg19[%c0_155, %c0_156] : memref<1x32xf32, #tpu.memory_space<vmem>>, vector<1x32xf32>
    %c0_157 = arith.constant 0 : index
    %c0_158 = arith.constant 0 : index
    %270 = vector.load %arg20[%c0_157, %c0_158] : memref<1x32xf32, #tpu.memory_space<vmem>>, vector<1x32xf32>
    %cst_159 = arith.constant dense<0.000000e+00> : vector<16xf32>
    %271 = vector.multi_reduction <add>, %268, %cst_159 [1] : vector<16x32xf32> to vector<16xf32>
    %272 = vector.shape_cast %271 : vector<16xf32> to vector<16x1xf32>
    %cst_160 = arith.constant 3.200000e+01 : f32
    %273 = vector.broadcast %cst_160 : f32 to vector<16x1xf32>
    %274 = arith.divf %272, %273 : vector<16x1xf32>
    %275 = vector.broadcast %274 : vector<16x1xf32> to vector<16x32xf32>
    %276 = arith.subf %268, %275 : vector<16x32xf32>
    %277 = arith.mulf %276, %276 : vector<16x32xf32>
    %cst_161 = arith.constant dense<0.000000e+00> : vector<16xf32>
    %278 = vector.multi_reduction <add>, %277, %cst_161 [1] : vector<16x32xf32> to vector<16xf32>
    %279 = vector.shape_cast %278 : vector<16xf32> to vector<16x1xf32>
    %cst_162 = arith.constant 3.200000e+01 : f32
    %280 = vector.broadcast %cst_162 : f32 to vector<16x1xf32>
    %281 = arith.divf %279, %280 : vector<16x1xf32>
    %282 = vector.broadcast %274 : vector<16x1xf32> to vector<16x32xf32>
    %283 = arith.subf %268, %282 : vector<16x32xf32>
    %cst_163 = arith.constant 9.99999974E-6 : f32
    %284 = vector.broadcast %cst_163 : f32 to vector<16x1xf32>
    %285 = arith.addf %281, %284 : vector<16x1xf32>
    %286 = math.rsqrt %285 : vector<16x1xf32>
    %287 = vector.broadcast %286 : vector<16x1xf32> to vector<16x32xf32>
    %288 = arith.mulf %283, %287 : vector<16x32xf32>
    %289 = vector.broadcast %269 : vector<1x32xf32> to vector<16x32xf32>
    %290 = arith.mulf %288, %289 : vector<16x32xf32>
    %291 = vector.broadcast %270 : vector<1x32xf32> to vector<16x32xf32>
    %292 = arith.addf %290, %291 : vector<16x32xf32>
    %293 = arith.truncf %292 : vector<16x32xf32> to vector<16x32xbf16>
    %cst_164 = arith.constant 0.000000e+00 : f32
    %294 = vector.broadcast %cst_164 : f32 to vector<16x32xf32>
    %c0_165 = arith.constant 0 : index
    %c0_166 = arith.constant 0 : index
    %c0_167 = arith.constant 0 : index
    %295 = vector.load %arg21[%c0_165, %c0_166, %c0_167] : memref<4x32x8xbf16, #tpu.memory_space<vmem>>, vector<1x32x8xbf16>
    %296 = vector.shape_cast %295 : vector<1x32x8xbf16> to vector<32x8xbf16>
    %cst_168 = arith.constant dense<0.000000e+00> : vector<16x8xf32>
    %297 = tpu.matmul %293, %296, %cst_168 {dimension_numbers = #tpu.dot_dimension_numbers<[1], [0], [0], [1], [0, 0, 1, 1], [], []>} : vector<16x32xbf16>, vector<32x8xbf16>, vector<16x8xf32> -> vector<16x8xf32>
    %c0_169 = arith.constant 0 : index
    %c0_170 = arith.constant 0 : index
    %c0_171 = arith.constant 0 : index
    %298 = vector.load %arg22[%c0_169, %c0_170, %c0_171] : memref<4x1x8xf32, #tpu.memory_space<vmem>>, vector<1x1x8xf32>
    %299 = vector.shape_cast %298 : vector<1x1x8xf32> to vector<1x8xf32>
    %300 = vector.broadcast %299 : vector<1x8xf32> to vector<16x8xf32>
    %301 = arith.addf %297, %300 : vector<16x8xf32>
    %cst_172 = arith.constant 0.353553385 : f32
    %302 = vector.broadcast %cst_172 : f32 to vector<16x8xf32>
    %303 = arith.mulf %301, %302 : vector<16x8xf32>
    %c0_173 = arith.constant 0 : index
    %c0_174 = arith.constant 0 : index
    %c0_175 = arith.constant 0 : index
    %304 = vector.load %arg23[%c0_173, %c0_174, %c0_175] : memref<4x32x8xbf16, #tpu.memory_space<vmem>>, vector<1x32x8xbf16>
    %305 = vector.shape_cast %304 : vector<1x32x8xbf16> to vector<32x8xbf16>
    %cst_176 = arith.constant dense<0.000000e+00> : vector<16x8xf32>
    %306 = tpu.matmul %293, %305, %cst_176 {dimension_numbers = #tpu.dot_dimension_numbers<[1], [0], [0], [1], [0, 0, 1, 1], [], []>} : vector<16x32xbf16>, vector<32x8xbf16>, vector<16x8xf32> -> vector<16x8xf32>
    %c0_177 = arith.constant 0 : index
    %c0_178 = arith.constant 0 : index
    %c0_179 = arith.constant 0 : index
    %307 = vector.load %arg24[%c0_177, %c0_178, %c0_179] : memref<4x1x8xf32, #tpu.memory_space<vmem>>, vector<1x1x8xf32>
    %308 = vector.shape_cast %307 : vector<1x1x8xf32> to vector<1x8xf32>
    %309 = vector.broadcast %308 : vector<1x8xf32> to vector<16x8xf32>
    %310 = arith.addf %306, %309 : vector<16x8xf32>
    %c0_180 = arith.constant 0 : index
    %c0_181 = arith.constant 0 : index
    %c0_182 = arith.constant 0 : index
    %311 = vector.load %arg25[%c0_180, %c0_181, %c0_182] : memref<4x32x8xbf16, #tpu.memory_space<vmem>>, vector<1x32x8xbf16>
    %312 = vector.shape_cast %311 : vector<1x32x8xbf16> to vector<32x8xbf16>
    %cst_183 = arith.constant dense<0.000000e+00> : vector<16x8xf32>
    %313 = tpu.matmul %293, %312, %cst_183 {dimension_numbers = #tpu.dot_dimension_numbers<[1], [0], [0], [1], [0, 0, 1, 1], [], []>} : vector<16x32xbf16>, vector<32x8xbf16>, vector<16x8xf32> -> vector<16x8xf32>
    %c0_184 = arith.constant 0 : index
    %c0_185 = arith.constant 0 : index
    %c0_186 = arith.constant 0 : index
    %314 = vector.load %arg26[%c0_184, %c0_185, %c0_186] : memref<4x1x8xf32, #tpu.memory_space<vmem>>, vector<1x1x8xf32>
    %315 = vector.shape_cast %314 : vector<1x1x8xf32> to vector<1x8xf32>
    %316 = vector.broadcast %315 : vector<1x8xf32> to vector<16x8xf32>
    %317 = arith.addf %313, %316 : vector<16x8xf32>
    %318 = arith.truncf %303 : vector<16x8xf32> to vector<16x8xbf16>
    %319 = vector.shape_cast %318 : vector<16x8xbf16> to vector<2x8x8xbf16>
    %320 = arith.truncf %310 : vector<16x8xf32> to vector<16x8xbf16>
    %321 = vector.shape_cast %320 : vector<16x8xbf16> to vector<2x8x8xbf16>
    %322 = arith.truncf %317 : vector<16x8xf32> to vector<16x8xbf16>
    %323 = vector.shape_cast %322 : vector<16x8xbf16> to vector<2x8x8xbf16>
    "tpu.trace_start"() <{level = 10 : i32, message = "bqd,bkd->bqk"}> : () -> ()
    %cst_187 = arith.constant dense<0.000000e+00> : vector<2x8x8xf32>
    %324 = tpu.matmul %319, %321, %cst_187 {dimension_numbers = #tpu.dot_dimension_numbers<[2], [2], [1], [1], [0, 0, 0, 1, 1, 1], [0], [0]>} : vector<2x8x8xbf16>, vector<2x8x8xbf16>, vector<2x8x8xf32> -> vector<2x8x8xf32>
    "tpu.trace_stop"() : () -> ()
    %cst_188 = arith.constant dense<0xFF800000> : vector<2x8xf32>
    %325 = vector.multi_reduction <maximumf>, %324, %cst_188 [2] : vector<2x8x8xf32> to vector<2x8xf32>
    %326 = vector.shape_cast %325 : vector<2x8xf32> to vector<2x8x1xf32>
    %327 = vector.broadcast %326 : vector<2x8x1xf32> to vector<2x8x8xf32>
    %328 = arith.subf %324, %327 : vector<2x8x8xf32>
    %329 = math.exp %328 : vector<2x8x8xf32>
    %cst_189 = arith.constant dense<0.000000e+00> : vector<2x8xf32>
    %330 = vector.multi_reduction <add>, %329, %cst_189 [2] : vector<2x8x8xf32> to vector<2x8xf32>
    %331 = vector.shape_cast %330 : vector<2x8xf32> to vector<2x8x1xf32>
    %332 = tpu.reciprocal %331 {approx = true} : vector<2x8x1xf32> -> vector<2x8x1xf32>
    %333 = vector.broadcast %332 : vector<2x8x1xf32> to vector<2x8x8xf32>
    %334 = arith.mulf %329, %333 : vector<2x8x8xf32>
    %335 = arith.truncf %334 : vector<2x8x8xf32> to vector<2x8x8xbf16>
    "tpu.trace_start"() <{level = 10 : i32, message = "bqk,bkd->bqd"}> : () -> ()
    %cst_190 = arith.constant dense<0.000000e+00> : vector<2x8x8xf32>
    %336 = tpu.matmul %335, %323, %cst_190 {dimension_numbers = #tpu.dot_dimension_numbers<[2], [1], [1], [2], [0, 0, 0, 1, 1, 2], [0], [0]>} : vector<2x8x8xbf16>, vector<2x8x8xbf16>, vector<2x8x8xf32> -> vector<2x8x8xf32>
    "tpu.trace_stop"() : () -> ()
    %337 = vector.shape_cast %336 : vector<2x8x8xf32> to vector<16x8xf32>
    %338 = arith.truncf %337 : vector<16x8xf32> to vector<16x8xbf16>
    %c0_191 = arith.constant 0 : index
    %c0_192 = arith.constant 0 : index
    %c0_193 = arith.constant 0 : index
    %339 = vector.load %arg27[%c0_191, %c0_192, %c0_193] : memref<4x8x32xbf16, #tpu.memory_space<vmem>>, vector<1x8x32xbf16>
    %340 = vector.shape_cast %339 : vector<1x8x32xbf16> to vector<8x32xbf16>
    %cst_194 = arith.constant dense<0.000000e+00> : vector<16x32xf32>
    %341 = tpu.matmul %338, %340, %cst_194 {dimension_numbers = #tpu.dot_dimension_numbers<[1], [0], [0], [1], [0, 0, 1, 1], [], []>} : vector<16x8xbf16>, vector<8x32xbf16>, vector<16x32xf32> -> vector<16x32xf32>
    %342 = arith.addf %294, %341 : vector<16x32xf32>
    %c1_195 = arith.constant 1 : index
    %c0_196 = arith.constant 0 : index
    %c0_197 = arith.constant 0 : index
    %343 = vector.load %arg21[%c1_195, %c0_196, %c0_197] : memref<4x32x8xbf16, #tpu.memory_space<vmem>>, vector<1x32x8xbf16>
    %344 = vector.shape_cast %343 : vector<1x32x8xbf16> to vector<32x8xbf16>
    %cst_198 = arith.constant dense<0.000000e+00> : vector<16x8xf32>
    %345 = tpu.matmul %293, %344, %cst_198 {dimension_numbers = #tpu.dot_dimension_numbers<[1], [0], [0], [1], [0, 0, 1, 1], [], []>} : vector<16x32xbf16>, vector<32x8xbf16>, vector<16x8xf32> -> vector<16x8xf32>
    %c1_199 = arith.constant 1 : index
    %c0_200 = arith.constant 0 : index
    %c0_201 = arith.constant 0 : index
    %346 = vector.load %arg22[%c1_199, %c0_200, %c0_201] : memref<4x1x8xf32, #tpu.memory_space<vmem>>, vector<1x1x8xf32>
    %347 = vector.shape_cast %346 : vector<1x1x8xf32> to vector<1x8xf32>
    %348 = vector.broadcast %347 : vector<1x8xf32> to vector<16x8xf32>
    %349 = arith.addf %345, %348 : vector<16x8xf32>
    %cst_202 = arith.constant 0.353553385 : f32
    %350 = vector.broadcast %cst_202 : f32 to vector<16x8xf32>
    %351 = arith.mulf %349, %350 : vector<16x8xf32>
    %c1_203 = arith.constant 1 : index
    %c0_204 = arith.constant 0 : index
    %c0_205 = arith.constant 0 : index
    %352 = vector.load %arg23[%c1_203, %c0_204, %c0_205] : memref<4x32x8xbf16, #tpu.memory_space<vmem>>, vector<1x32x8xbf16>
    %353 = vector.shape_cast %352 : vector<1x32x8xbf16> to vector<32x8xbf16>
    %cst_206 = arith.constant dense<0.000000e+00> : vector<16x8xf32>
    %354 = tpu.matmul %293, %353, %cst_206 {dimension_numbers = #tpu.dot_dimension_numbers<[1], [0], [0], [1], [0, 0, 1, 1], [], []>} : vector<16x32xbf16>, vector<32x8xbf16>, vector<16x8xf32> -> vector<16x8xf32>
    %c1_207 = arith.constant 1 : index
    %c0_208 = arith.constant 0 : index
    %c0_209 = arith.constant 0 : index
    %355 = vector.load %arg24[%c1_207, %c0_208, %c0_209] : memref<4x1x8xf32, #tpu.memory_space<vmem>>, vector<1x1x8xf32>
    %356 = vector.shape_cast %355 : vector<1x1x8xf32> to vector<1x8xf32>
    %357 = vector.broadcast %356 : vector<1x8xf32> to vector<16x8xf32>
    %358 = arith.addf %354, %357 : vector<16x8xf32>
    %c1_210 = arith.constant 1 : index
    %c0_211 = arith.constant 0 : index
    %c0_212 = arith.constant 0 : index
    %359 = vector.load %arg25[%c1_210, %c0_211, %c0_212] : memref<4x32x8xbf16, #tpu.memory_space<vmem>>, vector<1x32x8xbf16>
    %360 = vector.shape_cast %359 : vector<1x32x8xbf16> to vector<32x8xbf16>
    %cst_213 = arith.constant dense<0.000000e+00> : vector<16x8xf32>
    %361 = tpu.matmul %293, %360, %cst_213 {dimension_numbers = #tpu.dot_dimension_numbers<[1], [0], [0], [1], [0, 0, 1, 1], [], []>} : vector<16x32xbf16>, vector<32x8xbf16>, vector<16x8xf32> -> vector<16x8xf32>
    %c1_214 = arith.constant 1 : index
    %c0_215 = arith.constant 0 : index
    %c0_216 = arith.constant 0 : index
    %362 = vector.load %arg26[%c1_214, %c0_215, %c0_216] : memref<4x1x8xf32, #tpu.memory_space<vmem>>, vector<1x1x8xf32>
    %363 = vector.shape_cast %362 : vector<1x1x8xf32> to vector<1x8xf32>
    %364 = vector.broadcast %363 : vector<1x8xf32> to vector<16x8xf32>
    %365 = arith.addf %361, %364 : vector<16x8xf32>
    %366 = arith.truncf %351 : vector<16x8xf32> to vector<16x8xbf16>
    %367 = vector.shape_cast %366 : vector<16x8xbf16> to vector<2x8x8xbf16>
    %368 = arith.truncf %358 : vector<16x8xf32> to vector<16x8xbf16>
    %369 = vector.shape_cast %368 : vector<16x8xbf16> to vector<2x8x8xbf16>
    %370 = arith.truncf %365 : vector<16x8xf32> to vector<16x8xbf16>
    %371 = vector.shape_cast %370 : vector<16x8xbf16> to vector<2x8x8xbf16>
    "tpu.trace_start"() <{level = 10 : i32, message = "bqd,bkd->bqk"}> : () -> ()
    %cst_217 = arith.constant dense<0.000000e+00> : vector<2x8x8xf32>
    %372 = tpu.matmul %367, %369, %cst_217 {dimension_numbers = #tpu.dot_dimension_numbers<[2], [2], [1], [1], [0, 0, 0, 1, 1, 1], [0], [0]>} : vector<2x8x8xbf16>, vector<2x8x8xbf16>, vector<2x8x8xf32> -> vector<2x8x8xf32>
    "tpu.trace_stop"() : () -> ()
    %cst_218 = arith.constant dense<0xFF800000> : vector<2x8xf32>
    %373 = vector.multi_reduction <maximumf>, %372, %cst_218 [2] : vector<2x8x8xf32> to vector<2x8xf32>
    %374 = vector.shape_cast %373 : vector<2x8xf32> to vector<2x8x1xf32>
    %375 = vector.broadcast %374 : vector<2x8x1xf32> to vector<2x8x8xf32>
    %376 = arith.subf %372, %375 : vector<2x8x8xf32>
    %377 = math.exp %376 : vector<2x8x8xf32>
    %cst_219 = arith.constant dense<0.000000e+00> : vector<2x8xf32>
    %378 = vector.multi_reduction <add>, %377, %cst_219 [2] : vector<2x8x8xf32> to vector<2x8xf32>
    %379 = vector.shape_cast %378 : vector<2x8xf32> to vector<2x8x1xf32>
    %380 = tpu.reciprocal %379 {approx = true} : vector<2x8x1xf32> -> vector<2x8x1xf32>
    %381 = vector.broadcast %380 : vector<2x8x1xf32> to vector<2x8x8xf32>
    %382 = arith.mulf %377, %381 : vector<2x8x8xf32>
    %383 = arith.truncf %382 : vector<2x8x8xf32> to vector<2x8x8xbf16>
    "tpu.trace_start"() <{level = 10 : i32, message = "bqk,bkd->bqd"}> : () -> ()
    %cst_220 = arith.constant dense<0.000000e+00> : vector<2x8x8xf32>
    %384 = tpu.matmul %383, %371, %cst_220 {dimension_numbers = #tpu.dot_dimension_numbers<[2], [1], [1], [2], [0, 0, 0, 1, 1, 2], [0], [0]>} : vector<2x8x8xbf16>, vector<2x8x8xbf16>, vector<2x8x8xf32> -> vector<2x8x8xf32>
    "tpu.trace_stop"() : () -> ()
    %385 = vector.shape_cast %384 : vector<2x8x8xf32> to vector<16x8xf32>
    %386 = arith.truncf %385 : vector<16x8xf32> to vector<16x8xbf16>
    %c1_221 = arith.constant 1 : index
    %c0_222 = arith.constant 0 : index
    %c0_223 = arith.constant 0 : index
    %387 = vector.load %arg27[%c1_221, %c0_222, %c0_223] : memref<4x8x32xbf16, #tpu.memory_space<vmem>>, vector<1x8x32xbf16>
    %388 = vector.shape_cast %387 : vector<1x8x32xbf16> to vector<8x32xbf16>
    %cst_224 = arith.constant dense<0.000000e+00> : vector<16x32xf32>
    %389 = tpu.matmul %386, %388, %cst_224 {dimension_numbers = #tpu.dot_dimension_numbers<[1], [0], [0], [1], [0, 0, 1, 1], [], []>} : vector<16x8xbf16>, vector<8x32xbf16>, vector<16x32xf32> -> vector<16x32xf32>
    %390 = arith.addf %342, %389 : vector<16x32xf32>
    %c2_225 = arith.constant 2 : index
    %c0_226 = arith.constant 0 : index
    %c0_227 = arith.constant 0 : index
    %391 = vector.load %arg21[%c2_225, %c0_226, %c0_227] : memref<4x32x8xbf16, #tpu.memory_space<vmem>>, vector<1x32x8xbf16>
    %392 = vector.shape_cast %391 : vector<1x32x8xbf16> to vector<32x8xbf16>
    %cst_228 = arith.constant dense<0.000000e+00> : vector<16x8xf32>
    %393 = tpu.matmul %293, %392, %cst_228 {dimension_numbers = #tpu.dot_dimension_numbers<[1], [0], [0], [1], [0, 0, 1, 1], [], []>} : vector<16x32xbf16>, vector<32x8xbf16>, vector<16x8xf32> -> vector<16x8xf32>
    %c2_229 = arith.constant 2 : index
    %c0_230 = arith.constant 0 : index
    %c0_231 = arith.constant 0 : index
    %394 = vector.load %arg22[%c2_229, %c0_230, %c0_231] : memref<4x1x8xf32, #tpu.memory_space<vmem>>, vector<1x1x8xf32>
    %395 = vector.shape_cast %394 : vector<1x1x8xf32> to vector<1x8xf32>
    %396 = vector.broadcast %395 : vector<1x8xf32> to vector<16x8xf32>
    %397 = arith.addf %393, %396 : vector<16x8xf32>
    %cst_232 = arith.constant 0.353553385 : f32
    %398 = vector.broadcast %cst_232 : f32 to vector<16x8xf32>
    %399 = arith.mulf %397, %398 : vector<16x8xf32>
    %c2_233 = arith.constant 2 : index
    %c0_234 = arith.constant 0 : index
    %c0_235 = arith.constant 0 : index
    %400 = vector.load %arg23[%c2_233, %c0_234, %c0_235] : memref<4x32x8xbf16, #tpu.memory_space<vmem>>, vector<1x32x8xbf16>
    %401 = vector.shape_cast %400 : vector<1x32x8xbf16> to vector<32x8xbf16>
    %cst_236 = arith.constant dense<0.000000e+00> : vector<16x8xf32>
    %402 = tpu.matmul %293, %401, %cst_236 {dimension_numbers = #tpu.dot_dimension_numbers<[1], [0], [0], [1], [0, 0, 1, 1], [], []>} : vector<16x32xbf16>, vector<32x8xbf16>, vector<16x8xf32> -> vector<16x8xf32>
    %c2_237 = arith.constant 2 : index
    %c0_238 = arith.constant 0 : index
    %c0_239 = arith.constant 0 : index
    %403 = vector.load %arg24[%c2_237, %c0_238, %c0_239] : memref<4x1x8xf32, #tpu.memory_space<vmem>>, vector<1x1x8xf32>
    %404 = vector.shape_cast %403 : vector<1x1x8xf32> to vector<1x8xf32>
    %405 = vector.broadcast %404 : vector<1x8xf32> to vector<16x8xf32>
    %406 = arith.addf %402, %405 : vector<16x8xf32>
    %c2_240 = arith.constant 2 : index
    %c0_241 = arith.constant 0 : index
    %c0_242 = arith.constant 0 : index
    %407 = vector.load %arg25[%c2_240, %c0_241, %c0_242] : memref<4x32x8xbf16, #tpu.memory_space<vmem>>, vector<1x32x8xbf16>
    %408 = vector.shape_cast %407 : vector<1x32x8xbf16> to vector<32x8xbf16>
    %cst_243 = arith.constant dense<0.000000e+00> : vector<16x8xf32>
    %409 = tpu.matmul %293, %408, %cst_243 {dimension_numbers = #tpu.dot_dimension_numbers<[1], [0], [0], [1], [0, 0, 1, 1], [], []>} : vector<16x32xbf16>, vector<32x8xbf16>, vector<16x8xf32> -> vector<16x8xf32>
    %c2_244 = arith.constant 2 : index
    %c0_245 = arith.constant 0 : index
    %c0_246 = arith.constant 0 : index
    %410 = vector.load %arg26[%c2_244, %c0_245, %c0_246] : memref<4x1x8xf32, #tpu.memory_space<vmem>>, vector<1x1x8xf32>
    %411 = vector.shape_cast %410 : vector<1x1x8xf32> to vector<1x8xf32>
    %412 = vector.broadcast %411 : vector<1x8xf32> to vector<16x8xf32>
    %413 = arith.addf %409, %412 : vector<16x8xf32>
    %414 = arith.truncf %399 : vector<16x8xf32> to vector<16x8xbf16>
    %415 = vector.shape_cast %414 : vector<16x8xbf16> to vector<2x8x8xbf16>
    %416 = arith.truncf %406 : vector<16x8xf32> to vector<16x8xbf16>
    %417 = vector.shape_cast %416 : vector<16x8xbf16> to vector<2x8x8xbf16>
    %418 = arith.truncf %413 : vector<16x8xf32> to vector<16x8xbf16>
    %419 = vector.shape_cast %418 : vector<16x8xbf16> to vector<2x8x8xbf16>
    "tpu.trace_start"() <{level = 10 : i32, message = "bqd,bkd->bqk"}> : () -> ()
    %cst_247 = arith.constant dense<0.000000e+00> : vector<2x8x8xf32>
    %420 = tpu.matmul %415, %417, %cst_247 {dimension_numbers = #tpu.dot_dimension_numbers<[2], [2], [1], [1], [0, 0, 0, 1, 1, 1], [0], [0]>} : vector<2x8x8xbf16>, vector<2x8x8xbf16>, vector<2x8x8xf32> -> vector<2x8x8xf32>
    "tpu.trace_stop"() : () -> ()
    %cst_248 = arith.constant dense<0xFF800000> : vector<2x8xf32>
    %421 = vector.multi_reduction <maximumf>, %420, %cst_248 [2] : vector<2x8x8xf32> to vector<2x8xf32>
    %422 = vector.shape_cast %421 : vector<2x8xf32> to vector<2x8x1xf32>
    %423 = vector.broadcast %422 : vector<2x8x1xf32> to vector<2x8x8xf32>
    %424 = arith.subf %420, %423 : vector<2x8x8xf32>
    %425 = math.exp %424 : vector<2x8x8xf32>
    %cst_249 = arith.constant dense<0.000000e+00> : vector<2x8xf32>
    %426 = vector.multi_reduction <add>, %425, %cst_249 [2] : vector<2x8x8xf32> to vector<2x8xf32>
    %427 = vector.shape_cast %426 : vector<2x8xf32> to vector<2x8x1xf32>
    %428 = tpu.reciprocal %427 {approx = true} : vector<2x8x1xf32> -> vector<2x8x1xf32>
    %429 = vector.broadcast %428 : vector<2x8x1xf32> to vector<2x8x8xf32>
    %430 = arith.mulf %425, %429 : vector<2x8x8xf32>
    %431 = arith.truncf %430 : vector<2x8x8xf32> to vector<2x8x8xbf16>
    "tpu.trace_start"() <{level = 10 : i32, message = "bqk,bkd->bqd"}> : () -> ()
    %cst_250 = arith.constant dense<0.000000e+00> : vector<2x8x8xf32>
    %432 = tpu.matmul %431, %419, %cst_250 {dimension_numbers = #tpu.dot_dimension_numbers<[2], [1], [1], [2], [0, 0, 0, 1, 1, 2], [0], [0]>} : vector<2x8x8xbf16>, vector<2x8x8xbf16>, vector<2x8x8xf32> -> vector<2x8x8xf32>
    "tpu.trace_stop"() : () -> ()
    %433 = vector.shape_cast %432 : vector<2x8x8xf32> to vector<16x8xf32>
    %434 = arith.truncf %433 : vector<16x8xf32> to vector<16x8xbf16>
    %c2_251 = arith.constant 2 : index
    %c0_252 = arith.constant 0 : index
    %c0_253 = arith.constant 0 : index
    %435 = vector.load %arg27[%c2_251, %c0_252, %c0_253] : memref<4x8x32xbf16, #tpu.memory_space<vmem>>, vector<1x8x32xbf16>
    %436 = vector.shape_cast %435 : vector<1x8x32xbf16> to vector<8x32xbf16>
    %cst_254 = arith.constant dense<0.000000e+00> : vector<16x32xf32>
    %437 = tpu.matmul %434, %436, %cst_254 {dimension_numbers = #tpu.dot_dimension_numbers<[1], [0], [0], [1], [0, 0, 1, 1], [], []>} : vector<16x8xbf16>, vector<8x32xbf16>, vector<16x32xf32> -> vector<16x32xf32>
    %438 = arith.addf %390, %437 : vector<16x32xf32>
    %c3_255 = arith.constant 3 : index
    %c0_256 = arith.constant 0 : index
    %c0_257 = arith.constant 0 : index
    %439 = vector.load %arg21[%c3_255, %c0_256, %c0_257] : memref<4x32x8xbf16, #tpu.memory_space<vmem>>, vector<1x32x8xbf16>
    %440 = vector.shape_cast %439 : vector<1x32x8xbf16> to vector<32x8xbf16>
    %cst_258 = arith.constant dense<0.000000e+00> : vector<16x8xf32>
    %441 = tpu.matmul %293, %440, %cst_258 {dimension_numbers = #tpu.dot_dimension_numbers<[1], [0], [0], [1], [0, 0, 1, 1], [], []>} : vector<16x32xbf16>, vector<32x8xbf16>, vector<16x8xf32> -> vector<16x8xf32>
    %c3_259 = arith.constant 3 : index
    %c0_260 = arith.constant 0 : index
    %c0_261 = arith.constant 0 : index
    %442 = vector.load %arg22[%c3_259, %c0_260, %c0_261] : memref<4x1x8xf32, #tpu.memory_space<vmem>>, vector<1x1x8xf32>
    %443 = vector.shape_cast %442 : vector<1x1x8xf32> to vector<1x8xf32>
    %444 = vector.broadcast %443 : vector<1x8xf32> to vector<16x8xf32>
    %445 = arith.addf %441, %444 : vector<16x8xf32>
    %cst_262 = arith.constant 0.353553385 : f32
    %446 = vector.broadcast %cst_262 : f32 to vector<16x8xf32>
    %447 = arith.mulf %445, %446 : vector<16x8xf32>
    %c3_263 = arith.constant 3 : index
    %c0_264 = arith.constant 0 : index
    %c0_265 = arith.constant 0 : index
    %448 = vector.load %arg23[%c3_263, %c0_264, %c0_265] : memref<4x32x8xbf16, #tpu.memory_space<vmem>>, vector<1x32x8xbf16>
    %449 = vector.shape_cast %448 : vector<1x32x8xbf16> to vector<32x8xbf16>
    %cst_266 = arith.constant dense<0.000000e+00> : vector<16x8xf32>
    %450 = tpu.matmul %293, %449, %cst_266 {dimension_numbers = #tpu.dot_dimension_numbers<[1], [0], [0], [1], [0, 0, 1, 1], [], []>} : vector<16x32xbf16>, vector<32x8xbf16>, vector<16x8xf32> -> vector<16x8xf32>
    %c3_267 = arith.constant 3 : index
    %c0_268 = arith.constant 0 : index
    %c0_269 = arith.constant 0 : index
    %451 = vector.load %arg24[%c3_267, %c0_268, %c0_269] : memref<4x1x8xf32, #tpu.memory_space<vmem>>, vector<1x1x8xf32>
    %452 = vector.shape_cast %451 : vector<1x1x8xf32> to vector<1x8xf32>
    %453 = vector.broadcast %452 : vector<1x8xf32> to vector<16x8xf32>
    %454 = arith.addf %450, %453 : vector<16x8xf32>
    %c3_270 = arith.constant 3 : index
    %c0_271 = arith.constant 0 : index
    %c0_272 = arith.constant 0 : index
    %455 = vector.load %arg25[%c3_270, %c0_271, %c0_272] : memref<4x32x8xbf16, #tpu.memory_space<vmem>>, vector<1x32x8xbf16>
    %456 = vector.shape_cast %455 : vector<1x32x8xbf16> to vector<32x8xbf16>
    %cst_273 = arith.constant dense<0.000000e+00> : vector<16x8xf32>
    %457 = tpu.matmul %293, %456, %cst_273 {dimension_numbers = #tpu.dot_dimension_numbers<[1], [0], [0], [1], [0, 0, 1, 1], [], []>} : vector<16x32xbf16>, vector<32x8xbf16>, vector<16x8xf32> -> vector<16x8xf32>
    %c3_274 = arith.constant 3 : index
    %c0_275 = arith.constant 0 : index
    %c0_276 = arith.constant 0 : index
    %458 = vector.load %arg26[%c3_274, %c0_275, %c0_276] : memref<4x1x8xf32, #tpu.memory_space<vmem>>, vector<1x1x8xf32>
    %459 = vector.shape_cast %458 : vector<1x1x8xf32> to vector<1x8xf32>
    %460 = vector.broadcast %459 : vector<1x8xf32> to vector<16x8xf32>
    %461 = arith.addf %457, %460 : vector<16x8xf32>
    %462 = arith.truncf %447 : vector<16x8xf32> to vector<16x8xbf16>
    %463 = vector.shape_cast %462 : vector<16x8xbf16> to vector<2x8x8xbf16>
    %464 = arith.truncf %454 : vector<16x8xf32> to vector<16x8xbf16>
    %465 = vector.shape_cast %464 : vector<16x8xbf16> to vector<2x8x8xbf16>
    %466 = arith.truncf %461 : vector<16x8xf32> to vector<16x8xbf16>
    %467 = vector.shape_cast %466 : vector<16x8xbf16> to vector<2x8x8xbf16>
    "tpu.trace_start"() <{level = 10 : i32, message = "bqd,bkd->bqk"}> : () -> ()
    %cst_277 = arith.constant dense<0.000000e+00> : vector<2x8x8xf32>
    %468 = tpu.matmul %463, %465, %cst_277 {dimension_numbers = #tpu.dot_dimension_numbers<[2], [2], [1], [1], [0, 0, 0, 1, 1, 1], [0], [0]>} : vector<2x8x8xbf16>, vector<2x8x8xbf16>, vector<2x8x8xf32> -> vector<2x8x8xf32>
    "tpu.trace_stop"() : () -> ()
    %cst_278 = arith.constant dense<0xFF800000> : vector<2x8xf32>
    %469 = vector.multi_reduction <maximumf>, %468, %cst_278 [2] : vector<2x8x8xf32> to vector<2x8xf32>
    %470 = vector.shape_cast %469 : vector<2x8xf32> to vector<2x8x1xf32>
    %471 = vector.broadcast %470 : vector<2x8x1xf32> to vector<2x8x8xf32>
    %472 = arith.subf %468, %471 : vector<2x8x8xf32>
    %473 = math.exp %472 : vector<2x8x8xf32>
    %cst_279 = arith.constant dense<0.000000e+00> : vector<2x8xf32>
    %474 = vector.multi_reduction <add>, %473, %cst_279 [2] : vector<2x8x8xf32> to vector<2x8xf32>
    %475 = vector.shape_cast %474 : vector<2x8xf32> to vector<2x8x1xf32>
    %476 = tpu.reciprocal %475 {approx = true} : vector<2x8x1xf32> -> vector<2x8x1xf32>
    %477 = vector.broadcast %476 : vector<2x8x1xf32> to vector<2x8x8xf32>
    %478 = arith.mulf %473, %477 : vector<2x8x8xf32>
    %479 = arith.truncf %478 : vector<2x8x8xf32> to vector<2x8x8xbf16>
    "tpu.trace_start"() <{level = 10 : i32, message = "bqk,bkd->bqd"}> : () -> ()
    %cst_280 = arith.constant dense<0.000000e+00> : vector<2x8x8xf32>
    %480 = tpu.matmul %479, %467, %cst_280 {dimension_numbers = #tpu.dot_dimension_numbers<[2], [1], [1], [2], [0, 0, 0, 1, 1, 2], [0], [0]>} : vector<2x8x8xbf16>, vector<2x8x8xbf16>, vector<2x8x8xf32> -> vector<2x8x8xf32>
    "tpu.trace_stop"() : () -> ()
    %481 = vector.shape_cast %480 : vector<2x8x8xf32> to vector<16x8xf32>
    %482 = arith.truncf %481 : vector<16x8xf32> to vector<16x8xbf16>
    %c3_281 = arith.constant 3 : index
    %c0_282 = arith.constant 0 : index
    %c0_283 = arith.constant 0 : index
    %483 = vector.load %arg27[%c3_281, %c0_282, %c0_283] : memref<4x8x32xbf16, #tpu.memory_space<vmem>>, vector<1x8x32xbf16>
    %484 = vector.shape_cast %483 : vector<1x8x32xbf16> to vector<8x32xbf16>
    %cst_284 = arith.constant dense<0.000000e+00> : vector<16x32xf32>
    %485 = tpu.matmul %482, %484, %cst_284 {dimension_numbers = #tpu.dot_dimension_numbers<[1], [0], [0], [1], [0, 0, 1, 1], [], []>} : vector<16x8xbf16>, vector<8x32xbf16>, vector<16x32xf32> -> vector<16x32xf32>
    %486 = arith.addf %438, %485 : vector<16x32xf32>
    %487 = arith.addf %268, %486 : vector<16x32xf32>
    %c0_285 = arith.constant 0 : index
    %c0_286 = arith.constant 0 : index
    %488 = vector.load %arg28[%c0_285, %c0_286] : memref<1x32xf32, #tpu.memory_space<vmem>>, vector<1x32xf32>
    %489 = vector.broadcast %488 : vector<1x32xf32> to vector<16x32xf32>
    %490 = arith.addf %487, %489 : vector<16x32xf32>
    %c0_287 = arith.constant 0 : index
    %c0_288 = arith.constant 0 : index
    %491 = vector.load %arg29[%c0_287, %c0_288] : memref<1x32xf32, #tpu.memory_space<vmem>>, vector<1x32xf32>
    %c0_289 = arith.constant 0 : index
    %c0_290 = arith.constant 0 : index
    %492 = vector.load %arg30[%c0_289, %c0_290] : memref<1x32xf32, #tpu.memory_space<vmem>>, vector<1x32xf32>
    %cst_291 = arith.constant dense<0.000000e+00> : vector<16xf32>
    %493 = vector.multi_reduction <add>, %490, %cst_291 [1] : vector<16x32xf32> to vector<16xf32>
    %494 = vector.shape_cast %493 : vector<16xf32> to vector<16x1xf32>
    %cst_292 = arith.constant 3.200000e+01 : f32
    %495 = vector.broadcast %cst_292 : f32 to vector<16x1xf32>
    %496 = arith.divf %494, %495 : vector<16x1xf32>
    %497 = vector.broadcast %496 : vector<16x1xf32> to vector<16x32xf32>
    %498 = arith.subf %490, %497 : vector<16x32xf32>
    %499 = arith.mulf %498, %498 : vector<16x32xf32>
    %cst_293 = arith.constant dense<0.000000e+00> : vector<16xf32>
    %500 = vector.multi_reduction <add>, %499, %cst_293 [1] : vector<16x32xf32> to vector<16xf32>
    %501 = vector.shape_cast %500 : vector<16xf32> to vector<16x1xf32>
    %cst_294 = arith.constant 3.200000e+01 : f32
    %502 = vector.broadcast %cst_294 : f32 to vector<16x1xf32>
    %503 = arith.divf %501, %502 : vector<16x1xf32>
    %504 = vector.broadcast %496 : vector<16x1xf32> to vector<16x32xf32>
    %505 = arith.subf %490, %504 : vector<16x32xf32>
    %cst_295 = arith.constant 9.99999974E-6 : f32
    %506 = vector.broadcast %cst_295 : f32 to vector<16x1xf32>
    %507 = arith.addf %503, %506 : vector<16x1xf32>
    %508 = math.rsqrt %507 : vector<16x1xf32>
    %509 = vector.broadcast %508 : vector<16x1xf32> to vector<16x32xf32>
    %510 = arith.mulf %505, %509 : vector<16x32xf32>
    %511 = vector.broadcast %491 : vector<1x32xf32> to vector<16x32xf32>
    %512 = arith.mulf %510, %511 : vector<16x32xf32>
    %513 = vector.broadcast %492 : vector<1x32xf32> to vector<16x32xf32>
    %514 = arith.addf %512, %513 : vector<16x32xf32>
    %515 = arith.truncf %514 : vector<16x32xf32> to vector<16x32xbf16>
    %c0_296 = arith.constant 0 : index
    %c0_297 = arith.constant 0 : index
    %516 = vector.load %arg31[%c0_296, %c0_297] : memref<32x128xbf16, #tpu.memory_space<vmem>>, vector<32x128xbf16>
    %cst_298 = arith.constant dense<0.000000e+00> : vector<16x128xf32>
    %517 = tpu.matmul %515, %516, %cst_298 {dimension_numbers = #tpu.dot_dimension_numbers<[1], [0], [0], [1], [0, 0, 1, 1], [], []>} : vector<16x32xbf16>, vector<32x128xbf16>, vector<16x128xf32> -> vector<16x128xf32>
    %c0_299 = arith.constant 0 : index
    %c0_300 = arith.constant 0 : index
    %518 = vector.load %arg32[%c0_299, %c0_300] : memref<1x128xf32, #tpu.memory_space<vmem>>, vector<1x128xf32>
    %519 = vector.broadcast %518 : vector<1x128xf32> to vector<16x128xf32>
    %520 = arith.addf %517, %519 : vector<16x128xf32>
    %cst_301 = arith.constant 0.000000e+00 : f32
    %521 = vector.broadcast %cst_301 : f32 to vector<16x128xf32>
    %522 = arith.maximumf %520, %521 : vector<16x128xf32>
    %523 = arith.truncf %522 : vector<16x128xf32> to vector<16x128xbf16>
    %c0_302 = arith.constant 0 : index
    %c0_303 = arith.constant 0 : index
    %524 = vector.load %arg33[%c0_302, %c0_303] : memref<128x32xbf16, #tpu.memory_space<vmem>>, vector<128x32xbf16>
    %cst_304 = arith.constant dense<0.000000e+00> : vector<16x32xf32>
    %525 = tpu.matmul %523, %524, %cst_304 {dimension_numbers = #tpu.dot_dimension_numbers<[1], [0], [0], [1], [0, 0, 1, 1], [], []>} : vector<16x128xbf16>, vector<128x32xbf16>, vector<16x32xf32> -> vector<16x32xf32>
    %c0_305 = arith.constant 0 : index
    %c0_306 = arith.constant 0 : index
    %526 = vector.load %arg34[%c0_305, %c0_306] : memref<1x32xf32, #tpu.memory_space<vmem>>, vector<1x32xf32>
    %527 = vector.broadcast %526 : vector<1x32xf32> to vector<16x32xf32>
    %528 = arith.addf %525, %527 : vector<16x32xf32>
    %529 = arith.addf %490, %528 : vector<16x32xf32>
    %530 = vector.shape_cast %529 : vector<16x32xf32> to vector<2x8x32xf32>
    %cst_307 = arith.constant dense<0.000000e+00> : vector<2x32xf32>
    %531 = vector.multi_reduction <add>, %530, %cst_307 [1] : vector<2x8x32xf32> to vector<2x32xf32>
    %cst_308 = arith.constant 8.000000e+00 : f32
    %532 = vector.broadcast %cst_308 : f32 to vector<2x32xf32>
    %533 = arith.divf %531, %532 : vector<2x32xf32>
    %534 = arith.truncf %533 : vector<2x32xf32> to vector<2x32xbf16>
    %c0_309 = arith.constant 0 : index
    %c0_310 = arith.constant 0 : index
    %535 = vector.load %arg35[%c0_309, %c0_310] : memref<32x6xbf16, #tpu.memory_space<vmem>>, vector<32x6xbf16>
    %cst_311 = arith.constant dense<0.000000e+00> : vector<2x6xf32>
    %536 = tpu.matmul %534, %535, %cst_311 {dimension_numbers = #tpu.dot_dimension_numbers<[1], [0], [0], [1], [0, 0, 1, 1], [], []>} : vector<2x32xbf16>, vector<32x6xbf16>, vector<2x6xf32> -> vector<2x6xf32>
    %c0_312 = arith.constant 0 : index
    %c0_313 = arith.constant 0 : index
    %537 = vector.load %arg36[%c0_312, %c0_313] : memref<1x6xf32, #tpu.memory_space<vmem>>, vector<1x6xf32>
    %538 = vector.broadcast %537 : vector<1x6xf32> to vector<2x6xf32>
    %539 = arith.addf %536, %538 : vector<2x6xf32>
    %c0_314 = arith.constant 0 : index
    %c0_315 = arith.constant 0 : index
    %540 = vector.load %arg37[%c0_314, %c0_315] : memref<2x6xf32, #tpu.memory_space<vmem>>, vector<2x6xf32>
    tpu.vector_store %arg37[%c0_314, %c0_315], %539 {strides = array<i32>} : memref<2x6xf32, #tpu.memory_space<vmem>>, vector<2x6xf32>,
    return
  }
}

</mosaic_0001>

<llo_original>
// kernel: tpu_custom_call.1
$region0: #{tpu_custom_call.1}
  #allocation0 [shape = 'u32[]', space=smem, size = 0x4, offset = 0x4, fixed_abs, tag = 'smem constant byte address 0x4 - core index']
  #allocation1 [shape = 'u32[144,128]{1,0:T(1,128)}', space=vmem, size = 0x12000, scoped, tag = 'internal scratch']
  %s0 = inlined_call_operand.smem [shape: u32[38], index: -1, kind: input, shape index: {}]
  %s1 = sld [smem:[%s0]]
  %s2 = scalar_lea.smem %s0, 1
  %s3 = sld [smem:[%s2]]
  %s4 = scalar_lea.smem %s0, 2
  %s5 = sld [smem:[%s4]]
  %s6 = scalar_lea.smem %s0, 3
  %s7 = sld [smem:[%s6]]
  %s8 = scalar_lea.smem %s0, 4
  %s9 = sld [smem:[%s8]]
  %s10 = scalar_lea.smem %s0, 5
  %s11 = sld [smem:[%s10]]
  %s12 = scalar_lea.smem %s0, 6
  %s13 = sld [smem:[%s12]]
  %s14 = scalar_lea.smem %s0, 7
  %s15 = sld [smem:[%s14]]
  %s16 = scalar_lea.smem %s0, 8
  %s17 = sld [smem:[%s16]]
  %s18 = scalar_lea.smem %s0, 9
  %s19 = sld [smem:[%s18]]
  %s20 = scalar_lea.smem %s0, 10
  %s21 = sld [smem:[%s20]]
  %s22 = scalar_lea.smem %s0, 11
  %s23 = sld [smem:[%s22]]
  %s24 = scalar_lea.smem %s0, 12
  %s25 = sld [smem:[%s24]]
  %s26 = scalar_lea.smem %s0, 13
  %s27 = sld [smem:[%s26]]
  %s28 = scalar_lea.smem %s0, 14
  %s29 = sld [smem:[%s28]]
  %s30 = scalar_lea.smem %s0, 15
  %s31 = sld [smem:[%s30]]
  %s32 = scalar_lea.smem %s0, 16
  %s33 = sld [smem:[%s32]]
  %s34 = scalar_lea.smem %s0, 17
  %s35 = sld [smem:[%s34]]
  %s36 = scalar_lea.smem %s0, 18
  %s37 = sld [smem:[%s36]]
  %s38 = scalar_lea.smem %s0, 19
  %s39 = sld [smem:[%s38]]
  %s40 = scalar_lea.smem %s0, 20
  %s41 = sld [smem:[%s40]]
  %s42 = scalar_lea.smem %s0, 21
  %s43 = sld [smem:[%s42]]
  %s44 = scalar_lea.smem %s0, 22
  %s45 = sld [smem:[%s44]]
  %s46 = scalar_lea.smem %s0, 23
  %s47 = sld [smem:[%s46]]
  %s48 = scalar_lea.smem %s0, 24
  %s49 = sld [smem:[%s48]]
  %s50 = scalar_lea.smem %s0, 25
  %s51 = sld [smem:[%s50]]
  %s52 = scalar_lea.smem %s0, 26
  %s53 = sld [smem:[%s52]]
  %s54 = scalar_lea.smem %s0, 27
  %s55 = sld [smem:[%s54]]
  %s56 = scalar_lea.smem %s0, 28
  %s57 = sld [smem:[%s56]]
  %s58 = scalar_lea.smem %s0, 29
  %s59 = sld [smem:[%s58]]
  %s60 = scalar_lea.smem %s0, 30
  %s61 = sld [smem:[%s60]]
  %s62 = scalar_lea.smem %s0, 31
  %s63 = sld [smem:[%s62]]
  %s64 = scalar_lea.smem %s0, 32
  %s65 = sld [smem:[%s64]]
  %s66 = scalar_lea.smem %s0, 33
  %s67 = sld [smem:[%s66]]
  %s68 = scalar_lea.smem %s0, 34
  %s69 = sld [smem:[%s68]]
  %s70 = scalar_lea.smem %s0, 35
  %s71 = sld [smem:[%s70]]
  %s72 = scalar_lea.smem %s0, 36
  %s73 = sld [smem:[%s72]]
  %s74 = scalar_lea.smem %s0, 37
  %s75 = sld [smem:[%s74]]
  %s76 = sld [smem:[#allocation0]]
  $region158: #{tpu_custom_call.1} parent=0
    _
  %s78 = ssub.s32 1, %s76
  %s79 = scalar_select 0, %s78, %s76
  $region1: #{tpu_custom_call.1} parent=0
    #allocation2 [shape = 'u8[1024]{0}', space=vmem, size = 0x400, scoped, tag = 'output window, operand 0, single buffered']
    #allocation3 [shape = 's32[1]{0}', space=sflag, size = 0x4, scoped, tag = 'scoped memory for tpu_custom_call.1']
    %80 = vsyncpa [#allocation3], 0
    // Predicated region
    $region2: #{tpu_custom_call.1} parent=1 // pred_check
      _
    $region3: #{tpu_custom_call.1} parent=1 // pred_check_branch
      %82 = sbr.rel (0) target = $region5
    $region4: #{tpu_custom_call.1} parent=1 // pred_region
      _
    $region5: #{tpu_custom_call.1} parent=1 // pred_fallthru
      _
    // Predicated region
    $region6: #{tpu_custom_call.1} parent=1 // pred_check
      _
    $region7: #{tpu_custom_call.1} parent=1 // pred_check_branch
      %84 = sbr.rel (0) target = $region9
    $region8: #{tpu_custom_call.1} parent=1 // pred_region
      _
    $region9: #{tpu_custom_call.1} parent=1 // pred_fallthru
      _
    // Predicated region
    $region10: #{tpu_custom_call.1} parent=1 // pred_check
      _
    $region11: #{tpu_custom_call.1} parent=1 // pred_check_branch
      %86 = sbr.rel (0) target = $region13
    $region12: #{tpu_custom_call.1} parent=1 // pred_region
      _
    $region13: #{tpu_custom_call.1} parent=1 // pred_fallthru
      _
    // Predicated region
    $region14: #{tpu_custom_call.1} parent=1 // pred_check
      _
    $region15: #{tpu_custom_call.1} parent=1 // pred_check_branch
      %88 = sbr.rel (0) target = $region17
    $region16: #{tpu_custom_call.1} parent=1 // pred_region
      _
    $region17: #{tpu_custom_call.1} parent=1 // pred_fallthru
      _
    // Predicated region
    $region18: #{tpu_custom_call.1} parent=1 // pred_check
      _
    $region19: #{tpu_custom_call.1} parent=1 // pred_check_branch
      %90 = sbr.rel (0) target = $region21
    $region20: #{tpu_custom_call.1} parent=1 // pred_region
      _
    $region21: #{tpu_custom_call.1} parent=1 // pred_fallthru
      _
    // Predicated region
    $region22: #{tpu_custom_call.1} parent=1 // pred_check
      _
    $region23: #{tpu_custom_call.1} parent=1 // pred_check_branch
      %92 = sbr.rel (0) target = $region25
    $region24: #{tpu_custom_call.1} parent=1 // pred_region
      _
    $region25: #{tpu_custom_call.1} parent=1 // pred_fallthru
      _
    // Predicated region
    $region26: #{tpu_custom_call.1} parent=1 // pred_check
      _
    $region27: #{tpu_custom_call.1} parent=1 // pred_check_branch
      %94 = sbr.rel (0) target = $region29
    $region28: #{tpu_custom_call.1} parent=1 // pred_region
      _
    $region29: #{tpu_custom_call.1} parent=1 // pred_fallthru
      _
    // Predicated region
    $region30: #{tpu_custom_call.1} parent=1 // pred_check
      _
    $region31: #{tpu_custom_call.1} parent=1 // pred_check_branch
      %96 = sbr.rel (0) target = $region33
    $region32: #{tpu_custom_call.1} parent=1 // pred_region
      _
    $region33: #{tpu_custom_call.1} parent=1 // pred_fallthru
      _
    // Predicated region
    $region34: #{tpu_custom_call.1} parent=1 // pred_check
      _
    $region35: #{tpu_custom_call.1} parent=1 // pred_check_branch
      %98 = sbr.rel (0) target = $region37
    $region36: #{tpu_custom_call.1} parent=1 // pred_region
      _
    $region37: #{tpu_custom_call.1} parent=1 // pred_fallthru
      _
    // Predicated region
    $region38: #{tpu_custom_call.1} parent=1 // pred_check
      _
    $region39: #{tpu_custom_call.1} parent=1 // pred_check_branch
      %100 = sbr.rel (0) target = $region41
    $region40: #{tpu_custom_call.1} parent=1 // pred_region
      _
    $region41: #{tpu_custom_call.1} parent=1 // pred_fallthru
      _
    // Predicated region
    $region42: #{tpu_custom_call.1} parent=1 // pred_check
      _
    $region43: #{tpu_custom_call.1} parent=1 // pred_check_branch
      %102 = sbr.rel (0) target = $region45
    $region44: #{tpu_custom_call.1} parent=1 // pred_region
      _
    $region45: #{tpu_custom_call.1} parent=1 // pred_fallthru
      _
    // Predicated region
    $region46: #{tpu_custom_call.1} parent=1 // pred_check
      _
    $region47: #{tpu_custom_call.1} parent=1 // pred_check_branch
      %104 = sbr.rel (0) target = $region49
    $region48: #{tpu_custom_call.1} parent=1 // pred_region
      _
    $region49: #{tpu_custom_call.1} parent=1 // pred_fallthru
      _
    // Predicated region
    $region50: #{tpu_custom_call.1} parent=1 // pred_check
      _
    $region51: #{tpu_custom_call.1} parent=1 // pred_check_branch
      %106 = sbr.rel (0) target = $region53
    $region52: #{tpu_custom_call.1} parent=1 // pred_region
      _
    $region53: #{tpu_custom_call.1} parent=1 // pred_fallthru
      _
    // Predicated region
    $region54: #{tpu_custom_call.1} parent=1 // pred_check
      _
    $region55: #{tpu_custom_call.1} parent=1 // pred_check_branch
      %108 = sbr.rel (0) target = $region57
    $region56: #{tpu_custom_call.1} parent=1 // pred_region
      _
    $region57: #{tpu_custom_call.1} parent=1 // pred_fallthru
      _
    // Predicated region
    $region58: #{tpu_custom_call.1} parent=1 // pred_check
      _
    $region59: #{tpu_custom_call.1} parent=1 // pred_check_branch
      %110 = sbr.rel (0) target = $region61
    $region60: #{tpu_custom_call.1} parent=1 // pred_region
      _
    $region61: #{tpu_custom_call.1} parent=1 // pred_fallthru
      _
    // Predicated region
    $region62: #{tpu_custom_call.1} parent=1 // pred_check
      _
    $region63: #{tpu_custom_call.1} parent=1 // pred_check_branch
      %112 = sbr.rel (0) target = $region65
    $region64: #{tpu_custom_call.1} parent=1 // pred_region
      _
    $region65: #{tpu_custom_call.1} parent=1 // pred_fallthru
      _
    // Predicated region
    $region66: #{tpu_custom_call.1} parent=1 // pred_check
      _
    $region67: #{tpu_custom_call.1} parent=1 // pred_check_branch
      %114 = sbr.rel (0) target = $region69
    $region68: #{tpu_custom_call.1} parent=1 // pred_region
      _
    $region69: #{tpu_custom_call.1} parent=1 // pred_fallthru
      _
    // Predicated region
    $region70: #{tpu_custom_call.1} parent=1 // pred_check
      _
    $region71: #{tpu_custom_call.1} parent=1 // pred_check_branch
      %116 = sbr.rel (0) target = $region73
    $region72: #{tpu_custom_call.1} parent=1 // pred_region
      _
    $region73: #{tpu_custom_call.1} parent=1 // pred_fallthru
      _
    // Predicated region
    $region74: #{tpu_custom_call.1} parent=1 // pred_check
      _
    $region75: #{tpu_custom_call.1} parent=1 // pred_check_branch
      %118 = sbr.rel (0) target = $region77
    $region76: #{tpu_custom_call.1} parent=1 // pred_region
      _
    $region77: #{tpu_custom_call.1} parent=1 // pred_fallthru
      _
    // Predicated region
    $region78: #{tpu_custom_call.1} parent=1 // pred_check
      _
    $region79: #{tpu_custom_call.1} parent=1 // pred_check_branch
      %120 = sbr.rel (0) target = $region81
    $region80: #{tpu_custom_call.1} parent=1 // pred_region
      _
    $region81: #{tpu_custom_call.1} parent=1 // pred_fallthru
      _
    // Predicated region
    $region82: #{tpu_custom_call.1} parent=1 // pred_check
      _
    $region83: #{tpu_custom_call.1} parent=1 // pred_check_branch
      %122 = sbr.rel (0) target = $region85
    $region84: #{tpu_custom_call.1} parent=1 // pred_region
      _
    $region85: #{tpu_custom_call.1} parent=1 // pred_fallthru
      _
    // Predicated region
    $region86: #{tpu_custom_call.1} parent=1 // pred_check
      _
    $region87: #{tpu_custom_call.1} parent=1 // pred_check_branch
      %124 = sbr.rel (0) target = $region89
    $region88: #{tpu_custom_call.1} parent=1 // pred_region
      _
    $region89: #{tpu_custom_call.1} parent=1 // pred_fallthru
      _
    // Predicated region
    $region90: #{tpu_custom_call.1} parent=1 // pred_check
      _
    $region91: #{tpu_custom_call.1} parent=1 // pred_check_branch
      %126 = sbr.rel (0) target = $region93
    $region92: #{tpu_custom_call.1} parent=1 // pred_region
      _
    $region93: #{tpu_custom_call.1} parent=1 // pred_fallthru
      _
    // Predicated region
    $region94: #{tpu_custom_call.1} parent=1 // pred_check
      _
    $region95: #{tpu_custom_call.1} parent=1 // pred_check_branch
      %128 = sbr.rel (0) target = $region97
    $region96: #{tpu_custom_call.1} parent=1 // pred_region
      _
    $region97: #{tpu_custom_call.1} parent=1 // pred_fallthru
      _
    // Predicated region
    $region98: #{tpu_custom_call.1} parent=1 // pred_check
      _
    $region99: #{tpu_custom_call.1} parent=1 // pred_check_branch
      %130 = sbr.rel (0) target = $region101
    $region100: #{tpu_custom_call.1} parent=1 // pred_region
      _
    $region101: #{tpu_custom_call.1} parent=1 // pred_fallthru
      _
    // Predicated region
    $region102: #{tpu_custom_call.1} parent=1 // pred_check
      _
    $region103: #{tpu_custom_call.1} parent=1 // pred_check_branch
      %132 = sbr.rel (0) target = $region105
    $region104: #{tpu_custom_call.1} parent=1 // pred_region
      _
    $region105: #{tpu_custom_call.1} parent=1 // pred_fallthru
      _
    // Predicated region
    $region106: #{tpu_custom_call.1} parent=1 // pred_check
      _
    $region107: #{tpu_custom_call.1} parent=1 // pred_check_branch
      %134 = sbr.rel (0) target = $region109
    $region108: #{tpu_custom_call.1} parent=1 // pred_region
      _
    $region109: #{tpu_custom_call.1} parent=1 // pred_fallthru
      _
    // Predicated region
    $region110: #{tpu_custom_call.1} parent=1 // pred_check
      _
    $region111: #{tpu_custom_call.1} parent=1 // pred_check_branch
      %136 = sbr.rel (0) target = $region113
    $region112: #{tpu_custom_call.1} parent=1 // pred_region
      _
    $region113: #{tpu_custom_call.1} parent=1 // pred_fallthru
      _
    // Predicated region
    $region114: #{tpu_custom_call.1} parent=1 // pred_check
      _
    $region115: #{tpu_custom_call.1} parent=1 // pred_check_branch
      %138 = sbr.rel (0) target = $region117
    $region116: #{tpu_custom_call.1} parent=1 // pred_region
      _
    $region117: #{tpu_custom_call.1} parent=1 // pred_fallthru
      _
    // Predicated region
    $region118: #{tpu_custom_call.1} parent=1 // pred_check
      _
    $region119: #{tpu_custom_call.1} parent=1 // pred_check_branch
      %140 = sbr.rel (0) target = $region121
    $region120: #{tpu_custom_call.1} parent=1 // pred_region
      _
    $region121: #{tpu_custom_call.1} parent=1 // pred_fallthru
      _
    // Predicated region
    $region122: #{tpu_custom_call.1} parent=1 // pred_check
      _
    $region123: #{tpu_custom_call.1} parent=1 // pred_check_branch
      %142 = sbr.rel (0) target = $region125
    $region124: #{tpu_custom_call.1} parent=1 // pred_region
      _
    $region125: #{tpu_custom_call.1} parent=1 // pred_fallthru
      _
    // Predicated region
    $region126: #{tpu_custom_call.1} parent=1 // pred_check
      _
    $region127: #{tpu_custom_call.1} parent=1 // pred_check_branch
      %144 = sbr.rel (0) target = $region129
    $region128: #{tpu_custom_call.1} parent=1 // pred_region
      _
    $region129: #{tpu_custom_call.1} parent=1 // pred_fallthru
      _
    // Predicated region
    $region130: #{tpu_custom_call.1} parent=1 // pred_check
      _
    $region131: #{tpu_custom_call.1} parent=1 // pred_check_branch
      %146 = sbr.rel (0) target = $region133
    $region132: #{tpu_custom_call.1} parent=1 // pred_region
      _
    $region133: #{tpu_custom_call.1} parent=1 // pred_fallthru
      _
    // Predicated region
    $region134: #{tpu_custom_call.1} parent=1 // pred_check
      _
    $region135: #{tpu_custom_call.1} parent=1 // pred_check_branch
      %148 = sbr.rel (0) target = $region137
    $region136: #{tpu_custom_call.1} parent=1 // pred_region
      _
    $region137: #{tpu_custom_call.1} parent=1 // pred_fallthru
      _
    // Predicated region
    $region138: #{tpu_custom_call.1} parent=1 // pred_check
      _
    $region139: #{tpu_custom_call.1} parent=1 // pred_check_branch
      %150 = sbr.rel (0) target = $region141
    $region140: #{tpu_custom_call.1} parent=1 // pred_region
      _
    $region141: #{tpu_custom_call.1} parent=1 // pred_fallthru
      _
    // Predicated region
    $region142: #{tpu_custom_call.1} parent=1 // pred_check
      _
    $region143: #{tpu_custom_call.1} parent=1 // pred_check_branch
      %152 = sbr.rel (0) target = $region145
    $region144: #{tpu_custom_call.1} parent=1 // pred_region
      _
    $region145: #{tpu_custom_call.1} parent=1 // pred_fallthru
      _
    // Predicated region
    $region146: #{tpu_custom_call.1} parent=1 // pred_check
      _
    $region147: #{tpu_custom_call.1} parent=1 // pred_check_branch
      %154 = sbr.rel (0) target = $region149
    $region148: #{tpu_custom_call.1} parent=1 // pred_region
      _
    $region149: #{tpu_custom_call.1} parent=1 // pred_fallthru
      _
    %v156 = vld [vmem:[%s1] sm:$0xff]
    %v157 = vld [vmem:[%s1 + $0x8] sm:$0xff]
    %v158 = vpack.c.bf16 %v157, %v156
    %v159 = vld [vmem:[%s3] sm:$0xf]
    %v160 = vld [vmem:[%s3 + $0x4] sm:$0xf]
    %v161 = vld [vmem:[%s5] sm:$0x1]
    %v163 = vlaneseq
    %v164 = vshrl.u32 %v163, 7
    %v165 = vsub.s32 0, %v164
    %v166 = vrot.slane %v161, %v165
    %v170 = vunpack.c.l.b16 %v159
    %v171 = vunpack.c.l.b16 %v160
    %v172 = vpack.c.b16 %v171, %v170
    %vm174 = vcmask 130048
    %v176 = vsel %vm174, %v158, 0
    %178 = vmatprep.subr.bf16.mxu0 0
    %179 = vmatpush1.bf16.msra.mxu0 %v172
    %180 = vmatprep.subr.bf16.mxu0 0
    %181 = vmatpush1.bf16.msra.mxu0 0
    %182 = vmatprep.subr.bf16.mxu0 0
    %183 = vmatpush1.bf16.msra.mxu0 0
    %184 = vmatprep.subr.bf16.mxu0 0
    %185 = vmatpush1.bf16.msra.mxu0 0
    %186 = vmatprep.subr.bf16.mxu0 0
    %187 = vmatpush1.bf16.msra.mxu0 0
    %188 = vmatprep.subr.bf16.mxu0 0
    %189 = vmatpush1.bf16.msra.mxu0 0
    %190 = vmatprep.subr.bf16.mxu0 0
    %191 = vmatpush1.bf16.msra.mxu0 0
    %192 = vmatprep.subr.bf16.mxu0 0
    %193 = vmatpush1.bf16.msra.mxu0 0
    %194 = vmatprep.subr.bf16.mxu0 0
    %195 = vmatpush1.bf16.msra.mxu0 0
    %196 = vmatprep.subr.bf16.mxu0 0
    %197 = vmatpush1.bf16.msra.mxu0 0
    %198 = vmatprep.subr.bf16.mxu0 0
    %199 = vmatpush1.bf16.msra.mxu0 0
    %200 = vmatprep.subr.bf16.mxu0 0
    %201 = vmatpush1.bf16.msra.mxu0 0
    %202 = vmatprep.subr.bf16.mxu0 0
    %203 = vmatpush1.bf16.msra.mxu0 0
    %204 = vmatprep.subr.bf16.mxu0 0
    %205 = vmatpush1.bf16.msra.mxu0 0
    %206 = vmatprep.subr.bf16.mxu0 0
    %207 = vmatpush1.bf16.msra.mxu0 0
    %208 = vmatprep.subr.bf16.mxu0 0
    %209 = vmatpush1.bf16.msra.mxu0 0
    %210 = vmatprep.mubr.bf16.mxu0 0
    %211 = vmatmul.mubr.bf16.gmra.mrb[0].mxu0 %v176
    %v212 = vpop.f32.mrb[0].mxu0
    %v213 = vadd.f32 %v166, %v212
    %v214 = vpop.f32.mrb[0].mxu0
    %v215 = vpop.f32.mrb[0].mxu0
    %v216 = vadd.f32 %v166, %v215
    %v217 = vpop.f32.mrb[0].mxu0
    %218 = vdwg.mxu0
    %v219 = vld [vmem:[%s7] sm:$0x1]
    %v220 = vld [vmem:[%s9] sm:$0x1]
    %vm221 = vcmask 261120
    %v222 = vsel %vm221, %v213, 0.0
    %223 = vadd.xlane.f32.xlu0 %v222
    %v224 = vpop.xlane.xlu0 %223
    %v225 = vsel %vm221, %v216, 0.0
    %226 = vadd.xlane.f32.xlu0 %v225
    %v227 = vpop.xlane.xlu0 %226
    %v228 = vrcp.pop 32.0
    %v229 = vmul.f32 %v224, %v228
    %v230 = vmul.f32 %v227, %v228
    %v231 = vsub.f32 %v213, %v229
    %v232 = vsub.f32 %v216, %v230
    %v233 = vmul.f32 %v231, %v231
    %v234 = vmul.f32 %v232, %v232
    %v235 = vsel %vm221, %v233, 0.0
    %236 = vadd.xlane.f32.xlu0 %v235
    %v237 = vpop.xlane.xlu0 %236
    %v238 = vsel %vm221, %v234, 0.0
    %239 = vadd.xlane.f32.xlu0 %v238
    %v240 = vpop.xlane.xlu0 %239
    %v241 = vmul.f32 %v237, %v228
    %v242 = vmul.f32 %v240, %v228
    %v243 = vadd.f32 %v241, 1e-05
    %v244 = vadd.f32 %v242, 1e-05
    %v245 = vrsqrt.pop %v243
    %v246 = vrsqrt.pop %v244
    %v247 = vmul.f32 %v231, %v245
    %v248 = vmul.f32 %v232, %v246
    %v250 = vlaneseq
    %v251 = vshrl.u32 %v250, 7
    %v252 = vsub.s32 0, %v251
    %v253 = vrot.slane %v219, %v252
    %v255 = vmul.f32 %v247, %v253
    %v256 = vmul.f32 %v248, %v253
    %v258 = vlaneseq
    %v259 = vshrl.u32 %v258, 7
    %v260 = vsub.s32 0, %v259
    %v261 = vrot.slane %v220, %v260
    %v263 = vadd.f32 %v255, %v261
    %v264 = vadd.f32 %v256, %v261
    %v265 = vpack.c.bf16 %v264, %v263
    %v266 = vld [vmem:[%s11] sm:$0xf]
    %v267 = vld [vmem:[%s11 + $0x4] sm:$0xf]
    %v268 = vld [vmem:[%s11 + $0x8] sm:$0xf]
    %v269 = vld [vmem:[%s11 + $0xc] sm:$0xf]
    %v270 = vld [vmem:[%s13] sm:$0x1]
    %v272 = vlaneseq
    %v273 = vshrl.u32 %v272, 7
    %v274 = vsub.s32 0, %v273
    %v275 = vrot.slane %v270, %v274
    %v281 = vunpack.c.l.b16 %v266
    %v282 = vunpack.c.l.b16 %v267
    %v283 = vunpack.c.l.b16 %v268
    %v284 = vunpack.c.l.b16 %v269
    %v285 = vpack.c.b16 %v282, %v281
    %v286 = vpack.c.b16 %v284, %v283
    %v290 = vsel %vm221, %v265, 0
    %292 = vmatprep.subr.bf16.mxu0 0
    %293 = vmatpush1.bf16.msra.mxu0 %v285
    %294 = vmatprep.subr.bf16.mxu0 0
    %295 = vmatpush1.bf16.msra.mxu0 %v286
    %296 = vmatprep.subr.bf16.mxu0 0
    %297 = vmatpush1.bf16.msra.mxu0 0
    %298 = vmatprep.subr.bf16.mxu0 0
    %299 = vmatpush1.bf16.msra.mxu0 0
    %300 = vmatprep.subr.bf16.mxu0 0
    %301 = vmatpush1.bf16.msra.mxu0 0
    %302 = vmatprep.subr.bf16.mxu0 0
    %303 = vmatpush1.bf16.msra.mxu0 0
    %304 = vmatprep.subr.bf16.mxu0 0
    %305 = vmatpush1.bf16.msra.mxu0 0
    %306 = vmatprep.subr.bf16.mxu0 0
    %307 = vmatpush1.bf16.msra.mxu0 0
    %308 = vmatprep.subr.bf16.mxu0 0
    %309 = vmatpush1.bf16.msra.mxu0 0
    %310 = vmatprep.subr.bf16.mxu0 0
    %311 = vmatpush1.bf16.msra.mxu0 0
    %312 = vmatprep.subr.bf16.mxu0 0
    %313 = vmatpush1.bf16.msra.mxu0 0
    %314 = vmatprep.subr.bf16.mxu0 0
    %315 = vmatpush1.bf16.msra.mxu0 0
    %316 = vmatprep.subr.bf16.mxu0 0
    %317 = vmatpush1.bf16.msra.mxu0 0
    %318 = vmatprep.subr.bf16.mxu0 0
    %319 = vmatpush1.bf16.msra.mxu0 0
    %320 = vmatprep.subr.bf16.mxu0 0
    %321 = vmatpush1.bf16.msra.mxu0 0
    %322 = vmatprep.subr.bf16.mxu0 0
    %323 = vmatpush1.bf16.msra.mxu0 0
    %324 = vmatprep.mubr.bf16.mxu0 0
    %325 = vmatmul.mubr.bf16.gmra.mrb[0].mxu0 %v290
    %v326 = vpop.f32.mrb[0].mxu0
    %v327 = vadd.f32 %v275, %v326
    %v328 = vpop.f32.mrb[0].mxu0
    %v329 = vpop.f32.mrb[0].mxu0
    %v330 = vadd.f32 %v275, %v329
    %v331 = vpop.f32.mrb[0].mxu0
    %332 = vdwg.mxu0
    %v333 = vmul.f32 %v327, 0.35355338
    %v334 = vmul.f32 %v330, 0.35355338
    %v335 = vld [vmem:[%s15] sm:$0xf]
    %v336 = vld [vmem:[%s15 + $0x4] sm:$0xf]
    %v337 = vld [vmem:[%s15 + $0x8] sm:$0xf]
    %v338 = vld [vmem:[%s15 + $0xc] sm:$0xf]
    %v339 = vld [vmem:[%s17] sm:$0x1]
    %v341 = vlaneseq
    %v342 = vshrl.u32 %v341, 7
    %v343 = vsub.s32 0, %v342
    %v344 = vrot.slane %v339, %v343
    %v350 = vunpack.c.l.b16 %v335
    %v351 = vunpack.c.l.b16 %v336
    %v352 = vunpack.c.l.b16 %v337
    %v353 = vunpack.c.l.b16 %v338
    %v354 = vpack.c.b16 %v351, %v350
    %v355 = vpack.c.b16 %v353, %v352
    %358 = vmatprep.subr.bf16.mxu0 0
    %359 = vmatpush1.bf16.msra.mxu0 %v354
    %360 = vmatprep.subr.bf16.mxu0 0
    %361 = vmatpush1.bf16.msra.mxu0 %v355
    %362 = vmatprep.subr.bf16.mxu0 0
    %363 = vmatpush1.bf16.msra.mxu0 0
    %364 = vmatprep.subr.bf16.mxu0 0
    %365 = vmatpush1.bf16.msra.mxu0 0
    %366 = vmatprep.subr.bf16.mxu0 0
    %367 = vmatpush1.bf16.msra.mxu0 0
    %368 = vmatprep.subr.bf16.mxu0 0
    %369 = vmatpush1.bf16.msra.mxu0 0
    %370 = vmatprep.subr.bf16.mxu0 0
    %371 = vmatpush1.bf16.msra.mxu0 0
    %372 = vmatprep.subr.bf16.mxu0 0
    %373 = vmatpush1.bf16.msra.mxu0 0
    %374 = vmatprep.subr.bf16.mxu0 0
    %375 = vmatpush1.bf16.msra.mxu0 0
    %376 = vmatprep.subr.bf16.mxu0 0
    %377 = vmatpush1.bf16.msra.mxu0 0
    %378 = vmatprep.subr.bf16.mxu0 0
    %379 = vmatpush1.bf16.msra.mxu0 0
    %380 = vmatprep.subr.bf16.mxu0 0
    %381 = vmatpush1.bf16.msra.mxu0 0
    %382 = vmatprep.subr.bf16.mxu0 0
    %383 = vmatpush1.bf16.msra.mxu0 0
    %384 = vmatprep.subr.bf16.mxu0 0
    %385 = vmatpush1.bf16.msra.mxu0 0
    %386 = vmatprep.subr.bf16.mxu0 0
    %387 = vmatpush1.bf16.msra.mxu0 0
    %388 = vmatprep.subr.bf16.mxu0 0
    %389 = vmatpush1.bf16.msra.mxu0 0
    %390 = vmatprep.mubr.bf16.mxu0 0
    %391 = vmatmul.mubr.bf16.gmra.mrb[0].mxu0 %v290
    %v392 = vpop.f32.mrb[0].mxu0
    %v393 = vadd.f32 %v344, %v392
    %v394 = vpop.f32.mrb[0].mxu0
    %v395 = vpop.f32.mrb[0].mxu0
    %v396 = vadd.f32 %v344, %v395
    %v397 = vpop.f32.mrb[0].mxu0
    %398 = vdwg.mxu0
    %v399 = vld [vmem:[%s19] sm:$0xf]
    %v400 = vld [vmem:[%s19 + $0x4] sm:$0xf]
    %v401 = vld [vmem:[%s19 + $0x8] sm:$0xf]
    %v402 = vld [vmem:[%s19 + $0xc] sm:$0xf]
    %v403 = vld [vmem:[%s21] sm:$0x1]
    %v405 = vlaneseq
    %v406 = vshrl.u32 %v405, 7
    %v407 = vsub.s32 0, %v406
    %v408 = vrot.slane %v403, %v407
    %v414 = vunpack.c.l.b16 %v399
    %v415 = vunpack.c.l.b16 %v400
    %v416 = vunpack.c.l.b16 %v401
    %v417 = vunpack.c.l.b16 %v402
    %v418 = vpack.c.b16 %v415, %v414
    %v419 = vpack.c.b16 %v417, %v416
    %422 = vmatprep.subr.bf16.mxu0 0
    %423 = vmatpush1.bf16.msra.mxu0 %v418
    %424 = vmatprep.subr.bf16.mxu0 0
    %425 = vmatpush1.bf16.msra.mxu0 %v419
    %426 = vmatprep.subr.bf16.mxu0 0
    %427 = vmatpush1.bf16.msra.mxu0 0
    %428 = vmatprep.subr.bf16.mxu0 0
    %429 = vmatpush1.bf16.msra.mxu0 0
    %430 = vmatprep.subr.bf16.mxu0 0
    %431 = vmatpush1.bf16.msra.mxu0 0
    %432 = vmatprep.subr.bf16.mxu0 0
    %433 = vmatpush1.bf16.msra.mxu0 0
    %434 = vmatprep.subr.bf16.mxu0 0
    %435 = vmatpush1.bf16.msra.mxu0 0
    %436 = vmatprep.subr.bf16.mxu0 0
    %437 = vmatpush1.bf16.msra.mxu0 0
    %438 = vmatprep.subr.bf16.mxu0 0
    %439 = vmatpush1.bf16.msra.mxu0 0
    %440 = vmatprep.subr.bf16.mxu0 0
    %441 = vmatpush1.bf16.msra.mxu0 0
    %442 = vmatprep.subr.bf16.mxu0 0
    %443 = vmatpush1.bf16.msra.mxu0 0
    %444 = vmatprep.subr.bf16.mxu0 0
    %445 = vmatpush1.bf16.msra.mxu0 0
    %446 = vmatprep.subr.bf16.mxu0 0
    %447 = vmatpush1.bf16.msra.mxu0 0
    %448 = vmatprep.subr.bf16.mxu0 0
    %449 = vmatpush1.bf16.msra.mxu0 0
    %450 = vmatprep.subr.bf16.mxu0 0
    %451 = vmatpush1.bf16.msra.mxu0 0
    %452 = vmatprep.subr.bf16.mxu0 0
    %453 = vmatpush1.bf16.msra.mxu0 0
    %454 = vmatprep.mubr.bf16.mxu0 0
    %455 = vmatmul.mubr.bf16.gmra.mrb[0].mxu0 %v290
    %v456 = vpop.f32.mrb[0].mxu0
    %v457 = vadd.f32 %v408, %v456
    %v458 = vpop.f32.mrb[0].mxu0
    %v459 = vpop.f32.mrb[0].mxu0
    %v460 = vadd.f32 %v408, %v459
    %v461 = vpop.f32.mrb[0].mxu0
    %462 = vdwg.mxu0
    %v463 = vpack.c.bf16 %v334, %v333
    %v465 = vunpack.c.l.b16 %v463
    %v466 = vunpack.c.h.b16 %v463
    %v467 = vpack.c.b16 %v465, %v465
    %v468 = vpack.c.b16 %v466, %v466
    %v469 = vpack.c.bf16 %v396, %v393
    %v471 = vunpack.c.l.b16 %v469
    %v472 = vunpack.c.h.b16 %v469
    %v473 = vpack.c.b16 %v471, %v471
    %v474 = vpack.c.b16 %v472, %v472
    %v475 = vpack.c.bf16 %v460, %v457
    %v477 = vunpack.c.l.b16 %v475
    %v478 = vunpack.c.h.b16 %v475
    %v479 = vpack.c.b16 %v477, %v477
    %v480 = vpack.c.b16 %v478, %v478
    %vm481 = vcmask 64512
    %v483 = vsel %vm481, %v467, 0
    %v486 = vsel %vm481, %v473, 0
    %488 = vmatprep.subr.bf16.mxu0 0
    %489 = vmatpush1.bf16.xpose.msra.mxu0 %v486
    %490 = vmatprep.subr.bf16.mxu0 0
    %491 = vmatpush1.bf16.xpose.msra.mxu0 0
    %492 = vmatprep.subr.bf16.mxu0 0
    %493 = vmatpush1.bf16.xpose.msra.mxu0 0
    %494 = vmatprep.subr.bf16.mxu0 0
    %495 = vmatpush1.bf16.xpose.msra.mxu0 0
    %496 = vmatprep.subr.bf16.mxu0 0
    %497 = vmatpush1.bf16.xpose.msra.mxu0 0
    %498 = vmatprep.subr.bf16.mxu0 0
    %499 = vmatpush1.bf16.xpose.msra.mxu0 0
    %500 = vmatprep.subr.bf16.mxu0 0
    %501 = vmatpush1.bf16.xpose.msra.mxu0 0
    %502 = vmatprep.subr.bf16.mxu0 0
    %503 = vmatpush1.bf16.xpose.msra.mxu0 0
    %504 = vmatprep.subr.bf16.mxu0 0
    %505 = vmatpush1.bf16.xpose.msra.mxu0 0
    %506 = vmatprep.subr.bf16.mxu0 0
    %507 = vmatpush1.bf16.xpose.msra.mxu0 0
    %508 = vmatprep.subr.bf16.mxu0 0
    %509 = vmatpush1.bf16.xpose.msra.mxu0 0
    %510 = vmatprep.subr.bf16.mxu0 0
    %511 = vmatpush1.bf16.xpose.msra.mxu0 0
    %512 = vmatprep.subr.bf16.mxu0 0
    %513 = vmatpush1.bf16.xpose.msra.mxu0 0
    %514 = vmatprep.subr.bf16.mxu0 0
    %515 = vmatpush1.bf16.xpose.msra.mxu0 0
    %516 = vmatprep.subr.bf16.mxu0 0
    %517 = vmatpush1.bf16.xpose.msra.mxu0 0
    %518 = vmatprep.subr.bf16.mxu0 0
    %519 = vmatpush1.bf16.xpose.msra.mxu0 0
    %520 = vmatprep.mubr.bf16.mxu0 0
    %521 = vmatmul.mubr.bf16.gmra.mrb[0].mxu0 %v483
    %v522 = vpop.f32.mrb[0].mxu0
    %v523 = vadd.f32 0.0, %v522
    %v524 = vpop.f32.mrb[0].mxu0
    %v525 = vpop.f32.mrb[0].mxu0
    %v526 = vpop.f32.mrb[0].mxu0
    %527 = vdwg.mxu0
    %v529 = vsel %vm481, %v468, 0
    %v532 = vsel %vm481, %v474, 0
    %534 = vmatprep.subr.bf16.mxu0 0
    %535 = vmatpush1.bf16.xpose.msra.mxu0 %v532
    %536 = vmatprep.subr.bf16.mxu0 0
    %537 = vmatpush1.bf16.xpose.msra.mxu0 0
    %538 = vmatprep.subr.bf16.mxu0 0
    %539 = vmatpush1.bf16.xpose.msra.mxu0 0
    %540 = vmatprep.subr.bf16.mxu0 0
    %541 = vmatpush1.bf16.xpose.msra.mxu0 0
    %542 = vmatprep.subr.bf16.mxu0 0
    %543 = vmatpush1.bf16.xpose.msra.mxu0 0
    %544 = vmatprep.subr.bf16.mxu0 0
    %545 = vmatpush1.bf16.xpose.msra.mxu0 0
    %546 = vmatprep.subr.bf16.mxu0 0
    %547 = vmatpush1.bf16.xpose.msra.mxu0 0
    %548 = vmatprep.subr.bf16.mxu0 0
    %549 = vmatpush1.bf16.xpose.msra.mxu0 0
    %550 = vmatprep.subr.bf16.mxu0 0
    %551 = vmatpush1.bf16.xpose.msra.mxu0 0
    %552 = vmatprep.subr.bf16.mxu0 0
    %553 = vmatpush1.bf16.xpose.msra.mxu0 0
    %554 = vmatprep.subr.bf16.mxu0 0
    %555 = vmatpush1.bf16.xpose.msra.mxu0 0
    %556 = vmatprep.subr.bf16.mxu0 0
    %557 = vmatpush1.bf16.xpose.msra.mxu0 0
    %558 = vmatprep.subr.bf16.mxu0 0
    %559 = vmatpush1.bf16.xpose.msra.mxu0 0
    %560 = vmatprep.subr.bf16.mxu0 0
    %561 = vmatpush1.bf16.xpose.msra.mxu0 0
    %562 = vmatprep.subr.bf16.mxu0 0
    %563 = vmatpush1.bf16.xpose.msra.mxu0 0
    %564 = vmatprep.subr.bf16.mxu0 0
    %565 = vmatpush1.bf16.xpose.msra.mxu0 0
    %566 = vmatprep.mubr.bf16.mxu0 0
    %567 = vmatmul.mubr.bf16.gmra.mrb[0].mxu0 %v529
    %v568 = vpop.f32.mrb[0].mxu0
    %v569 = vadd.f32 0.0, %v568
    %v570 = vpop.f32.mrb[0].mxu0
    %v571 = vpop.f32.mrb[0].mxu0
    %v572 = vpop.f32.mrb[0].mxu0
    %573 = vdwg.mxu0
    %v574 = vsel %vm481, %v523, -inf
    %575 = vmax.xlane.f32.xlu0 %v574
    %v576 = vpop.xlane.xlu0 %575
    %v577 = vsel %vm481, %v569, -inf
    %578 = vmax.xlane.f32.xlu0 %v577
    %v579 = vpop.xlane.xlu0 %578
    %v580 = vsub.f32 %v523, %v576
    %v581 = vsub.f32 %v569, %v579
    %v582 = vmul.f32 %v580, 1.442695
    %v583 = vpow.pop %v582
    %v584 = vmul.f32 %v581, 1.442695
    %v585 = vpow.pop %v584
    %v586 = vsel %vm481, %v583, 0.0
    %587 = vadd.xlane.f32.xlu0 %v586
    %v588 = vpop.xlane.xlu0 %587
    %v589 = vsel %vm481, %v585, 0.0
    %590 = vadd.xlane.f32.xlu0 %v589
    %v591 = vpop.xlane.xlu0 %590
    %v592 = vrcp.pop %v588
    %v593 = vrcp.pop %v591
    %v594 = vmul.f32 %v583, %v592
    %v595 = vmul.f32 %v585, %v593
    %v596 = vpack.c.bf16 %v594, %v594
    %v597 = vpack.c.bf16 %v595, %v595
    %v599 = vsel %vm481, %v596, 0
    %vm601 = vcmask 1043456
    %v603 = vsel %vm601, %v479, 0
    %605 = vmatprep.subr.bf16.mxu0 0
    %606 = vmatpush1.bf16.msra.mxu0 %v603
    %607 = vmatprep.subr.bf16.mxu0 0
    %608 = vmatpush1.bf16.msra.mxu0 0
    %609 = vmatprep.subr.bf16.mxu0 0
    %610 = vmatpush1.bf16.msra.mxu0 0
    %611 = vmatprep.subr.bf16.mxu0 0
    %612 = vmatpush1.bf16.msra.mxu0 0
    %613 = vmatprep.subr.bf16.mxu0 0
    %614 = vmatpush1.bf16.msra.mxu0 0
    %615 = vmatprep.subr.bf16.mxu0 0
    %616 = vmatpush1.bf16.msra.mxu0 0
    %617 = vmatprep.subr.bf16.mxu0 0
    %618 = vmatpush1.bf16.msra.mxu0 0
    %619 = vmatprep.subr.bf16.mxu0 0
    %620 = vmatpush1.bf16.msra.mxu0 0
    %621 = vmatprep.subr.bf16.mxu0 0
    %622 = vmatpush1.bf16.msra.mxu0 0
    %623 = vmatprep.subr.bf16.mxu0 0
    %624 = vmatpush1.bf16.msra.mxu0 0
    %625 = vmatprep.subr.bf16.mxu0 0
    %626 = vmatpush1.bf16.msra.mxu0 0
    %627 = vmatprep.subr.bf16.mxu0 0
    %628 = vmatpush1.bf16.msra.mxu0 0
    %629 = vmatprep.subr.bf16.mxu0 0
    %630 = vmatpush1.bf16.msra.mxu0 0
    %631 = vmatprep.subr.bf16.mxu0 0
    %632 = vmatpush1.bf16.msra.mxu0 0
    %633 = vmatprep.subr.bf16.mxu0 0
    %634 = vmatpush1.bf16.msra.mxu0 0
    %635 = vmatprep.subr.bf16.mxu0 0
    %636 = vmatpush1.bf16.msra.mxu0 0
    %637 = vmatprep.mubr.bf16.mxu0 0
    %638 = vmatmul.mubr.bf16.gmra.mrb[0].mxu0 %v599
    %v639 = vpop.f32.mrb[0].mxu0
    %v640 = vadd.f32 0.0, %v639
    %v641 = vpop.f32.mrb[0].mxu0
    %v642 = vpop.f32.mrb[0].mxu0
    %v643 = vpop.f32.mrb[0].mxu0
    %644 = vdwg.mxu0
    %v646 = vsel %vm481, %v597, 0
    %v649 = vsel %vm601, %v480, 0
    %651 = vmatprep.subr.bf16.mxu0 0
    %652 = vmatpush1.bf16.msra.mxu0 %v649
    %653 = vmatprep.subr.bf16.mxu0 0
    %654 = vmatpush1.bf16.msra.mxu0 0
    %655 = vmatprep.subr.bf16.mxu0 0
    %656 = vmatpush1.bf16.msra.mxu0 0
    %657 = vmatprep.subr.bf16.mxu0 0
    %658 = vmatpush1.bf16.msra.mxu0 0
    %659 = vmatprep.subr.bf16.mxu0 0
    %660 = vmatpush1.bf16.msra.mxu0 0
    %661 = vmatprep.subr.bf16.mxu0 0
    %662 = vmatpush1.bf16.msra.mxu0 0
    %663 = vmatprep.subr.bf16.mxu0 0
    %664 = vmatpush1.bf16.msra.mxu0 0
    %665 = vmatprep.subr.bf16.mxu0 0
    %666 = vmatpush1.bf16.msra.mxu0 0
    %667 = vmatprep.subr.bf16.mxu0 0
    %668 = vmatpush1.bf16.msra.mxu0 0
    %669 = vmatprep.subr.bf16.mxu0 0
    %670 = vmatpush1.bf16.msra.mxu0 0
    %671 = vmatprep.subr.bf16.mxu0 0
    %672 = vmatpush1.bf16.msra.mxu0 0
    %673 = vmatprep.subr.bf16.mxu0 0
    %674 = vmatpush1.bf16.msra.mxu0 0
    %675 = vmatprep.subr.bf16.mxu0 0
    %676 = vmatpush1.bf16.msra.mxu0 0
    %677 = vmatprep.subr.bf16.mxu0 0
    %678 = vmatpush1.bf16.msra.mxu0 0
    %679 = vmatprep.subr.bf16.mxu0 0
    %680 = vmatpush1.bf16.msra.mxu0 0
    %681 = vmatprep.subr.bf16.mxu0 0
    %682 = vmatpush1.bf16.msra.mxu0 0
    %683 = vmatprep.mubr.bf16.mxu0 0
    %684 = vmatmul.mubr.bf16.gmra.mrb[0].mxu0 %v646
    %v685 = vpop.f32.mrb[0].mxu0
    %v686 = vadd.f32 0.0, %v685
    %v687 = vpop.f32.mrb[0].mxu0
    %v688 = vpop.f32.mrb[0].mxu0
    %v689 = vpop.f32.mrb[0].mxu0
    %690 = vdwg.mxu0
    %v691 = vpack.c.bf16 %v686, %v640
    %v692 = vld [vmem:[%s23] sm:$0xf]
    %s693 = scalar_lea.vmem %s11, 16
    %v694 = vld [vmem:[%s693] sm:$0xf]
    %v695 = vld [vmem:[%s693 + $0x4] sm:$0xf]
    %v696 = vld [vmem:[%s693 + $0x8] sm:$0xf]
    %v697 = vld [vmem:[%s693 + $0xc] sm:$0xf]
    %s698 = scalar_lea.vmem %s13, 1
    %v699 = vld [vmem:[%s698] sm:$0x1]
    %v701 = vlaneseq
    %v702 = vshrl.u32 %v701, 7
    %v703 = vsub.s32 0, %v702
    %v704 = vrot.slane %v699, %v703
    %v710 = vunpack.c.l.b16 %v694
    %v711 = vunpack.c.l.b16 %v695
    %v712 = vunpack.c.l.b16 %v696
    %v713 = vunpack.c.l.b16 %v697
    %v714 = vpack.c.b16 %v711, %v710
    %v715 = vpack.c.b16 %v713, %v712
    %718 = vmatprep.subr.bf16.mxu0 0
    %719 = vmatpush1.bf16.msra.mxu0 %v714
    %720 = vmatprep.subr.bf16.mxu0 0
    %721 = vmatpush1.bf16.msra.mxu0 %v715
    %722 = vmatprep.subr.bf16.mxu0 0
    %723 = vmatpush1.bf16.msra.mxu0 0
    %724 = vmatprep.subr.bf16.mxu0 0
    %725 = vmatpush1.bf16.msra.mxu0 0
    %726 = vmatprep.subr.bf16.mxu0 0
    %727 = vmatpush1.bf16.msra.mxu0 0
    %728 = vmatprep.subr.bf16.mxu0 0
    %729 = vmatpush1.bf16.msra.mxu0 0
    %730 = vmatprep.subr.bf16.mxu0 0
    %731 = vmatpush1.bf16.msra.mxu0 0
    %732 = vmatprep.subr.bf16.mxu0 0
    %733 = vmatpush1.bf16.msra.mxu0 0
    %734 = vmatprep.subr.bf16.mxu0 0
    %735 = vmatpush1.bf16.msra.mxu0 0
    %736 = vmatprep.subr.bf16.mxu0 0
    %737 = vmatpush1.bf16.msra.mxu0 0
    %738 = vmatprep.subr.bf16.mxu0 0
    %739 = vmatpush1.bf16.msra.mxu0 0
    %740 = vmatprep.subr.bf16.mxu0 0
    %741 = vmatpush1.bf16.msra.mxu0 0
    %742 = vmatprep.subr.bf16.mxu0 0
    %743 = vmatpush1.bf16.msra.mxu0 0
    %744 = vmatprep.subr.bf16.mxu0 0
    %745 = vmatpush1.bf16.msra.mxu0 0
    %746 = vmatprep.subr.bf16.mxu0 0
    %747 = vmatpush1.bf16.msra.mxu0 0
    %748 = vmatprep.subr.bf16.mxu0 0
    %749 = vmatpush1.bf16.msra.mxu0 0
    %750 = vmatprep.mubr.bf16.mxu0 0
    %751 = vmatmul.mubr.bf16.gmra.mrb[0].mxu0 %v290
    %v752 = vpop.f32.mrb[0].mxu0
    %v753 = vadd.f32 %v704, %v752
    %v754 = vpop.f32.mrb[0].mxu0
    %v755 = vpop.f32.mrb[0].mxu0
    %v756 = vadd.f32 %v704, %v755
    %v757 = vpop.f32.mrb[0].mxu0
    %758 = vdwg.mxu0
    %v759 = vmul.f32 %v753, 0.35355338
    %v760 = vmul.f32 %v756, 0.35355338
    %s761 = scalar_lea.vmem %s15, 16
    %v762 = vld [vmem:[%s761] sm:$0xf]
    %v763 = vld [vmem:[%s761 + $0x4] sm:$0xf]
    %v764 = vld [vmem:[%s761 + $0x8] sm:$0xf]
    %v765 = vld [vmem:[%s761 + $0xc] sm:$0xf]
    %s766 = scalar_lea.vmem %s17, 1
    %v767 = vld [vmem:[%s766] sm:$0x1]
    %v769 = vlaneseq
    %v770 = vshrl.u32 %v769, 7
    %v771 = vsub.s32 0, %v770
    %v772 = vrot.slane %v767, %v771
    %v778 = vunpack.c.l.b16 %v762
    %v779 = vunpack.c.l.b16 %v763
    %v780 = vunpack.c.l.b16 %v764
    %v781 = vunpack.c.l.b16 %v765
    %v782 = vpack.c.b16 %v779, %v778
    %v783 = vpack.c.b16 %v781, %v780
    %786 = vmatprep.subr.bf16.mxu0 0
    %787 = vmatpush1.bf16.msra.mxu0 %v782
    %788 = vmatprep.subr.bf16.mxu0 0
    %789 = vmatpush1.bf16.msra.mxu0 %v783
    %790 = vmatprep.subr.bf16.mxu0 0
    %791 = vmatpush1.bf16.msra.mxu0 0
    %792 = vmatprep.subr.bf16.mxu0 0
    %793 = vmatpush1.bf16.msra.mxu0 0
    %794 = vmatprep.subr.bf16.mxu0 0
    %795 = vmatpush1.bf16.msra.mxu0 0
    %796 = vmatprep.subr.bf16.mxu0 0
    %797 = vmatpush1.bf16.msra.mxu0 0
    %798 = vmatprep.subr.bf16.mxu0 0
    %799 = vmatpush1.bf16.msra.mxu0 0
    %800 = vmatprep.subr.bf16.mxu0 0
    %801 = vmatpush1.bf16.msra.mxu0 0
    %802 = vmatprep.subr.bf16.mxu0 0
    %803 = vmatpush1.bf16.msra.mxu0 0
    %804 = vmatprep.subr.bf16.mxu0 0
    %805 = vmatpush1.bf16.msra.mxu0 0
    %806 = vmatprep.subr.bf16.mxu0 0
    %807 = vmatpush1.bf16.msra.mxu0 0
    %808 = vmatprep.subr.bf16.mxu0 0
    %809 = vmatpush1.bf16.msra.mxu0 0
    %810 = vmatprep.subr.bf16.mxu0 0
    %811 = vmatpush1.bf16.msra.mxu0 0
    %812 = vmatprep.subr.bf16.mxu0 0
    %813 = vmatpush1.bf16.msra.mxu0 0
    %814 = vmatprep.subr.bf16.mxu0 0
    %815 = vmatpush1.bf16.msra.mxu0 0
    %816 = vmatprep.subr.bf16.mxu0 0
    %817 = vmatpush1.bf16.msra.mxu0 0
    %818 = vmatprep.mubr.bf16.mxu0 0
    %819 = vmatmul.mubr.bf16.gmra.mrb[0].mxu0 %v290
    %v820 = vpop.f32.mrb[0].mxu0
    %v821 = vadd.f32 %v772, %v820
    %v822 = vpop.f32.mrb[0].mxu0
    %v823 = vpop.f32.mrb[0].mxu0
    %v824 = vadd.f32 %v772, %v823
    %v825 = vpop.f32.mrb[0].mxu0
    %826 = vdwg.mxu0
    %s827 = scalar_lea.vmem %s19, 16
    %v828 = vld [vmem:[%s827] sm:$0xf]
    %v829 = vld [vmem:[%s827 + $0x4] sm:$0xf]
    %v830 = vld [vmem:[%s827 + $0x8] sm:$0xf]
    %v831 = vld [vmem:[%s827 + $0xc] sm:$0xf]
    %s832 = scalar_lea.vmem %s21, 1
    %v833 = vld [vmem:[%s832] sm:$0x1]
    %v835 = vlaneseq
    %v836 = vshrl.u32 %v835, 7
    %v837 = vsub.s32 0, %v836
    %v838 = vrot.slane %v833, %v837
    %v844 = vunpack.c.l.b16 %v828
    %v845 = vunpack.c.l.b16 %v829
    %v846 = vunpack.c.l.b16 %v830
    %v847 = vunpack.c.l.b16 %v831
    %v848 = vpack.c.b16 %v845, %v844
    %v849 = vpack.c.b16 %v847, %v846
    %852 = vmatprep.subr.bf16.mxu0 0
    %853 = vmatpush1.bf16.msra.mxu0 %v848
    %854 = vmatprep.subr.bf16.mxu0 0
    %855 = vmatpush1.bf16.msra.mxu0 %v849
    %856 = vmatprep.subr.bf16.mxu0 0
    %857 = vmatpush1.bf16.msra.mxu0 0
    %858 = vmatprep.subr.bf16.mxu0 0
    %859 = vmatpush1.bf16.msra.mxu0 0
    %860 = vmatprep.subr.bf16.mxu0 0
    %861 = vmatpush1.bf16.msra.mxu0 0
    %862 = vmatprep.subr.bf16.mxu0 0
    %863 = vmatpush1.bf16.msra.mxu0 0
    %864 = vmatprep.subr.bf16.mxu0 0
    %865 = vmatpush1.bf16.msra.mxu0 0
    %866 = vmatprep.subr.bf16.mxu0 0
    %867 = vmatpush1.bf16.msra.mxu0 0
    %868 = vmatprep.subr.bf16.mxu0 0
    %869 = vmatpush1.bf16.msra.mxu0 0
    %870 = vmatprep.subr.bf16.mxu0 0
    %871 = vmatpush1.bf16.msra.mxu0 0
    %872 = vmatprep.subr.bf16.mxu0 0
    %873 = vmatpush1.bf16.msra.mxu0 0
    %874 = vmatprep.subr.bf16.mxu0 0
    %875 = vmatpush1.bf16.msra.mxu0 0
    %876 = vmatprep.subr.bf16.mxu0 0
    %877 = vmatpush1.bf16.msra.mxu0 0
    %878 = vmatprep.subr.bf16.mxu0 0
    %879 = vmatpush1.bf16.msra.mxu0 0
    %880 = vmatprep.subr.bf16.mxu0 0
    %881 = vmatpush1.bf16.msra.mxu0 0
    %882 = vmatprep.subr.bf16.mxu0 0
    %883 = vmatpush1.bf16.msra.mxu0 0
    %884 = vmatprep.mubr.bf16.mxu0 0
    %885 = vmatmul.mubr.bf16.gmra.mrb[0].mxu0 %v290
    %v886 = vpop.f32.mrb[0].mxu0
    %v887 = vadd.f32 %v838, %v886
    %v888 = vpop.f32.mrb[0].mxu0
    %v889 = vpop.f32.mrb[0].mxu0
    %v890 = vadd.f32 %v838, %v889
    %v891 = vpop.f32.mrb[0].mxu0
    %892 = vdwg.mxu0
    %v893 = vpack.c.bf16 %v760, %v759
    %v895 = vunpack.c.l.b16 %v893
    %v896 = vunpack.c.h.b16 %v893
    %v897 = vpack.c.b16 %v895, %v895
    %v898 = vpack.c.b16 %v896, %v896
    %v899 = vpack.c.bf16 %v824, %v821
    %v901 = vunpack.c.l.b16 %v899
    %v902 = vunpack.c.h.b16 %v899
    %v903 = vpack.c.b16 %v901, %v901
    %v904 = vpack.c.b16 %v902, %v902
    %v905 = vpack.c.bf16 %v890, %v887
    %v907 = vunpack.c.l.b16 %v905
    %v908 = vunpack.c.h.b16 %v905
    %v909 = vpack.c.b16 %v907, %v907
    %v910 = vpack.c.b16 %v908, %v908
    %v912 = vsel %vm481, %v897, 0
    %v915 = vsel %vm481, %v903, 0
    %917 = vmatprep.subr.bf16.mxu0 0
    %918 = vmatpush1.bf16.xpose.msra.mxu0 %v915
    %919 = vmatprep.subr.bf16.mxu0 0
    %920 = vmatpush1.bf16.xpose.msra.mxu0 0
    %921 = vmatprep.subr.bf16.mxu0 0
    %922 = vmatpush1.bf16.xpose.msra.mxu0 0
    %923 = vmatprep.subr.bf16.mxu0 0
    %924 = vmatpush1.bf16.xpose.msra.mxu0 0
    %925 = vmatprep.subr.bf16.mxu0 0
    %926 = vmatpush1.bf16.xpose.msra.mxu0 0
    %927 = vmatprep.subr.bf16.mxu0 0
    %928 = vmatpush1.bf16.xpose.msra.mxu0 0
    %929 = vmatprep.subr.bf16.mxu0 0
    %930 = vmatpush1.bf16.xpose.msra.mxu0 0
    %931 = vmatprep.subr.bf16.mxu0 0
    %932 = vmatpush1.bf16.xpose.msra.mxu0 0
    %933 = vmatprep.subr.bf16.mxu0 0
    %934 = vmatpush1.bf16.xpose.msra.mxu0 0
    %935 = vmatprep.subr.bf16.mxu0 0
    %936 = vmatpush1.bf16.xpose.msra.mxu0 0
    %937 = vmatprep.subr.bf16.mxu0 0
    %938 = vmatpush1.bf16.xpose.msra.mxu0 0
    %939 = vmatprep.subr.bf16.mxu0 0
    %940 = vmatpush1.bf16.xpose.msra.mxu0 0
    %941 = vmatprep.subr.bf16.mxu0 0
    %942 = vmatpush1.bf16.xpose.msra.mxu0 0
    %943 = vmatprep.subr.bf16.mxu0 0
    %944 = vmatpush1.bf16.xpose.msra.mxu0 0
    %945 = vmatprep.subr.bf16.mxu0 0
    %946 = vmatpush1.bf16.xpose.msra.mxu0 0
    %947 = vmatprep.subr.bf16.mxu0 0
    %948 = vmatpush1.bf16.xpose.msra.mxu0 0
    %949 = vmatprep.mubr.bf16.mxu0 0
    %950 = vmatmul.mubr.bf16.gmra.mrb[0].mxu0 %v912
    %v951 = vpop.f32.mrb[0].mxu0
    %v952 = vadd.f32 0.0, %v951
    %v953 = vpop.f32.mrb[0].mxu0
    %v954 = vpop.f32.mrb[0].mxu0
    %v955 = vpop.f32.mrb[0].mxu0
    %956 = vdwg.mxu0
    %v958 = vsel %vm481, %v898, 0
    %v961 = vsel %vm481, %v904, 0
    %963 = vmatprep.subr.bf16.mxu0 0
    %964 = vmatpush1.bf16.xpose.msra.mxu0 %v961
    %965 = vmatprep.subr.bf16.mxu0 0
    %966 = vmatpush1.bf16.xpose.msra.mxu0 0
    %967 = vmatprep.subr.bf16.mxu0 0
    %968 = vmatpush1.bf16.xpose.msra.mxu0 0
    %969 = vmatprep.subr.bf16.mxu0 0
    %970 = vmatpush1.bf16.xpose.msra.mxu0 0
    %971 = vmatprep.subr.bf16.mxu0 0
    %972 = vmatpush1.bf16.xpose.msra.mxu0 0
    %973 = vmatprep.subr.bf16.mxu0 0
    %974 = vmatpush1.bf16.xpose.msra.mxu0 0
    %975 = vmatprep.subr.bf16.mxu0 0
    %976 = vmatpush1.bf16.xpose.msra.mxu0 0
    %977 = vmatprep.subr.bf16.mxu0 0
    %978 = vmatpush1.bf16.xpose.msra.mxu0 0
    %979 = vmatprep.subr.bf16.mxu0 0
    %980 = vmatpush1.bf16.xpose.msra.mxu0 0
    %981 = vmatprep.subr.bf16.mxu0 0
    %982 = vmatpush1.bf16.xpose.msra.mxu0 0
    %983 = vmatprep.subr.bf16.mxu0 0
    %984 = vmatpush1.bf16.xpose.msra.mxu0 0
    %985 = vmatprep.subr.bf16.mxu0 0
    %986 = vmatpush1.bf16.xpose.msra.mxu0 0
    %987 = vmatprep.subr.bf16.mxu0 0
    %988 = vmatpush1.bf16.xpose.msra.mxu0 0
    %989 = vmatprep.subr.bf16.mxu0 0
    %990 = vmatpush1.bf16.xpose.msra.mxu0 0
    %991 = vmatprep.subr.bf16.mxu0 0
    %992 = vmatpush1.bf16.xpose.msra.mxu0 0
    %993 = vmatprep.subr.bf16.mxu0 0
    %994 = vmatpush1.bf16.xpose.msra.mxu0 0
    %995 = vmatprep.mubr.bf16.mxu0 0
    %996 = vmatmul.mubr.bf16.gmra.mrb[0].mxu0 %v958
    %v997 = vpop.f32.mrb[0].mxu0
    %v998 = vadd.f32 0.0, %v997
    %v999 = vpop.f32.mrb[0].mxu0
    %v1000 = vpop.f32.mrb[0].mxu0
    %v1001 = vpop.f32.mrb[0].mxu0
    %1002 = vdwg.mxu0
    %v1003 = vsel %vm481, %v952, -inf
    %1004 = vmax.xlane.f32.xlu0 %v1003
    %v1005 = vpop.xlane.xlu0 %1004
    %v1006 = vsel %vm481, %v998, -inf
    %1007 = vmax.xlane.f32.xlu0 %v1006
    %v1008 = vpop.xlane.xlu0 %1007
    %v1009 = vsub.f32 %v952, %v1005
    %v1010 = vsub.f32 %v998, %v1008
    %v1011 = vmul.f32 %v1009, 1.442695
    %v1012 = vpow.pop %v1011
    %v1013 = vmul.f32 %v1010, 1.442695
    %v1014 = vpow.pop %v1013
    %v1015 = vsel %vm481, %v1012, 0.0
    %1016 = vadd.xlane.f32.xlu0 %v1015
    %v1017 = vpop.xlane.xlu0 %1016
    %v1018 = vsel %vm481, %v1014, 0.0
    %1019 = vadd.xlane.f32.xlu0 %v1018
    %v1020 = vpop.xlane.xlu0 %1019
    %v1021 = vrcp.pop %v1017
    %v1022 = vrcp.pop %v1020
    %v1023 = vmul.f32 %v1012, %v1021
    %v1024 = vmul.f32 %v1014, %v1022
    %v1025 = vpack.c.bf16 %v1023, %v1023
    %v1026 = vpack.c.bf16 %v1024, %v1024
    %v1028 = vsel %vm481, %v1025, 0
    %v1031 = vsel %vm601, %v909, 0
    %1033 = vmatprep.subr.bf16.mxu0 0
    %1034 = vmatpush1.bf16.msra.mxu0 %v1031
    %1035 = vmatprep.subr.bf16.mxu0 0
    %1036 = vmatpush1.bf16.msra.mxu0 0
    %1037 = vmatprep.subr.bf16.mxu0 0
    %1038 = vmatpush1.bf16.msra.mxu0 0
    %1039 = vmatprep.subr.bf16.mxu0 0
    %1040 = vmatpush1.bf16.msra.mxu0 0
    %1041 = vmatprep.subr.bf16.mxu0 0
    %1042 = vmatpush1.bf16.msra.mxu0 0
    %1043 = vmatprep.subr.bf16.mxu0 0
    %1044 = vmatpush1.bf16.msra.mxu0 0
    %1045 = vmatprep.subr.bf16.mxu0 0
    %1046 = vmatpush1.bf16.msra.mxu0 0
    %1047 = vmatprep.subr.bf16.mxu0 0
    %1048 = vmatpush1.bf16.msra.mxu0 0
    %1049 = vmatprep.subr.bf16.mxu0 0
    %1050 = vmatpush1.bf16.msra.mxu0 0
    %1051 = vmatprep.subr.bf16.mxu0 0
    %1052 = vmatpush1.bf16.msra.mxu0 0
    %1053 = vmatprep.subr.bf16.mxu0 0
    %1054 = vmatpush1.bf16.msra.mxu0 0
    %1055 = vmatprep.subr.bf16.mxu0 0
    %1056 = vmatpush1.bf16.msra.mxu0 0
    %1057 = vmatprep.subr.bf16.mxu0 0
    %1058 = vmatpush1.bf16.msra.mxu0 0
    %1059 = vmatprep.subr.bf16.mxu0 0
    %1060 = vmatpush1.bf16.msra.mxu0 0
    %1061 = vmatprep.subr.bf16.mxu0 0
    %1062 = vmatpush1.bf16.msra.mxu0 0
    %1063 = vmatprep.subr.bf16.mxu0 0
    %1064 = vmatpush1.bf16.msra.mxu0 0
    %1065 = vmatprep.mubr.bf16.mxu0 0
    %1066 = vmatmul.mubr.bf16.gmra.mrb[0].mxu0 %v1028
    %v1067 = vpop.f32.mrb[0].mxu0
    %v1068 = vadd.f32 0.0, %v1067
    %v1069 = vpop.f32.mrb[0].mxu0
    %v1070 = vpop.f32.mrb[0].mxu0
    %v1071 = vpop.f32.mrb[0].mxu0
    %1072 = vdwg.mxu0
    %v1074 = vsel %vm481, %v1026, 0
    %v1077 = vsel %vm601, %v910, 0
    %1079 = vmatprep.subr.bf16.mxu0 0
    %1080 = vmatpush1.bf16.msra.mxu0 %v1077
    %1081 = vmatprep.subr.bf16.mxu0 0
    %1082 = vmatpush1.bf16.msra.mxu0 0
    %1083 = vmatprep.subr.bf16.mxu0 0
    %1084 = vmatpush1.bf16.msra.mxu0 0
    %1085 = vmatprep.subr.bf16.mxu0 0
    %1086 = vmatpush1.bf16.msra.mxu0 0
    %1087 = vmatprep.subr.bf16.mxu0 0
    %1088 = vmatpush1.bf16.msra.mxu0 0
    %1089 = vmatprep.subr.bf16.mxu0 0
    %1090 = vmatpush1.bf16.msra.mxu0 0
    %1091 = vmatprep.subr.bf16.mxu0 0
    %1092 = vmatpush1.bf16.msra.mxu0 0
    %1093 = vmatprep.subr.bf16.mxu0 0
    %1094 = vmatpush1.bf16.msra.mxu0 0
    %1095 = vmatprep.subr.bf16.mxu0 0
    %1096 = vmatpush1.bf16.msra.mxu0 0
    %1097 = vmatprep.subr.bf16.mxu0 0
    %1098 = vmatpush1.bf16.msra.mxu0 0
    %1099 = vmatprep.subr.bf16.mxu0 0
    %1100 = vmatpush1.bf16.msra.mxu0 0
    %1101 = vmatprep.subr.bf16.mxu0 0
    %1102 = vmatpush1.bf16.msra.mxu0 0
    %1103 = vmatprep.subr.bf16.mxu0 0
    %1104 = vmatpush1.bf16.msra.mxu0 0
    %1105 = vmatprep.subr.bf16.mxu0 0
    %1106 = vmatpush1.bf16.msra.mxu0 0
    %1107 = vmatprep.subr.bf16.mxu0 0
    %1108 = vmatpush1.bf16.msra.mxu0 0
    %1109 = vmatprep.subr.bf16.mxu0 0
    %1110 = vmatpush1.bf16.msra.mxu0 0
    %1111 = vmatprep.mubr.bf16.mxu0 0
    %1112 = vmatmul.mubr.bf16.gmra.mrb[0].mxu0 %v1074
    %v1113 = vpop.f32.mrb[0].mxu0
    %v1114 = vadd.f32 0.0, %v1113
    %v1115 = vpop.f32.mrb[0].mxu0
    %v1116 = vpop.f32.mrb[0].mxu0
    %v1117 = vpop.f32.mrb[0].mxu0
    %1118 = vdwg.mxu0
    %v1119 = vpack.c.bf16 %v1114, %v1068
    %s1120 = scalar_lea.vmem %s23, 4
    %v1121 = vld [vmem:[%s1120] sm:$0xf]
    %v1123 = vsel %vm481, %v1119, 0
    %v1126 = vsel %vm601, %v1121, 0
    %1128 = vmatprep.subr.bf16.mxu0 0
    %1129 = vmatpush1.bf16.msra.mxu0 %v1126
    %1130 = vmatprep.subr.bf16.mxu0 0
    %1131 = vmatpush1.bf16.msra.mxu0 0
    %1132 = vmatprep.subr.bf16.mxu0 0
    %1133 = vmatpush1.bf16.msra.mxu0 0
    %1134 = vmatprep.subr.bf16.mxu0 0
    %1135 = vmatpush1.bf16.msra.mxu0 0
    %1136 = vmatprep.subr.bf16.mxu0 0
    %1137 = vmatpush1.bf16.msra.mxu0 0
    %1138 = vmatprep.subr.bf16.mxu0 0
    %1139 = vmatpush1.bf16.msra.mxu0 0
    %1140 = vmatprep.subr.bf16.mxu0 0
    %1141 = vmatpush1.bf16.msra.mxu0 0
    %1142 = vmatprep.subr.bf16.mxu0 0
    %1143 = vmatpush1.bf16.msra.mxu0 0
    %1144 = vmatprep.subr.bf16.mxu0 0
    %1145 = vmatpush1.bf16.msra.mxu0 0
    %1146 = vmatprep.subr.bf16.mxu0 0
    %1147 = vmatpush1.bf16.msra.mxu0 0
    %1148 = vmatprep.subr.bf16.mxu0 0
    %1149 = vmatpush1.bf16.msra.mxu0 0
    %1150 = vmatprep.subr.bf16.mxu0 0
    %1151 = vmatpush1.bf16.msra.mxu0 0
    %1152 = vmatprep.subr.bf16.mxu0 0
    %1153 = vmatpush1.bf16.msra.mxu0 0
    %1154 = vmatprep.subr.bf16.mxu0 0
    %1155 = vmatpush1.bf16.msra.mxu0 0
    %1156 = vmatprep.subr.bf16.mxu0 0
    %1157 = vmatpush1.bf16.msra.mxu0 0
    %1158 = vmatprep.subr.bf16.mxu0 0
    %1159 = vmatpush1.bf16.msra.mxu0 0
    %1160 = vmatprep.mubr.bf16.mxu0 0
    %1161 = vmatmul.mubr.bf16.gmra.mrb[0].mxu0 %v1123
    %v1162 = vpop.f32.mrb[0].mxu0
    %v1163 = vadd.f32 0.0, %v1162
    %v1164 = vpop.f32.mrb[0].mxu0
    %v1165 = vpop.f32.mrb[0].mxu0
    %v1166 = vadd.f32 0.0, %v1165
    %v1167 = vpop.f32.mrb[0].mxu0
    %1168 = vdwg.mxu0
    %v1170 = vsel %vm481, %v691, 0
    %v1173 = vsel %vm601, %v692, 0
    %1175 = vmatprep.subr.bf16.mxu0 0
    %1176 = vmatpush1.bf16.msra.mxu0 %v1173
    %1177 = vmatprep.subr.bf16.mxu0 0
    %1178 = vmatpush1.bf16.msra.mxu0 0
    %1179 = vmatprep.subr.bf16.mxu0 0
    %1180 = vmatpush1.bf16.msra.mxu0 0
    %1181 = vmatprep.subr.bf16.mxu0 0
    %1182 = vmatpush1.bf16.msra.mxu0 0
    %1183 = vmatprep.subr.bf16.mxu0 0
    %1184 = vmatpush1.bf16.msra.mxu0 0
    %1185 = vmatprep.subr.bf16.mxu0 0
    %1186 = vmatpush1.bf16.msra.mxu0 0
    %1187 = vmatprep.subr.bf16.mxu0 0
    %1188 = vmatpush1.bf16.msra.mxu0 0
    %1189 = vmatprep.subr.bf16.mxu0 0
    %1190 = vmatpush1.bf16.msra.mxu0 0
    %1191 = vmatprep.subr.bf16.mxu0 0
    %1192 = vmatpush1.bf16.msra.mxu0 0
    %1193 = vmatprep.subr.bf16.mxu0 0
    %1194 = vmatpush1.bf16.msra.mxu0 0
    %1195 = vmatprep.subr.bf16.mxu0 0
    %1196 = vmatpush1.bf16.msra.mxu0 0
    %1197 = vmatprep.subr.bf16.mxu0 0
    %1198 = vmatpush1.bf16.msra.mxu0 0
    %1199 = vmatprep.subr.bf16.mxu0 0
    %1200 = vmatpush1.bf16.msra.mxu0 0
    %1201 = vmatprep.subr.bf16.mxu0 0
    %1202 = vmatpush1.bf16.msra.mxu0 0
    %1203 = vmatprep.subr.bf16.mxu0 0
    %1204 = vmatpush1.bf16.msra.mxu0 0
    %1205 = vmatprep.subr.bf16.mxu0 0
    %1206 = vmatpush1.bf16.msra.mxu0 0
    %1207 = vmatprep.mubr.bf16.mxu0 0
    %1208 = vmatmul.mubr.bf16.gmra.mrb[0].mxu0 %v1170
    %v1209 = vpop.f32.mrb[0].mxu0
    %v1210 = vadd.f32 %v1163, %v1209
    %v1211 = vpop.f32.mrb[0].mxu0
    %v1212 = vpop.f32.mrb[0].mxu0
    %v1213 = vadd.f32 %v1166, %v1212
    %v1214 = vpop.f32.mrb[0].mxu0
    %1215 = vdwg.mxu0
    %s1216 = scalar_lea.vmem %s11, 32
    %v1217 = vld [vmem:[%s1216] sm:$0xf]
    %v1218 = vld [vmem:[%s1216 + $0x4] sm:$0xf]
    %v1219 = vld [vmem:[%s1216 + $0x8] sm:$0xf]
    %v1220 = vld [vmem:[%s1216 + $0xc] sm:$0xf]
    %s1221 = scalar_lea.vmem %s13, 2
    %v1222 = vld [vmem:[%s1221] sm:$0x1]
    %v1224 = vlaneseq
    %v1225 = vshrl.u32 %v1224, 7
    %v1226 = vsub.s32 0, %v1225
    %v1227 = vrot.slane %v1222, %v1226
    %v1233 = vunpack.c.l.b16 %v1217
    %v1234 = vunpack.c.l.b16 %v1218
    %v1235 = vunpack.c.l.b16 %v1219
    %v1236 = vunpack.c.l.b16 %v1220
    %v1237 = vpack.c.b16 %v1234, %v1233
    %v1238 = vpack.c.b16 %v1236, %v1235
    %1241 = vmatprep.subr.bf16.mxu0 0
    %1242 = vmatpush1.bf16.msra.mxu0 %v1237
    %1243 = vmatprep.subr.bf16.mxu0 0
    %1244 = vmatpush1.bf16.msra.mxu0 %v1238
    %1245 = vmatprep.subr.bf16.mxu0 0
    %1246 = vmatpush1.bf16.msra.mxu0 0
    %1247 = vmatprep.subr.bf16.mxu0 0
    %1248 = vmatpush1.bf16.msra.mxu0 0
    %1249 = vmatprep.subr.bf16.mxu0 0
    %1250 = vmatpush1.bf16.msra.mxu0 0
    %1251 = vmatprep.subr.bf16.mxu0 0
    %1252 = vmatpush1.bf16.msra.mxu0 0
    %1253 = vmatprep.subr.bf16.mxu0 0
    %1254 = vmatpush1.bf16.msra.mxu0 0
    %1255 = vmatprep.subr.bf16.mxu0 0
    %1256 = vmatpush1.bf16.msra.mxu0 0
    %1257 = vmatprep.subr.bf16.mxu0 0
    %1258 = vmatpush1.bf16.msra.mxu0 0
    %1259 = vmatprep.subr.bf16.mxu0 0
    %1260 = vmatpush1.bf16.msra.mxu0 0
    %1261 = vmatprep.subr.bf16.mxu0 0
    %1262 = vmatpush1.bf16.msra.mxu0 0
    %1263 = vmatprep.subr.bf16.mxu0 0
    %1264 = vmatpush1.bf16.msra.mxu0 0
    %1265 = vmatprep.subr.bf16.mxu0 0
    %1266 = vmatpush1.bf16.msra.mxu0 0
    %1267 = vmatprep.subr.bf16.mxu0 0
    %1268 = vmatpush1.bf16.msra.mxu0 0
    %1269 = vmatprep.subr.bf16.mxu0 0
    %1270 = vmatpush1.bf16.msra.mxu0 0
    %1271 = vmatprep.subr.bf16.mxu0 0
    %1272 = vmatpush1.bf16.msra.mxu0 0
    %1273 = vmatprep.mubr.bf16.mxu0 0
    %1274 = vmatmul.mubr.bf16.gmra.mrb[0].mxu0 %v290
    %v1275 = vpop.f32.mrb[0].mxu0
    %v1276 = vadd.f32 %v1227, %v1275
    %v1277 = vpop.f32.mrb[0].mxu0
    %v1278 = vpop.f32.mrb[0].mxu0
    %v1279 = vadd.f32 %v1227, %v1278
    %v1280 = vpop.f32.mrb[0].mxu0
    %1281 = vdwg.mxu0
    %v1282 = vmul.f32 %v1276, 0.35355338
    %v1283 = vmul.f32 %v1279, 0.35355338
    %s1284 = scalar_lea.vmem %s15, 32
    %v1285 = vld [vmem:[%s1284] sm:$0xf]
    %v1286 = vld [vmem:[%s1284 + $0x4] sm:$0xf]
    %v1287 = vld [vmem:[%s1284 + $0x8] sm:$0xf]
    %v1288 = vld [vmem:[%s1284 + $0xc] sm:$0xf]
    %s1289 = scalar_lea.vmem %s17, 2
    %v1290 = vld [vmem:[%s1289] sm:$0x1]
    %v1292 = vlaneseq
    %v1293 = vshrl.u32 %v1292, 7
    %v1294 = vsub.s32 0, %v1293
    %v1295 = vrot.slane %v1290, %v1294
    %v1301 = vunpack.c.l.b16 %v1285
    %v1302 = vunpack.c.l.b16 %v1286
    %v1303 = vunpack.c.l.b16 %v1287
    %v1304 = vunpack.c.l.b16 %v1288
    %v1305 = vpack.c.b16 %v1302, %v1301
    %v1306 = vpack.c.b16 %v1304, %v1303
    %1309 = vmatprep.subr.bf16.mxu0 0
    %1310 = vmatpush1.bf16.msra.mxu0 %v1305
    %1311 = vmatprep.subr.bf16.mxu0 0
    %1312 = vmatpush1.bf16.msra.mxu0 %v1306
    %1313 = vmatprep.subr.bf16.mxu0 0
    %1314 = vmatpush1.bf16.msra.mxu0 0
    %1315 = vmatprep.subr.bf16.mxu0 0
    %1316 = vmatpush1.bf16.msra.mxu0 0
    %1317 = vmatprep.subr.bf16.mxu0 0
    %1318 = vmatpush1.bf16.msra.mxu0 0
    %1319 = vmatprep.subr.bf16.mxu0 0
    %1320 = vmatpush1.bf16.msra.mxu0 0
    %1321 = vmatprep.subr.bf16.mxu0 0
    %1322 = vmatpush1.bf16.msra.mxu0 0
    %1323 = vmatprep.subr.bf16.mxu0 0
    %1324 = vmatpush1.bf16.msra.mxu0 0
    %1325 = vmatprep.subr.bf16.mxu0 0
    %1326 = vmatpush1.bf16.msra.mxu0 0
    %1327 = vmatprep.subr.bf16.mxu0 0
    %1328 = vmatpush1.bf16.msra.mxu0 0
    %1329 = vmatprep.subr.bf16.mxu0 0
    %1330 = vmatpush1.bf16.msra.mxu0 0
    %1331 = vmatprep.subr.bf16.mxu0 0
    %1332 = vmatpush1.bf16.msra.mxu0 0
    %1333 = vmatprep.subr.bf16.mxu0 0
    %1334 = vmatpush1.bf16.msra.mxu0 0
    %1335 = vmatprep.subr.bf16.mxu0 0
    %1336 = vmatpush1.bf16.msra.mxu0 0
    %1337 = vmatprep.subr.bf16.mxu0 0
    %1338 = vmatpush1.bf16.msra.mxu0 0
    %1339 = vmatprep.subr.bf16.mxu0 0
    %1340 = vmatpush1.bf16.msra.mxu0 0
    %1341 = vmatprep.mubr.bf16.mxu0 0
    %1342 = vmatmul.mubr.bf16.gmra.mrb[0].mxu0 %v290
    %v1343 = vpop.f32.mrb[0].mxu0
    %v1344 = vadd.f32 %v1295, %v1343
    %v1345 = vpop.f32.mrb[0].mxu0
    %v1346 = vpop.f32.mrb[0].mxu0
    %v1347 = vadd.f32 %v1295, %v1346
    %v1348 = vpop.f32.mrb[0].mxu0
    %1349 = vdwg.mxu0
    %s1350 = scalar_lea.vmem %s19, 32
    %v1351 = vld [vmem:[%s1350] sm:$0xf]
    %v1352 = vld [vmem:[%s1350 + $0x4] sm:$0xf]
    %v1353 = vld [vmem:[%s1350 + $0x8] sm:$0xf]
    %v1354 = vld [vmem:[%s1350 + $0xc] sm:$0xf]
    %s1355 = scalar_lea.vmem %s21, 2
    %v1356 = vld [vmem:[%s1355] sm:$0x1]
    %v1358 = vlaneseq
    %v1359 = vshrl.u32 %v1358, 7
    %v1360 = vsub.s32 0, %v1359
    %v1361 = vrot.slane %v1356, %v1360
    %v1367 = vunpack.c.l.b16 %v1351
    %v1368 = vunpack.c.l.b16 %v1352
    %v1369 = vunpack.c.l.b16 %v1353
    %v1370 = vunpack.c.l.b16 %v1354
    %v1371 = vpack.c.b16 %v1368, %v1367
    %v1372 = vpack.c.b16 %v1370, %v1369
    %1375 = vmatprep.subr.bf16.mxu0 0
    %1376 = vmatpush1.bf16.msra.mxu0 %v1371
    %1377 = vmatprep.subr.bf16.mxu0 0
    %1378 = vmatpush1.bf16.msra.mxu0 %v1372
    %1379 = vmatprep.subr.bf16.mxu0 0
    %1380 = vmatpush1.bf16.msra.mxu0 0
    %1381 = vmatprep.subr.bf16.mxu0 0
    %1382 = vmatpush1.bf16.msra.mxu0 0
    %1383 = vmatprep.subr.bf16.mxu0 0
    %1384 = vmatpush1.bf16.msra.mxu0 0
    %1385 = vmatprep.subr.bf16.mxu0 0
    %1386 = vmatpush1.bf16.msra.mxu0 0
    %1387 = vmatprep.subr.bf16.mxu0 0
    %1388 = vmatpush1.bf16.msra.mxu0 0
    %1389 = vmatprep.subr.bf16.mxu0 0
    %1390 = vmatpush1.bf16.msra.mxu0 0
    %1391 = vmatprep.subr.bf16.mxu0 0
    %1392 = vmatpush1.bf16.msra.mxu0 0
    %1393 = vmatprep.subr.bf16.mxu0 0
    %1394 = vmatpush1.bf16.msra.mxu0 0
    %1395 = vmatprep.subr.bf16.mxu0 0
    %1396 = vmatpush1.bf16.msra.mxu0 0
    %1397 = vmatprep.subr.bf16.mxu0 0
    %1398 = vmatpush1.bf16.msra.mxu0 0
    %1399 = vmatprep.subr.bf16.mxu0 0
    %1400 = vmatpush1.bf16.msra.mxu0 0
    %1401 = vmatprep.subr.bf16.mxu0 0
    %1402 = vmatpush1.bf16.msra.mxu0 0
    %1403 = vmatprep.subr.bf16.mxu0 0
    %1404 = vmatpush1.bf16.msra.mxu0 0
    %1405 = vmatprep.subr.bf16.mxu0 0
    %1406 = vmatpush1.bf16.msra.mxu0 0
    %1407 = vmatprep.mubr.bf16.mxu0 0
    %1408 = vmatmul.mubr.bf16.gmra.mrb[0].mxu0 %v290
    %v1409 = vpop.f32.mrb[0].mxu0
    %v1410 = vadd.f32 %v1361, %v1409
    %v1411 = vpop.f32.mrb[0].mxu0
    %v1412 = vpop.f32.mrb[0].mxu0
    %v1413 = vadd.f32 %v1361, %v1412
    %v1414 = vpop.f32.mrb[0].mxu0
    %1415 = vdwg.mxu0
    %v1416 = vpack.c.bf16 %v1283, %v1282
    %v1418 = vunpack.c.l.b16 %v1416
    %v1419 = vunpack.c.h.b16 %v1416
    %v1420 = vpack.c.b16 %v1418, %v1418
    %v1421 = vpack.c.b16 %v1419, %v1419
    %v1422 = vpack.c.bf16 %v1347, %v1344
    %v1424 = vunpack.c.l.b16 %v1422
    %v1425 = vunpack.c.h.b16 %v1422
    %v1426 = vpack.c.b16 %v1424, %v1424
    %v1427 = vpack.c.b16 %v1425, %v1425
    %v1428 = vpack.c.bf16 %v1413, %v1410
    %v1430 = vunpack.c.l.b16 %v1428
    %v1431 = vunpack.c.h.b16 %v1428
    %v1432 = vpack.c.b16 %v1430, %v1430
    %v1433 = vpack.c.b16 %v1431, %v1431
    %v1435 = vsel %vm481, %v1420, 0
    %v1438 = vsel %vm481, %v1426, 0
    %1440 = vmatprep.subr.bf16.mxu0 0
    %1441 = vmatpush1.bf16.xpose.msra.mxu0 %v1438
    %1442 = vmatprep.subr.bf16.mxu0 0
    %1443 = vmatpush1.bf16.xpose.msra.mxu0 0
    %1444 = vmatprep.subr.bf16.mxu0 0
    %1445 = vmatpush1.bf16.xpose.msra.mxu0 0
    %1446 = vmatprep.subr.bf16.mxu0 0
    %1447 = vmatpush1.bf16.xpose.msra.mxu0 0
    %1448 = vmatprep.subr.bf16.mxu0 0
    %1449 = vmatpush1.bf16.xpose.msra.mxu0 0
    %1450 = vmatprep.subr.bf16.mxu0 0
    %1451 = vmatpush1.bf16.xpose.msra.mxu0 0
    %1452 = vmatprep.subr.bf16.mxu0 0
    %1453 = vmatpush1.bf16.xpose.msra.mxu0 0
    %1454 = vmatprep.subr.bf16.mxu0 0
    %1455 = vmatpush1.bf16.xpose.msra.mxu0 0
    %1456 = vmatprep.subr.bf16.mxu0 0
    %1457 = vmatpush1.bf16.xpose.msra.mxu0 0
    %1458 = vmatprep.subr.bf16.mxu0 0
    %1459 = vmatpush1.bf16.xpose.msra.mxu0 0
    %1460 = vmatprep.subr.bf16.mxu0 0
    %1461 = vmatpush1.bf16.xpose.msra.mxu0 0
    %1462 = vmatprep.subr.bf16.mxu0 0
    %1463 = vmatpush1.bf16.xpose.msra.mxu0 0
    %1464 = vmatprep.subr.bf16.mxu0 0
    %1465 = vmatpush1.bf16.xpose.msra.mxu0 0
    %1466 = vmatprep.subr.bf16.mxu0 0
    %1467 = vmatpush1.bf16.xpose.msra.mxu0 0
    %1468 = vmatprep.subr.bf16.mxu0 0
    %1469 = vmatpush1.bf16.xpose.msra.mxu0 0
    %1470 = vmatprep.subr.bf16.mxu0 0
    %1471 = vmatpush1.bf16.xpose.msra.mxu0 0
    %1472 = vmatprep.mubr.bf16.mxu0 0
    %1473 = vmatmul.mubr.bf16.gmra.mrb[0].mxu0 %v1435
    %v1474 = vpop.f32.mrb[0].mxu0
    %v1475 = vadd.f32 0.0, %v1474
    %v1476 = vpop.f32.mrb[0].mxu0
    %v1477 = vpop.f32.mrb[0].mxu0
    %v1478 = vpop.f32.mrb[0].mxu0
    %1479 = vdwg.mxu0
    %v1481 = vsel %vm481, %v1421, 0
    %v1484 = vsel %vm481, %v1427, 0
    %1486 = vmatprep.subr.bf16.mxu0 0
    %1487 = vmatpush1.bf16.xpose.msra.mxu0 %v1484
    %1488 = vmatprep.subr.bf16.mxu0 0
    %1489 = vmatpush1.bf16.xpose.msra.mxu0 0
    %1490 = vmatprep.subr.bf16.mxu0 0
    %1491 = vmatpush1.bf16.xpose.msra.mxu0 0
    %1492 = vmatprep.subr.bf16.mxu0 0
    %1493 = vmatpush1.bf16.xpose.msra.mxu0 0
    %1494 = vmatprep.subr.bf16.mxu0 0
    %1495 = vmatpush1.bf16.xpose.msra.mxu0 0
    %1496 = vmatprep.subr.bf16.mxu0 0
    %1497 = vmatpush1.bf16.xpose.msra.mxu0 0
    %1498 = vmatprep.subr.bf16.mxu0 0
    %1499 = vmatpush1.bf16.xpose.msra.mxu0 0
    %1500 = vmatprep.subr.bf16.mxu0 0
    %1501 = vmatpush1.bf16.xpose.msra.mxu0 0
    %1502 = vmatprep.subr.bf16.mxu0 0
    %1503 = vmatpush1.bf16.xpose.msra.mxu0 0
    %1504 = vmatprep.subr.bf16.mxu0 0
    %1505 = vmatpush1.bf16.xpose.msra.mxu0 0
    %1506 = vmatprep.subr.bf16.mxu0 0
    %1507 = vmatpush1.bf16.xpose.msra.mxu0 0
    %1508 = vmatprep.subr.bf16.mxu0 0
    %1509 = vmatpush1.bf16.xpose.msra.mxu0 0
    %1510 = vmatprep.subr.bf16.mxu0 0
    %1511 = vmatpush1.bf16.xpose.msra.mxu0 0
    %1512 = vmatprep.subr.bf16.mxu0 0
    %1513 = vmatpush1.bf16.xpose.msra.mxu0 0
    %1514 = vmatprep.subr.bf16.mxu0 0
    %1515 = vmatpush1.bf16.xpose.msra.mxu0 0
    %1516 = vmatprep.subr.bf16.mxu0 0
    %1517 = vmatpush1.bf16.xpose.msra.mxu0 0
    %1518 = vmatprep.mubr.bf16.mxu0 0
    %1519 = vmatmul.mubr.bf16.gmra.mrb[0].mxu0 %v1481
    %v1520 = vpop.f32.mrb[0].mxu0
    %v1521 = vadd.f32 0.0, %v1520
    %v1522 = vpop.f32.mrb[0].mxu0
    %v1523 = vpop.f32.mrb[0].mxu0
    %v1524 = vpop.f32.mrb[0].mxu0
    %1525 = vdwg.mxu0
    %v1526 = vsel %vm481, %v1475, -inf
    %1527 = vmax.xlane.f32.xlu0 %v1526
    %v1528 = vpop.xlane.xlu0 %1527
    %v1529 = vsel %vm481, %v1521, -inf
    %1530 = vmax.xlane.f32.xlu0 %v1529
    %v1531 = vpop.xlane.xlu0 %1530
    %v1532 = vsub.f32 %v1475, %v1528
    %v1533 = vsub.f32 %v1521, %v1531
    %v1534 = vmul.f32 %v1532, 1.442695
    %v1535 = vpow.pop %v1534
    %v1536 = vmul.f32 %v1533, 1.442695
    %v1537 = vpow.pop %v1536
    %v1538 = vsel %vm481, %v1535, 0.0
    %1539 = vadd.xlane.f32.xlu0 %v1538
    %v1540 = vpop.xlane.xlu0 %1539
    %v1541 = vsel %vm481, %v1537, 0.0
    %1542 = vadd.xlane.f32.xlu0 %v1541
    %v1543 = vpop.xlane.xlu0 %1542
    %v1544 = vrcp.pop %v1540
    %v1545 = vrcp.pop %v1543
    %v1546 = vmul.f32 %v1535, %v1544
    %v1547 = vmul.f32 %v1537, %v1545
    %v1548 = vpack.c.bf16 %v1546, %v1546
    %v1549 = vpack.c.bf16 %v1547, %v1547
    %v1551 = vsel %vm481, %v1548, 0
    %v1554 = vsel %vm601, %v1432, 0
    %1556 = vmatprep.subr.bf16.mxu0 0
    %1557 = vmatpush1.bf16.msra.mxu0 %v1554
    %1558 = vmatprep.subr.bf16.mxu0 0
    %1559 = vmatpush1.bf16.msra.mxu0 0
    %1560 = vmatprep.subr.bf16.mxu0 0
    %1561 = vmatpush1.bf16.msra.mxu0 0
    %1562 = vmatprep.subr.bf16.mxu0 0
    %1563 = vmatpush1.bf16.msra.mxu0 0
    %1564 = vmatprep.subr.bf16.mxu0 0
    %1565 = vmatpush1.bf16.msra.mxu0 0
    %1566 = vmatprep.subr.bf16.mxu0 0
    %1567 = vmatpush1.bf16.msra.mxu0 0
    %1568 = vmatprep.subr.bf16.mxu0 0
    %1569 = vmatpush1.bf16.msra.mxu0 0
    %1570 = vmatprep.subr.bf16.mxu0 0
    %1571 = vmatpush1.bf16.msra.mxu0 0
    %1572 = vmatprep.subr.bf16.mxu0 0
    %1573 = vmatpush1.bf16.msra.mxu0 0
    %1574 = vmatprep.subr.bf16.mxu0 0
    %1575 = vmatpush1.bf16.msra.mxu0 0
    %1576 = vmatprep.subr.bf16.mxu0 0
    %1577 = vmatpush1.bf16.msra.mxu0 0
    %1578 = vmatprep.subr.bf16.mxu0 0
    %1579 = vmatpush1.bf16.msra.mxu0 0
    %1580 = vmatprep.subr.bf16.mxu0 0
    %1581 = vmatpush1.bf16.msra.mxu0 0
    %1582 = vmatprep.subr.bf16.mxu0 0
    %1583 = vmatpush1.bf16.msra.mxu0 0
    %1584 = vmatprep.subr.bf16.mxu0 0
    %1585 = vmatpush1.bf16.msra.mxu0 0
    %1586 = vmatprep.subr.bf16.mxu0 0
    %1587 = vmatpush1.bf16.msra.mxu0 0
    %1588 = vmatprep.mubr.bf16.mxu0 0
    %1589 = vmatmul.mubr.bf16.gmra.mrb[0].mxu0 %v1551
    %v1590 = vpop.f32.mrb[0].mxu0
    %v1591 = vadd.f32 0.0, %v1590
    %v1592 = vpop.f32.mrb[0].mxu0
    %v1593 = vpop.f32.mrb[0].mxu0
    %v1594 = vpop.f32.mrb[0].mxu0
    %1595 = vdwg.mxu0
    %v1597 = vsel %vm481, %v1549, 0
    %v1600 = vsel %vm601, %v1433, 0
    %1602 = vmatprep.subr.bf16.mxu0 0
    %1603 = vmatpush1.bf16.msra.mxu0 %v1600
    %1604 = vmatprep.subr.bf16.mxu0 0
    %1605 = vmatpush1.bf16.msra.mxu0 0
    %1606 = vmatprep.subr.bf16.mxu0 0
    %1607 = vmatpush1.bf16.msra.mxu0 0
    %1608 = vmatprep.subr.bf16.mxu0 0
    %1609 = vmatpush1.bf16.msra.mxu0 0
    %1610 = vmatprep.subr.bf16.mxu0 0
    %1611 = vmatpush1.bf16.msra.mxu0 0
    %1612 = vmatprep.subr.bf16.mxu0 0
    %1613 = vmatpush1.bf16.msra.mxu0 0
    %1614 = vmatprep.subr.bf16.mxu0 0
    %1615 = vmatpush1.bf16.msra.mxu0 0
    %1616 = vmatprep.subr.bf16.mxu0 0
    %1617 = vmatpush1.bf16.msra.mxu0 0
    %1618 = vmatprep.subr.bf16.mxu0 0
    %1619 = vmatpush1.bf16.msra.mxu0 0
    %1620 = vmatprep.subr.bf16.mxu0 0
    %1621 = vmatpush1.bf16.msra.mxu0 0
    %1622 = vmatprep.subr.bf16.mxu0 0
    %1623 = vmatpush1.bf16.msra.mxu0 0
    %1624 = vmatprep.subr.bf16.mxu0 0
    %1625 = vmatpush1.bf16.msra.mxu0 0
    %1626 = vmatprep.subr.bf16.mxu0 0
    %1627 = vmatpush1.bf16.msra.mxu0 0
    %1628 = vmatprep.subr.bf16.mxu0 0
    %1629 = vmatpush1.bf16.msra.mxu0 0
    %1630 = vmatprep.subr.bf16.mxu0 0
    %1631 = vmatpush1.bf16.msra.mxu0 0
    %1632 = vmatprep.subr.bf16.mxu0 0
    %1633 = vmatpush1.bf16.msra.mxu0 0
    %1634 = vmatprep.mubr.bf16.mxu0 0
    %1635 = vmatmul.mubr.bf16.gmra.mrb[0].mxu0 %v1597
    %v1636 = vpop.f32.mrb[0].mxu0
    %v1637 = vadd.f32 0.0, %v1636
    %v1638 = vpop.f32.mrb[0].mxu0
    %v1639 = vpop.f32.mrb[0].mxu0
    %v1640 = vpop.f32.mrb[0].mxu0
    %1641 = vdwg.mxu0
    %v1642 = vpack.c.bf16 %v1637, %v1591
    %s1643 = scalar_lea.vmem %s23, 8
    %v1644 = vld [vmem:[%s1643] sm:$0xf]
    %v1646 = vsel %vm481, %v1642, 0
    %v1649 = vsel %vm601, %v1644, 0
    %1651 = vmatprep.subr.bf16.mxu0 0
    %1652 = vmatpush1.bf16.msra.mxu0 %v1649
    %1653 = vmatprep.subr.bf16.mxu0 0
    %1654 = vmatpush1.bf16.msra.mxu0 0
    %1655 = vmatprep.subr.bf16.mxu0 0
    %1656 = vmatpush1.bf16.msra.mxu0 0
    %1657 = vmatprep.subr.bf16.mxu0 0
    %1658 = vmatpush1.bf16.msra.mxu0 0
    %1659 = vmatprep.subr.bf16.mxu0 0
    %1660 = vmatpush1.bf16.msra.mxu0 0
    %1661 = vmatprep.subr.bf16.mxu0 0
    %1662 = vmatpush1.bf16.msra.mxu0 0
    %1663 = vmatprep.subr.bf16.mxu0 0
    %1664 = vmatpush1.bf16.msra.mxu0 0
    %1665 = vmatprep.subr.bf16.mxu0 0
    %1666 = vmatpush1.bf16.msra.mxu0 0
    %1667 = vmatprep.subr.bf16.mxu0 0
    %1668 = vmatpush1.bf16.msra.mxu0 0
    %1669 = vmatprep.subr.bf16.mxu0 0
    %1670 = vmatpush1.bf16.msra.mxu0 0
    %1671 = vmatprep.subr.bf16.mxu0 0
    %1672 = vmatpush1.bf16.msra.mxu0 0
    %1673 = vmatprep.subr.bf16.mxu0 0
    %1674 = vmatpush1.bf16.msra.mxu0 0
    %1675 = vmatprep.subr.bf16.mxu0 0
    %1676 = vmatpush1.bf16.msra.mxu0 0
    %1677 = vmatprep.subr.bf16.mxu0 0
    %1678 = vmatpush1.bf16.msra.mxu0 0
    %1679 = vmatprep.subr.bf16.mxu0 0
    %1680 = vmatpush1.bf16.msra.mxu0 0
    %1681 = vmatprep.subr.bf16.mxu0 0
    %1682 = vmatpush1.bf16.msra.mxu0 0
    %1683 = vmatprep.mubr.bf16.mxu0 0
    %1684 = vmatmul.mubr.bf16.gmra.mrb[0].mxu0 %v1646
    %v1685 = vpop.f32.mrb[0].mxu0
    %v1686 = vadd.f32 0.0, %v1685
    %v1687 = vpop.f32.mrb[0].mxu0
    %v1688 = vpop.f32.mrb[0].mxu0
    %v1689 = vadd.f32 0.0, %v1688
    %v1690 = vpop.f32.mrb[0].mxu0
    %1691 = vdwg.mxu0
    %v1692 = vadd.f32 %v1210, %v1686
    %v1693 = vadd.f32 %v1213, %v1689
    %s1694 = scalar_lea.vmem %s11, 48
    %v1695 = vld [vmem:[%s1694] sm:$0xf]
    %v1696 = vld [vmem:[%s1694 + $0x4] sm:$0xf]
    %v1697 = vld [vmem:[%s1694 + $0x8] sm:$0xf]
    %v1698 = vld [vmem:[%s1694 + $0xc] sm:$0xf]
    %s1699 = scalar_lea.vmem %s13, 3
    %v1700 = vld [vmem:[%s1699] sm:$0x1]
    %v1702 = vlaneseq
    %v1703 = vshrl.u32 %v1702, 7
    %v1704 = vsub.s32 0, %v1703
    %v1705 = vrot.slane %v1700, %v1704
    %v1711 = vunpack.c.l.b16 %v1695
    %v1712 = vunpack.c.l.b16 %v1696
    %v1713 = vunpack.c.l.b16 %v1697
    %v1714 = vunpack.c.l.b16 %v1698
    %v1715 = vpack.c.b16 %v1712, %v1711
    %v1716 = vpack.c.b16 %v1714, %v1713
    %1719 = vmatprep.subr.bf16.mxu0 0
    %1720 = vmatpush1.bf16.msra.mxu0 %v1715
    %1721 = vmatprep.subr.bf16.mxu0 0
    %1722 = vmatpush1.bf16.msra.mxu0 %v1716
    %1723 = vmatprep.subr.bf16.mxu0 0
    %1724 = vmatpush1.bf16.msra.mxu0 0
    %1725 = vmatprep.subr.bf16.mxu0 0
    %1726 = vmatpush1.bf16.msra.mxu0 0
    %1727 = vmatprep.subr.bf16.mxu0 0
    %1728 = vmatpush1.bf16.msra.mxu0 0
    %1729 = vmatprep.subr.bf16.mxu0 0
    %1730 = vmatpush1.bf16.msra.mxu0 0
    %1731 = vmatprep.subr.bf16.mxu0 0
    %1732 = vmatpush1.bf16.msra.mxu0 0
    %1733 = vmatprep.subr.bf16.mxu0 0
    %1734 = vmatpush1.bf16.msra.mxu0 0
    %1735 = vmatprep.subr.bf16.mxu0 0
    %1736 = vmatpush1.bf16.msra.mxu0 0
    %1737 = vmatprep.subr.bf16.mxu0 0
    %1738 = vmatpush1.bf16.msra.mxu0 0
    %1739 = vmatprep.subr.bf16.mxu0 0
    %1740 = vmatpush1.bf16.msra.mxu0 0
    %1741 = vmatprep.subr.bf16.mxu0 0
    %1742 = vmatpush1.bf16.msra.mxu0 0
    %1743 = vmatprep.subr.bf16.mxu0 0
    %1744 = vmatpush1.bf16.msra.mxu0 0
    %1745 = vmatprep.subr.bf16.mxu0 0
    %1746 = vmatpush1.bf16.msra.mxu0 0
    %1747 = vmatprep.subr.bf16.mxu0 0
    %1748 = vmatpush1.bf16.msra.mxu0 0
    %1749 = vmatprep.subr.bf16.mxu0 0
    %1750 = vmatpush1.bf16.msra.mxu0 0
    %1751 = vmatprep.mubr.bf16.mxu0 0
    %1752 = vmatmul.mubr.bf16.gmra.mrb[0].mxu0 %v290
    %v1753 = vpop.f32.mrb[0].mxu0
    %v1754 = vadd.f32 %v1705, %v1753
    %v1755 = vpop.f32.mrb[0].mxu0
    %v1756 = vpop.f32.mrb[0].mxu0
    %v1757 = vadd.f32 %v1705, %v1756
    %v1758 = vpop.f32.mrb[0].mxu0
    %1759 = vdwg.mxu0
    %v1760 = vmul.f32 %v1754, 0.35355338
    %v1761 = vmul.f32 %v1757, 0.35355338
    %s1762 = scalar_lea.vmem %s15, 48
    %v1763 = vld [vmem:[%s1762] sm:$0xf]
    %v1764 = vld [vmem:[%s1762 + $0x4] sm:$0xf]
    %v1765 = vld [vmem:[%s1762 + $0x8] sm:$0xf]
    %v1766 = vld [vmem:[%s1762 + $0xc] sm:$0xf]
    %s1767 = scalar_lea.vmem %s17, 3
    %v1768 = vld [vmem:[%s1767] sm:$0x1]
    %v1770 = vlaneseq
    %v1771 = vshrl.u32 %v1770, 7
    %v1772 = vsub.s32 0, %v1771
    %v1773 = vrot.slane %v1768, %v1772
    %v1779 = vunpack.c.l.b16 %v1763
    %v1780 = vunpack.c.l.b16 %v1764
    %v1781 = vunpack.c.l.b16 %v1765
    %v1782 = vunpack.c.l.b16 %v1766
    %v1783 = vpack.c.b16 %v1780, %v1779
    %v1784 = vpack.c.b16 %v1782, %v1781
    %1787 = vmatprep.subr.bf16.mxu0 0
    %1788 = vmatpush1.bf16.msra.mxu0 %v1783
    %1789 = vmatprep.subr.bf16.mxu0 0
    %1790 = vmatpush1.bf16.msra.mxu0 %v1784
    %1791 = vmatprep.subr.bf16.mxu0 0
    %1792 = vmatpush1.bf16.msra.mxu0 0
    %1793 = vmatprep.subr.bf16.mxu0 0
    %1794 = vmatpush1.bf16.msra.mxu0 0
    %1795 = vmatprep.subr.bf16.mxu0 0
    %1796 = vmatpush1.bf16.msra.mxu0 0
    %1797 = vmatprep.subr.bf16.mxu0 0
    %1798 = vmatpush1.bf16.msra.mxu0 0
    %1799 = vmatprep.subr.bf16.mxu0 0
    %1800 = vmatpush1.bf16.msra.mxu0 0
    %1801 = vmatprep.subr.bf16.mxu0 0
    %1802 = vmatpush1.bf16.msra.mxu0 0
    %1803 = vmatprep.subr.bf16.mxu0 0
    %1804 = vmatpush1.bf16.msra.mxu0 0
    %1805 = vmatprep.subr.bf16.mxu0 0
    %1806 = vmatpush1.bf16.msra.mxu0 0
    %1807 = vmatprep.subr.bf16.mxu0 0
    %1808 = vmatpush1.bf16.msra.mxu0 0
    %1809 = vmatprep.subr.bf16.mxu0 0
    %1810 = vmatpush1.bf16.msra.mxu0 0
    %1811 = vmatprep.subr.bf16.mxu0 0
    %1812 = vmatpush1.bf16.msra.mxu0 0
    %1813 = vmatprep.subr.bf16.mxu0 0
    %1814 = vmatpush1.bf16.msra.mxu0 0
    %1815 = vmatprep.subr.bf16.mxu0 0
    %1816 = vmatpush1.bf16.msra.mxu0 0
    %1817 = vmatprep.subr.bf16.mxu0 0
    %1818 = vmatpush1.bf16.msra.mxu0 0
    %1819 = vmatprep.mubr.bf16.mxu0 0
    %1820 = vmatmul.mubr.bf16.gmra.mrb[0].mxu0 %v290
    %v1821 = vpop.f32.mrb[0].mxu0
    %v1822 = vadd.f32 %v1773, %v1821
    %v1823 = vpop.f32.mrb[0].mxu0
    %v1824 = vpop.f32.mrb[0].mxu0
    %v1825 = vadd.f32 %v1773, %v1824
    %v1826 = vpop.f32.mrb[0].mxu0
    %1827 = vdwg.mxu0
    %s1828 = scalar_lea.vmem %s19, 48
    %v1829 = vld [vmem:[%s1828] sm:$0xf]
    %v1830 = vld [vmem:[%s1828 + $0x4] sm:$0xf]
    %v1831 = vld [vmem:[%s1828 + $0x8] sm:$0xf]
    %v1832 = vld [vmem:[%s1828 + $0xc] sm:$0xf]
    %s1833 = scalar_lea.vmem %s21, 3
    %v1834 = vld [vmem:[%s1833] sm:$0x1]
    %v1836 = vlaneseq
    %v1837 = vshrl.u32 %v1836, 7
    %v1838 = vsub.s32 0, %v1837
    %v1839 = vrot.slane %v1834, %v1838
    %v1845 = vunpack.c.l.b16 %v1829
    %v1846 = vunpack.c.l.b16 %v1830
    %v1847 = vunpack.c.l.b16 %v1831
    %v1848 = vunpack.c.l.b16 %v1832
    %v1849 = vpack.c.b16 %v1846, %v1845
    %v1850 = vpack.c.b16 %v1848, %v1847
    %1853 = vmatprep.subr.bf16.mxu0 0
    %1854 = vmatpush1.bf16.msra.mxu0 %v1849
    %1855 = vmatprep.subr.bf16.mxu0 0
    %1856 = vmatpush1.bf16.msra.mxu0 %v1850
    %1857 = vmatprep.subr.bf16.mxu0 0
    %1858 = vmatpush1.bf16.msra.mxu0 0
    %1859 = vmatprep.subr.bf16.mxu0 0
    %1860 = vmatpush1.bf16.msra.mxu0 0
    %1861 = vmatprep.subr.bf16.mxu0 0
    %1862 = vmatpush1.bf16.msra.mxu0 0
    %1863 = vmatprep.subr.bf16.mxu0 0
    %1864 = vmatpush1.bf16.msra.mxu0 0
    %1865 = vmatprep.subr.bf16.mxu0 0
    %1866 = vmatpush1.bf16.msra.mxu0 0
    %1867 = vmatprep.subr.bf16.mxu0 0
    %1868 = vmatpush1.bf16.msra.mxu0 0
    %1869 = vmatprep.subr.bf16.mxu0 0
    %1870 = vmatpush1.bf16.msra.mxu0 0
    %1871 = vmatprep.subr.bf16.mxu0 0
    %1872 = vmatpush1.bf16.msra.mxu0 0
    %1873 = vmatprep.subr.bf16.mxu0 0
    %1874 = vmatpush1.bf16.msra.mxu0 0
    %1875 = vmatprep.subr.bf16.mxu0 0
    %1876 = vmatpush1.bf16.msra.mxu0 0
    %1877 = vmatprep.subr.bf16.mxu0 0
    %1878 = vmatpush1.bf16.msra.mxu0 0
    %1879 = vmatprep.subr.bf16.mxu0 0
    %1880 = vmatpush1.bf16.msra.mxu0 0
    %1881 = vmatprep.subr.bf16.mxu0 0
    %1882 = vmatpush1.bf16.msra.mxu0 0
    %1883 = vmatprep.subr.bf16.mxu0 0
    %1884 = vmatpush1.bf16.msra.mxu0 0
    %1885 = vmatprep.mubr.bf16.mxu0 0
    %1886 = vmatmul.mubr.bf16.gmra.mrb[0].mxu0 %v290
    %v1887 = vpop.f32.mrb[0].mxu0
    %v1888 = vadd.f32 %v1839, %v1887
    %v1889 = vpop.f32.mrb[0].mxu0
    %v1890 = vpop.f32.mrb[0].mxu0
    %v1891 = vadd.f32 %v1839, %v1890
    %v1892 = vpop.f32.mrb[0].mxu0
    %1893 = vdwg.mxu0
    %v1894 = vpack.c.bf16 %v1761, %v1760
    %v1896 = vunpack.c.l.b16 %v1894
    %v1897 = vunpack.c.h.b16 %v1894
    %v1898 = vpack.c.b16 %v1896, %v1896
    %v1899 = vpack.c.b16 %v1897, %v1897
    %v1900 = vpack.c.bf16 %v1825, %v1822
    %v1902 = vunpack.c.l.b16 %v1900
    %v1903 = vunpack.c.h.b16 %v1900
    %v1904 = vpack.c.b16 %v1902, %v1902
    %v1905 = vpack.c.b16 %v1903, %v1903
    %v1906 = vpack.c.bf16 %v1891, %v1888
    %v1908 = vunpack.c.l.b16 %v1906
    %v1909 = vunpack.c.h.b16 %v1906
    %v1910 = vpack.c.b16 %v1908, %v1908
    %v1911 = vpack.c.b16 %v1909, %v1909
    %v1913 = vsel %vm481, %v1898, 0
    %v1916 = vsel %vm481, %v1904, 0
    %1918 = vmatprep.subr.bf16.mxu0 0
    %1919 = vmatpush1.bf16.xpose.msra.mxu0 %v1916
    %1920 = vmatprep.subr.bf16.mxu0 0
    %1921 = vmatpush1.bf16.xpose.msra.mxu0 0
    %1922 = vmatprep.subr.bf16.mxu0 0
    %1923 = vmatpush1.bf16.xpose.msra.mxu0 0
    %1924 = vmatprep.subr.bf16.mxu0 0
    %1925 = vmatpush1.bf16.xpose.msra.mxu0 0
    %1926 = vmatprep.subr.bf16.mxu0 0
    %1927 = vmatpush1.bf16.xpose.msra.mxu0 0
    %1928 = vmatprep.subr.bf16.mxu0 0
    %1929 = vmatpush1.bf16.xpose.msra.mxu0 0
    %1930 = vmatprep.subr.bf16.mxu0 0
    %1931 = vmatpush1.bf16.xpose.msra.mxu0 0
    %1932 = vmatprep.subr.bf16.mxu0 0
    %1933 = vmatpush1.bf16.xpose.msra.mxu0 0
    %1934 = vmatprep.subr.bf16.mxu0 0
    %1935 = vmatpush1.bf16.xpose.msra.mxu0 0
    %1936 = vmatprep.subr.bf16.mxu0 0
    %1937 = vmatpush1.bf16.xpose.msra.mxu0 0
    %1938 = vmatprep.subr.bf16.mxu0 0
    %1939 = vmatpush1.bf16.xpose.msra.mxu0 0
    %1940 = vmatprep.subr.bf16.mxu0 0
    %1941 = vmatpush1.bf16.xpose.msra.mxu0 0
    %1942 = vmatprep.subr.bf16.mxu0 0
    %1943 = vmatpush1.bf16.xpose.msra.mxu0 0
    %1944 = vmatprep.subr.bf16.mxu0 0
    %1945 = vmatpush1.bf16.xpose.msra.mxu0 0
    %1946 = vmatprep.subr.bf16.mxu0 0
    %1947 = vmatpush1.bf16.xpose.msra.mxu0 0
    %1948 = vmatprep.subr.bf16.mxu0 0
    %1949 = vmatpush1.bf16.xpose.msra.mxu0 0
    %1950 = vmatprep.mubr.bf16.mxu0 0
    %1951 = vmatmul.mubr.bf16.gmra.mrb[0].mxu0 %v1913
    %v1952 = vpop.f32.mrb[0].mxu0
    %v1953 = vadd.f32 0.0, %v1952
    %v1954 = vpop.f32.mrb[0].mxu0
    %v1955 = vpop.f32.mrb[0].mxu0
    %v1956 = vpop.f32.mrb[0].mxu0
    %1957 = vdwg.mxu0
    %v1959 = vsel %vm481, %v1899, 0
    %v1962 = vsel %vm481, %v1905, 0
    %1964 = vmatprep.subr.bf16.mxu0 0
    %1965 = vmatpush1.bf16.xpose.msra.mxu0 %v1962
    %1966 = vmatprep.subr.bf16.mxu0 0
    %1967 = vmatpush1.bf16.xpose.msra.mxu0 0
    %1968 = vmatprep.subr.bf16.mxu0 0
    %1969 = vmatpush1.bf16.xpose.msra.mxu0 0
    %1970 = vmatprep.subr.bf16.mxu0 0
    %1971 = vmatpush1.bf16.xpose.msra.mxu0 0
    %1972 = vmatprep.subr.bf16.mxu0 0
    %1973 = vmatpush1.bf16.xpose.msra.mxu0 0
    %1974 = vmatprep.subr.bf16.mxu0 0
    %1975 = vmatpush1.bf16.xpose.msra.mxu0 0
    %1976 = vmatprep.subr.bf16.mxu0 0
    %1977 = vmatpush1.bf16.xpose.msra.mxu0 0
    %1978 = vmatprep.subr.bf16.mxu0 0
    %1979 = vmatpush1.bf16.xpose.msra.mxu0 0
    %1980 = vmatprep.subr.bf16.mxu0 0
    %1981 = vmatpush1.bf16.xpose.msra.mxu0 0
    %1982 = vmatprep.subr.bf16.mxu0 0
    %1983 = vmatpush1.bf16.xpose.msra.mxu0 0
    %1984 = vmatprep.subr.bf16.mxu0 0
    %1985 = vmatpush1.bf16.xpose.msra.mxu0 0
    %1986 = vmatprep.subr.bf16.mxu0 0
    %1987 = vmatpush1.bf16.xpose.msra.mxu0 0
    %1988 = vmatprep.subr.bf16.mxu0 0
    %1989 = vmatpush1.bf16.xpose.msra.mxu0 0
    %1990 = vmatprep.subr.bf16.mxu0 0
    %1991 = vmatpush1.bf16.xpose.msra.mxu0 0
    %1992 = vmatprep.subr.bf16.mxu0 0
    %1993 = vmatpush1.bf16.xpose.msra.mxu0 0
    %1994 = vmatprep.subr.bf16.mxu0 0
    %1995 = vmatpush1.bf16.xpose.msra.mxu0 0
    %1996 = vmatprep.mubr.bf16.mxu0 0
    %1997 = vmatmul.mubr.bf16.gmra.mrb[0].mxu0 %v1959
    %v1998 = vpop.f32.mrb[0].mxu0
    %v1999 = vadd.f32 0.0, %v1998
    %v2000 = vpop.f32.mrb[0].mxu0
    %v2001 = vpop.f32.mrb[0].mxu0
    %v2002 = vpop.f32.mrb[0].mxu0
    %2003 = vdwg.mxu0
    %v2004 = vsel %vm481, %v1953, -inf
    %2005 = vmax.xlane.f32.xlu0 %v2004
    %v2006 = vpop.xlane.xlu0 %2005
    %v2007 = vsel %vm481, %v1999, -inf
    %2008 = vmax.xlane.f32.xlu0 %v2007
    %v2009 = vpop.xlane.xlu0 %2008
    %v2010 = vsub.f32 %v1953, %v2006
    %v2011 = vsub.f32 %v1999, %v2009
    %v2012 = vmul.f32 %v2010, 1.442695
    %v2013 = vpow.pop %v2012
    %v2014 = vmul.f32 %v2011, 1.442695
    %v2015 = vpow.pop %v2014
    %v2016 = vsel %vm481, %v2013, 0.0
    %2017 = vadd.xlane.f32.xlu0 %v2016
    %v2018 = vpop.xlane.xlu0 %2017
    %v2019 = vsel %vm481, %v2015, 0.0
    %2020 = vadd.xlane.f32.xlu0 %v2019
    %v2021 = vpop.xlane.xlu0 %2020
    %v2022 = vrcp.pop %v2018
    %v2023 = vrcp.pop %v2021
    %v2024 = vmul.f32 %v2013, %v2022
    %v2025 = vmul.f32 %v2015, %v2023
    %v2026 = vpack.c.bf16 %v2024, %v2024
    %v2027 = vpack.c.bf16 %v2025, %v2025
    %v2029 = vsel %vm481, %v2026, 0
    %v2032 = vsel %vm601, %v1910, 0
    %2034 = vmatprep.subr.bf16.mxu0 0
    %2035 = vmatpush1.bf16.msra.mxu0 %v2032
    %2036 = vmatprep.subr.bf16.mxu0 0
    %2037 = vmatpush1.bf16.msra.mxu0 0
    %2038 = vmatprep.subr.bf16.mxu0 0
    %2039 = vmatpush1.bf16.msra.mxu0 0
    %2040 = vmatprep.subr.bf16.mxu0 0
    %2041 = vmatpush1.bf16.msra.mxu0 0
    %2042 = vmatprep.subr.bf16.mxu0 0
    %2043 = vmatpush1.bf16.msra.mxu0 0
    %2044 = vmatprep.subr.bf16.mxu0 0
    %2045 = vmatpush1.bf16.msra.mxu0 0
    %2046 = vmatprep.subr.bf16.mxu0 0
    %2047 = vmatpush1.bf16.msra.mxu0 0
    %2048 = vmatprep.subr.bf16.mxu0 0
    %2049 = vmatpush1.bf16.msra.mxu0 0
    %2050 = vmatprep.subr.bf16.mxu0 0
    %2051 = vmatpush1.bf16.msra.mxu0 0
    %2052 = vmatprep.subr.bf16.mxu0 0
    %2053 = vmatpush1.bf16.msra.mxu0 0
    %2054 = vmatprep.subr.bf16.mxu0 0
    %2055 = vmatpush1.bf16.msra.mxu0 0
    %2056 = vmatprep.subr.bf16.mxu0 0
    %2057 = vmatpush1.bf16.msra.mxu0 0
    %2058 = vmatprep.subr.bf16.mxu0 0
    %2059 = vmatpush1.bf16.msra.mxu0 0
    %2060 = vmatprep.subr.bf16.mxu0 0
    %2061 = vmatpush1.bf16.msra.mxu0 0
    %2062 = vmatprep.subr.bf16.mxu0 0
    %2063 = vmatpush1.bf16.msra.mxu0 0
    %2064 = vmatprep.subr.bf16.mxu0 0
    %2065 = vmatpush1.bf16.msra.mxu0 0
    %2066 = vmatprep.mubr.bf16.mxu0 0
    %2067 = vmatmul.mubr.bf16.gmra.mrb[0].mxu0 %v2029
    %v2068 = vpop.f32.mrb[0].mxu0
    %v2069 = vadd.f32 0.0, %v2068
    %v2070 = vpop.f32.mrb[0].mxu0
    %v2071 = vpop.f32.mrb[0].mxu0
    %v2072 = vpop.f32.mrb[0].mxu0
    %2073 = vdwg.mxu0
    %v2075 = vsel %vm481, %v2027, 0
    %v2078 = vsel %vm601, %v1911, 0
    %2080 = vmatprep.subr.bf16.mxu0 0
    %2081 = vmatpush1.bf16.msra.mxu0 %v2078
    %2082 = vmatprep.subr.bf16.mxu0 0
    %2083 = vmatpush1.bf16.msra.mxu0 0
    %2084 = vmatprep.subr.bf16.mxu0 0
    %2085 = vmatpush1.bf16.msra.mxu0 0
    %2086 = vmatprep.subr.bf16.mxu0 0
    %2087 = vmatpush1.bf16.msra.mxu0 0
    %2088 = vmatprep.subr.bf16.mxu0 0
    %2089 = vmatpush1.bf16.msra.mxu0 0
    %2090 = vmatprep.subr.bf16.mxu0 0
    %2091 = vmatpush1.bf16.msra.mxu0 0
    %2092 = vmatprep.subr.bf16.mxu0 0
    %2093 = vmatpush1.bf16.msra.mxu0 0
    %2094 = vmatprep.subr.bf16.mxu0 0
    %2095 = vmatpush1.bf16.msra.mxu0 0
    %2096 = vmatprep.subr.bf16.mxu0 0
    %2097 = vmatpush1.bf16.msra.mxu0 0
    %2098 = vmatprep.subr.bf16.mxu0 0
    %2099 = vmatpush1.bf16.msra.mxu0 0
    %2100 = vmatprep.subr.bf16.mxu0 0
    %2101 = vmatpush1.bf16.msra.mxu0 0
    %2102 = vmatprep.subr.bf16.mxu0 0
    %2103 = vmatpush1.bf16.msra.mxu0 0
    %2104 = vmatprep.subr.bf16.mxu0 0
    %2105 = vmatpush1.bf16.msra.mxu0 0
    %2106 = vmatprep.subr.bf16.mxu0 0
    %2107 = vmatpush1.bf16.msra.mxu0 0
    %2108 = vmatprep.subr.bf16.mxu0 0
    %2109 = vmatpush1.bf16.msra.mxu0 0
    %2110 = vmatprep.subr.bf16.mxu0 0
    %2111 = vmatpush1.bf16.msra.mxu0 0
    %2112 = vmatprep.mubr.bf16.mxu0 0
    %2113 = vmatmul.mubr.bf16.gmra.mrb[0].mxu0 %v2075
    %v2114 = vpop.f32.mrb[0].mxu0
    %v2115 = vadd.f32 0.0, %v2114
    %v2116 = vpop.f32.mrb[0].mxu0
    %v2117 = vpop.f32.mrb[0].mxu0
    %v2118 = vpop.f32.mrb[0].mxu0
    %2119 = vdwg.mxu0
    %v2120 = vpack.c.bf16 %v2115, %v2069
    %s2121 = scalar_lea.vmem %s23, 12
    %v2122 = vld [vmem:[%s2121] sm:$0xf]
    %v2124 = vsel %vm481, %v2120, 0
    %v2127 = vsel %vm601, %v2122, 0
    %2129 = vmatprep.subr.bf16.mxu0 0
    %2130 = vmatpush1.bf16.msra.mxu0 %v2127
    %2131 = vmatprep.subr.bf16.mxu0 0
    %2132 = vmatpush1.bf16.msra.mxu0 0
    %2133 = vmatprep.subr.bf16.mxu0 0
    %2134 = vmatpush1.bf16.msra.mxu0 0
    %2135 = vmatprep.subr.bf16.mxu0 0
    %2136 = vmatpush1.bf16.msra.mxu0 0
    %2137 = vmatprep.subr.bf16.mxu0 0
    %2138 = vmatpush1.bf16.msra.mxu0 0
    %2139 = vmatprep.subr.bf16.mxu0 0
    %2140 = vmatpush1.bf16.msra.mxu0 0
    %2141 = vmatprep.subr.bf16.mxu0 0
    %2142 = vmatpush1.bf16.msra.mxu0 0
    %2143 = vmatprep.subr.bf16.mxu0 0
    %2144 = vmatpush1.bf16.msra.mxu0 0
    %2145 = vmatprep.subr.bf16.mxu0 0
    %2146 = vmatpush1.bf16.msra.mxu0 0
    %2147 = vmatprep.subr.bf16.mxu0 0
    %2148 = vmatpush1.bf16.msra.mxu0 0
    %2149 = vmatprep.subr.bf16.mxu0 0
    %2150 = vmatpush1.bf16.msra.mxu0 0
    %2151 = vmatprep.subr.bf16.mxu0 0
    %2152 = vmatpush1.bf16.msra.mxu0 0
    %2153 = vmatprep.subr.bf16.mxu0 0
    %2154 = vmatpush1.bf16.msra.mxu0 0
    %2155 = vmatprep.subr.bf16.mxu0 0
    %2156 = vmatpush1.bf16.msra.mxu0 0
    %2157 = vmatprep.subr.bf16.mxu0 0
    %2158 = vmatpush1.bf16.msra.mxu0 0
    %2159 = vmatprep.subr.bf16.mxu0 0
    %2160 = vmatpush1.bf16.msra.mxu0 0
    %2161 = vmatprep.mubr.bf16.mxu0 0
    %2162 = vmatmul.mubr.bf16.gmra.mrb[0].mxu0 %v2124
    %v2163 = vpop.f32.mrb[0].mxu0
    %v2164 = vadd.f32 0.0, %v2163
    %v2165 = vpop.f32.mrb[0].mxu0
    %v2166 = vpop.f32.mrb[0].mxu0
    %v2167 = vadd.f32 0.0, %v2166
    %v2168 = vpop.f32.mrb[0].mxu0
    %2169 = vdwg.mxu0
    %v2170 = vadd.f32 %v1692, %v2164
    %v2171 = vadd.f32 %v1693, %v2167
    %v2172 = vadd.f32 %v213, %v2170
    %v2173 = vadd.f32 %v216, %v2171
    %v2174 = vld [vmem:[%s25] sm:$0x1]
    %v2176 = vlaneseq
    %v2177 = vshrl.u32 %v2176, 7
    %v2178 = vsub.s32 0, %v2177
    %v2179 = vrot.slane %v2174, %v2178
    %v2181 = vadd.f32 %v2172, %v2179
    %v2182 = vadd.f32 %v2173, %v2179
    %v2183 = vld [vmem:[%s27] sm:$0x1]
    %v2184 = vld [vmem:[%s29] sm:$0x1]
    %v2185 = vsel %vm221, %v2181, 0.0
    %2186 = vadd.xlane.f32.xlu0 %v2185
    %v2187 = vpop.xlane.xlu0 %2186
    %v2188 = vsel %vm221, %v2182, 0.0
    %2189 = vadd.xlane.f32.xlu0 %v2188
    %v2190 = vpop.xlane.xlu0 %2189
    %v2191 = vmul.f32 %v2187, %v228
    %v2192 = vmul.f32 %v2190, %v228
    %v2193 = vsub.f32 %v2181, %v2191
    %v2194 = vsub.f32 %v2182, %v2192
    %v2195 = vmul.f32 %v2193, %v2193
    %v2196 = vmul.f32 %v2194, %v2194
    %v2197 = vsel %vm221, %v2195, 0.0
    %2198 = vadd.xlane.f32.xlu0 %v2197
    %v2199 = vpop.xlane.xlu0 %2198
    %v2200 = vsel %vm221, %v2196, 0.0
    %2201 = vadd.xlane.f32.xlu0 %v2200
    %v2202 = vpop.xlane.xlu0 %2201
    %v2203 = vmul.f32 %v2199, %v228
    %v2204 = vmul.f32 %v2202, %v228
    %v2205 = vadd.f32 %v2203, 1e-05
    %v2206 = vadd.f32 %v2204, 1e-05
    %v2207 = vrsqrt.pop %v2205
    %v2208 = vrsqrt.pop %v2206
    %v2209 = vmul.f32 %v2193, %v2207
    %v2210 = vmul.f32 %v2194, %v2208
    %v2212 = vlaneseq
    %v2213 = vshrl.u32 %v2212, 7
    %v2214 = vsub.s32 0, %v2213
    %v2215 = vrot.slane %v2183, %v2214
    %v2217 = vmul.f32 %v2209, %v2215
    %v2218 = vmul.f32 %v2210, %v2215
    %v2220 = vlaneseq
    %v2221 = vshrl.u32 %v2220, 7
    %v2222 = vsub.s32 0, %v2221
    %v2223 = vrot.slane %v2184, %v2222
    %v2225 = vadd.f32 %v2217, %v2223
    %v2226 = vadd.f32 %v2218, %v2223
    %v2227 = vpack.c.bf16 %v2226, %v2225
    %v2228 = vld [vmem:[%s31] sm:$0xf]
    %v2229 = vld [vmem:[%s31 + $0x4] sm:$0xf]
    %v2230 = vld [vmem:[%s31 + $0x8] sm:$0xf]
    %v2231 = vld [vmem:[%s31 + $0xc] sm:$0xf]
    %v2232 = vld [vmem:[%s33] sm:$0x1]
    %v2234 = vlaneseq
    %v2235 = vshrl.u32 %v2234, 7
    %v2236 = vsub.s32 0, %v2235
    %v2237 = vrot.slane %v2232, %v2236
    %v2243 = vunpack.c.l.b16 %v2228
    %v2244 = vunpack.c.l.b16 %v2229
    %v2245 = vunpack.c.l.b16 %v2230
    %v2246 = vunpack.c.l.b16 %v2231
    %v2247 = vpack.c.b16 %v2244, %v2243
    %v2248 = vpack.c.b16 %v2246, %v2245
    %v2252 = vsel %vm221, %v2227, 0
    %2254 = vmatprep.subr.bf16.mxu0 0
    %2255 = vmatpush1.bf16.msra.mxu0 %v2247
    %2256 = vmatprep.subr.bf16.mxu0 0
    %2257 = vmatpush1.bf16.msra.mxu0 %v2248
    %2258 = vmatprep.subr.bf16.mxu0 0
    %2259 = vmatpush1.bf16.msra.mxu0 0
    %2260 = vmatprep.subr.bf16.mxu0 0
    %2261 = vmatpush1.bf16.msra.mxu0 0
    %2262 = vmatprep.subr.bf16.mxu0 0
    %2263 = vmatpush1.bf16.msra.mxu0 0
    %2264 = vmatprep.subr.bf16.mxu0 0
    %2265 = vmatpush1.bf16.msra.mxu0 0
    %2266 = vmatprep.subr.bf16.mxu0 0
    %2267 = vmatpush1.bf16.msra.mxu0 0
    %2268 = vmatprep.subr.bf16.mxu0 0
    %2269 = vmatpush1.bf16.msra.mxu0 0
    %2270 = vmatprep.subr.bf16.mxu0 0
    %2271 = vmatpush1.bf16.msra.mxu0 0
    %2272 = vmatprep.subr.bf16.mxu0 0
    %2273 = vmatpush1.bf16.msra.mxu0 0
    %2274 = vmatprep.subr.bf16.mxu0 0
    %2275 = vmatpush1.bf16.msra.mxu0 0
    %2276 = vmatprep.subr.bf16.mxu0 0
    %2277 = vmatpush1.bf16.msra.mxu0 0
    %2278 = vmatprep.subr.bf16.mxu0 0
    %2279 = vmatpush1.bf16.msra.mxu0 0
    %2280 = vmatprep.subr.bf16.mxu0 0
    %2281 = vmatpush1.bf16.msra.mxu0 0
    %2282 = vmatprep.subr.bf16.mxu0 0
    %2283 = vmatpush1.bf16.msra.mxu0 0
    %2284 = vmatprep.subr.bf16.mxu0 0
    %2285 = vmatpush1.bf16.msra.mxu0 0
    %2286 = vmatprep.mubr.bf16.mxu0 0
    %2287 = vmatmul.mubr.bf16.gmra.mrb[0].mxu0 %v2252
    %v2288 = vpop.f32.mrb[0].mxu0
    %v2289 = vadd.f32 %v2237, %v2288
    %v2290 = vpop.f32.mrb[0].mxu0
    %v2291 = vpop.f32.mrb[0].mxu0
    %v2292 = vadd.f32 %v2237, %v2291
    %v2293 = vpop.f32.mrb[0].mxu0
    %2294 = vdwg.mxu0
    %v2295 = vmax.f32 %v2289, 0.0
    %v2296 = vmax.f32 %v2292, 0.0
    %v2297 = vpack.c.bf16 %v2296, %v2295
    %v2298 = vld [vmem:[%s35] sm:$0xf]
    %v2299 = vld [vmem:[%s35 + $0x4] sm:$0xf]
    %v2300 = vld [vmem:[%s35 + $0x8] sm:$0xf]
    %v2301 = vld [vmem:[%s35 + $0xc] sm:$0xf]
    %v2302 = vld [vmem:[%s35 + $0x10] sm:$0xf]
    %v2303 = vld [vmem:[%s35 + $0x14] sm:$0xf]
    %v2304 = vld [vmem:[%s35 + $0x18] sm:$0xf]
    %v2305 = vld [vmem:[%s35 + $0x1c] sm:$0xf]
    %v2306 = vld [vmem:[%s35 + $0x20] sm:$0xf]
    %v2307 = vld [vmem:[%s35 + $0x24] sm:$0xf]
    %v2308 = vld [vmem:[%s35 + $0x28] sm:$0xf]
    %v2309 = vld [vmem:[%s35 + $0x2c] sm:$0xf]
    %v2310 = vld [vmem:[%s35 + $0x30] sm:$0xf]
    %v2311 = vld [vmem:[%s35 + $0x34] sm:$0xf]
    %v2312 = vld [vmem:[%s35 + $0x38] sm:$0xf]
    %v2313 = vld [vmem:[%s35 + $0x3c] sm:$0xf]
    %v2314 = vld [vmem:[%s37] sm:$0x1]
    %v2316 = vlaneseq
    %v2317 = vshrl.u32 %v2316, 7
    %v2318 = vsub.s32 0, %v2317
    %v2319 = vrot.slane %v2314, %v2318
    %v2337 = vunpack.c.l.b16 %v2298
    %v2338 = vunpack.c.l.b16 %v2299
    %v2339 = vunpack.c.l.b16 %v2300
    %v2340 = vunpack.c.l.b16 %v2301
    %v2341 = vunpack.c.l.b16 %v2302
    %v2342 = vunpack.c.l.b16 %v2303
    %v2343 = vunpack.c.l.b16 %v2304
    %v2344 = vunpack.c.l.b16 %v2305
    %v2345 = vunpack.c.l.b16 %v2306
    %v2346 = vunpack.c.l.b16 %v2307
    %v2347 = vunpack.c.l.b16 %v2308
    %v2348 = vunpack.c.l.b16 %v2309
    %v2349 = vunpack.c.l.b16 %v2310
    %v2350 = vunpack.c.l.b16 %v2311
    %v2351 = vunpack.c.l.b16 %v2312
    %v2352 = vunpack.c.l.b16 %v2313
    %v2353 = vpack.c.b16 %v2338, %v2337
    %v2354 = vpack.c.b16 %v2340, %v2339
    %v2355 = vpack.c.b16 %v2342, %v2341
    %v2356 = vpack.c.b16 %v2344, %v2343
    %v2357 = vpack.c.b16 %v2346, %v2345
    %v2358 = vpack.c.b16 %v2348, %v2347
    %v2359 = vpack.c.b16 %v2350, %v2349
    %v2360 = vpack.c.b16 %v2352, %v2351
    %2369 = vmatprep.subr.bf16.mxu0 0
    %2370 = vmatpush1.bf16.msra.mxu0 %v2353
    %2371 = vmatprep.subr.bf16.mxu0 0
    %2372 = vmatpush1.bf16.msra.mxu0 %v2354
    %2373 = vmatprep.subr.bf16.mxu0 0
    %2374 = vmatpush1.bf16.msra.mxu0 %v2355
    %2375 = vmatprep.subr.bf16.mxu0 0
    %2376 = vmatpush1.bf16.msra.mxu0 %v2356
    %2377 = vmatprep.subr.bf16.mxu0 0
    %2378 = vmatpush1.bf16.msra.mxu0 %v2357
    %2379 = vmatprep.subr.bf16.mxu0 0
    %2380 = vmatpush1.bf16.msra.mxu0 %v2358
    %2381 = vmatprep.subr.bf16.mxu0 0
    %2382 = vmatpush1.bf16.msra.mxu0 %v2359
    %2383 = vmatprep.subr.bf16.mxu0 0
    %2384 = vmatpush1.bf16.msra.mxu0 %v2360
    %2385 = vmatprep.subr.bf16.mxu0 0
    %2386 = vmatpush1.bf16.msra.mxu0 0
    %2387 = vmatprep.subr.bf16.mxu0 0
    %2388 = vmatpush1.bf16.msra.mxu0 0
    %2389 = vmatprep.subr.bf16.mxu0 0
    %2390 = vmatpush1.bf16.msra.mxu0 0
    %2391 = vmatprep.subr.bf16.mxu0 0
    %2392 = vmatpush1.bf16.msra.mxu0 0
    %2393 = vmatprep.subr.bf16.mxu0 0
    %2394 = vmatpush1.bf16.msra.mxu0 0
    %2395 = vmatprep.subr.bf16.mxu0 0
    %2396 = vmatpush1.bf16.msra.mxu0 0
    %2397 = vmatprep.subr.bf16.mxu0 0
    %2398 = vmatpush1.bf16.msra.mxu0 0
    %2399 = vmatprep.subr.bf16.mxu0 0
    %2400 = vmatpush1.bf16.msra.mxu0 0
    %2401 = vmatprep.mubr.bf16.mxu0 0
    %2402 = vmatmul.mubr.bf16.gmra.mrb[0].mxu0 %v2297
    %v2403 = vpop.f32.mrb[0].mxu0
    %v2404 = vadd.f32 %v2319, %v2403
    %v2405 = vpop.f32.mrb[0].mxu0
    %v2406 = vpop.f32.mrb[0].mxu0
    %v2407 = vadd.f32 %v2319, %v2406
    %v2408 = vpop.f32.mrb[0].mxu0
    %2409 = vdwg.mxu0
    %v2410 = vadd.f32 %v2181, %v2404
    %v2411 = vadd.f32 %v2182, %v2407
    %v2412 = vld [vmem:[%s39] sm:$0x1]
    %v2413 = vld [vmem:[%s41] sm:$0x1]
    %v2414 = vsel %vm221, %v2410, 0.0
    %2415 = vadd.xlane.f32.xlu0 %v2414
    %v2416 = vpop.xlane.xlu0 %2415
    %v2417 = vsel %vm221, %v2411, 0.0
    %2418 = vadd.xlane.f32.xlu0 %v2417
    %v2419 = vpop.xlane.xlu0 %2418
    %v2420 = vmul.f32 %v2416, %v228
    %v2421 = vmul.f32 %v2419, %v228
    %v2422 = vsub.f32 %v2410, %v2420
    %v2423 = vsub.f32 %v2411, %v2421
    %v2424 = vmul.f32 %v2422, %v2422
    %v2425 = vmul.f32 %v2423, %v2423
    %v2426 = vsel %vm221, %v2424, 0.0
    %2427 = vadd.xlane.f32.xlu0 %v2426
    %v2428 = vpop.xlane.xlu0 %2427
    %v2429 = vsel %vm221, %v2425, 0.0
    %2430 = vadd.xlane.f32.xlu0 %v2429
    %v2431 = vpop.xlane.xlu0 %2430
    %v2432 = vmul.f32 %v2428, %v228
    %v2433 = vmul.f32 %v2431, %v228
    %v2434 = vadd.f32 %v2432, 1e-05
    %v2435 = vadd.f32 %v2433, 1e-05
    %v2436 = vrsqrt.pop %v2434
    %v2437 = vrsqrt.pop %v2435
    %v2438 = vmul.f32 %v2422, %v2436
    %v2439 = vmul.f32 %v2423, %v2437
    %v2441 = vlaneseq
    %v2442 = vshrl.u32 %v2441, 7
    %v2443 = vsub.s32 0, %v2442
    %v2444 = vrot.slane %v2412, %v2443
    %v2446 = vmul.f32 %v2438, %v2444
    %v2447 = vmul.f32 %v2439, %v2444
    %v2449 = vlaneseq
    %v2450 = vshrl.u32 %v2449, 7
    %v2451 = vsub.s32 0, %v2450
    %v2452 = vrot.slane %v2413, %v2451
    %v2454 = vadd.f32 %v2446, %v2452
    %v2455 = vadd.f32 %v2447, %v2452
    %v2456 = vpack.c.bf16 %v2455, %v2454
    %v2457 = vld [vmem:[%s43] sm:$0xf]
    %v2458 = vld [vmem:[%s43 + $0x4] sm:$0xf]
    %v2459 = vld [vmem:[%s43 + $0x8] sm:$0xf]
    %v2460 = vld [vmem:[%s43 + $0xc] sm:$0xf]
    %v2461 = vld [vmem:[%s45] sm:$0x1]
    %v2463 = vlaneseq
    %v2464 = vshrl.u32 %v2463, 7
    %v2465 = vsub.s32 0, %v2464
    %v2466 = vrot.slane %v2461, %v2465
    %v2472 = vunpack.c.l.b16 %v2457
    %v2473 = vunpack.c.l.b16 %v2458
    %v2474 = vunpack.c.l.b16 %v2459
    %v2475 = vunpack.c.l.b16 %v2460
    %v2476 = vpack.c.b16 %v2473, %v2472
    %v2477 = vpack.c.b16 %v2475, %v2474
    %v2481 = vsel %vm221, %v2456, 0
    %2483 = vmatprep.subr.bf16.mxu0 0
    %2484 = vmatpush1.bf16.msra.mxu0 %v2476
    %2485 = vmatprep.subr.bf16.mxu0 0
    %2486 = vmatpush1.bf16.msra.mxu0 %v2477
    %2487 = vmatprep.subr.bf16.mxu0 0
    %2488 = vmatpush1.bf16.msra.mxu0 0
    %2489 = vmatprep.subr.bf16.mxu0 0
    %2490 = vmatpush1.bf16.msra.mxu0 0
    %2491 = vmatprep.subr.bf16.mxu0 0
    %2492 = vmatpush1.bf16.msra.mxu0 0
    %2493 = vmatprep.subr.bf16.mxu0 0
    %2494 = vmatpush1.bf16.msra.mxu0 0
    %2495 = vmatprep.subr.bf16.mxu0 0
    %2496 = vmatpush1.bf16.msra.mxu0 0
    %2497 = vmatprep.subr.bf16.mxu0 0
    %2498 = vmatpush1.bf16.msra.mxu0 0
    %2499 = vmatprep.subr.bf16.mxu0 0
    %2500 = vmatpush1.bf16.msra.mxu0 0
    %2501 = vmatprep.subr.bf16.mxu0 0
    %2502 = vmatpush1.bf16.msra.mxu0 0
    %2503 = vmatprep.subr.bf16.mxu0 0
    %2504 = vmatpush1.bf16.msra.mxu0 0
    %2505 = vmatprep.subr.bf16.mxu0 0
    %2506 = vmatpush1.bf16.msra.mxu0 0
    %2507 = vmatprep.subr.bf16.mxu0 0
    %2508 = vmatpush1.bf16.msra.mxu0 0
    %2509 = vmatprep.subr.bf16.mxu0 0
    %2510 = vmatpush1.bf16.msra.mxu0 0
    %2511 = vmatprep.subr.bf16.mxu0 0
    %2512 = vmatpush1.bf16.msra.mxu0 0
    %2513 = vmatprep.subr.bf16.mxu0 0
    %2514 = vmatpush1.bf16.msra.mxu0 0
    %2515 = vmatprep.mubr.bf16.mxu0 0
    %2516 = vmatmul.mubr.bf16.gmra.mrb[0].mxu0 %v2481
    %v2517 = vpop.f32.mrb[0].mxu0
    %v2518 = vadd.f32 %v2466, %v2517
    %v2519 = vpop.f32.mrb[0].mxu0
    %v2520 = vpop.f32.mrb[0].mxu0
    %v2521 = vadd.f32 %v2466, %v2520
    %v2522 = vpop.f32.mrb[0].mxu0
    %2523 = vdwg.mxu0
    %v2524 = vmul.f32 %v2518, 0.35355338
    %v2525 = vmul.f32 %v2521, 0.35355338
    %v2526 = vld [vmem:[%s47] sm:$0xf]
    %v2527 = vld [vmem:[%s47 + $0x4] sm:$0xf]
    %v2528 = vld [vmem:[%s47 + $0x8] sm:$0xf]
    %v2529 = vld [vmem:[%s47 + $0xc] sm:$0xf]
    %v2530 = vld [vmem:[%s49] sm:$0x1]
    %v2532 = vlaneseq
    %v2533 = vshrl.u32 %v2532, 7
    %v2534 = vsub.s32 0, %v2533
    %v2535 = vrot.slane %v2530, %v2534
    %v2541 = vunpack.c.l.b16 %v2526
    %v2542 = vunpack.c.l.b16 %v2527
    %v2543 = vunpack.c.l.b16 %v2528
    %v2544 = vunpack.c.l.b16 %v2529
    %v2545 = vpack.c.b16 %v2542, %v2541
    %v2546 = vpack.c.b16 %v2544, %v2543
    %2549 = vmatprep.subr.bf16.mxu0 0
    %2550 = vmatpush1.bf16.msra.mxu0 %v2545
    %2551 = vmatprep.subr.bf16.mxu0 0
    %2552 = vmatpush1.bf16.msra.mxu0 %v2546
    %2553 = vmatprep.subr.bf16.mxu0 0
    %2554 = vmatpush1.bf16.msra.mxu0 0
    %2555 = vmatprep.subr.bf16.mxu0 0
    %2556 = vmatpush1.bf16.msra.mxu0 0
    %2557 = vmatprep.subr.bf16.mxu0 0
    %2558 = vmatpush1.bf16.msra.mxu0 0
    %2559 = vmatprep.subr.bf16.mxu0 0
    %2560 = vmatpush1.bf16.msra.mxu0 0
    %2561 = vmatprep.subr.bf16.mxu0 0
    %2562 = vmatpush1.bf16.msra.mxu0 0
    %2563 = vmatprep.subr.bf16.mxu0 0
    %2564 = vmatpush1.bf16.msra.mxu0 0
    %2565 = vmatprep.subr.bf16.mxu0 0
    %2566 = vmatpush1.bf16.msra.mxu0 0
    %2567 = vmatprep.subr.bf16.mxu0 0
    %2568 = vmatpush1.bf16.msra.mxu0 0
    %2569 = vmatprep.subr.bf16.mxu0 0
    %2570 = vmatpush1.bf16.msra.mxu0 0
    %2571 = vmatprep.subr.bf16.mxu0 0
    %2572 = vmatpush1.bf16.msra.mxu0 0
    %2573 = vmatprep.subr.bf16.mxu0 0
    %2574 = vmatpush1.bf16.msra.mxu0 0
    %2575 = vmatprep.subr.bf16.mxu0 0
    %2576 = vmatpush1.bf16.msra.mxu0 0
    %2577 = vmatprep.subr.bf16.mxu0 0
    %2578 = vmatpush1.bf16.msra.mxu0 0
    %2579 = vmatprep.subr.bf16.mxu0 0
    %2580 = vmatpush1.bf16.msra.mxu0 0
    %2581 = vmatprep.mubr.bf16.mxu0 0
    %2582 = vmatmul.mubr.bf16.gmra.mrb[0].mxu0 %v2481
    %v2583 = vpop.f32.mrb[0].mxu0
    %v2584 = vadd.f32 %v2535, %v2583
    %v2585 = vpop.f32.mrb[0].mxu0
    %v2586 = vpop.f32.mrb[0].mxu0
    %v2587 = vadd.f32 %v2535, %v2586
    %v2588 = vpop.f32.mrb[0].mxu0
    %2589 = vdwg.mxu0
    %v2590 = vld [vmem:[%s51] sm:$0xf]
    %v2591 = vld [vmem:[%s51 + $0x4] sm:$0xf]
    %v2592 = vld [vmem:[%s51 + $0x8] sm:$0xf]
    %v2593 = vld [vmem:[%s51 + $0xc] sm:$0xf]
    %v2594 = vld [vmem:[%s53] sm:$0x1]
    %v2596 = vlaneseq
    %v2597 = vshrl.u32 %v2596, 7
    %v2598 = vsub.s32 0, %v2597
    %v2599 = vrot.slane %v2594, %v2598
    %v2605 = vunpack.c.l.b16 %v2590
    %v2606 = vunpack.c.l.b16 %v2591
    %v2607 = vunpack.c.l.b16 %v2592
    %v2608 = vunpack.c.l.b16 %v2593
    %v2609 = vpack.c.b16 %v2606, %v2605
    %v2610 = vpack.c.b16 %v2608, %v2607
    %2613 = vmatprep.subr.bf16.mxu0 0
    %2614 = vmatpush1.bf16.msra.mxu0 %v2609
    %2615 = vmatprep.subr.bf16.mxu0 0
    %2616 = vmatpush1.bf16.msra.mxu0 %v2610
    %2617 = vmatprep.subr.bf16.mxu0 0
    %2618 = vmatpush1.bf16.msra.mxu0 0
    %2619 = vmatprep.subr.bf16.mxu0 0
    %2620 = vmatpush1.bf16.msra.mxu0 0
    %2621 = vmatprep.subr.bf16.mxu0 0
    %2622 = vmatpush1.bf16.msra.mxu0 0
    %2623 = vmatprep.subr.bf16.mxu0 0
    %2624 = vmatpush1.bf16.msra.mxu0 0
    %2625 = vmatprep.subr.bf16.mxu0 0
    %2626 = vmatpush1.bf16.msra.mxu0 0
    %2627 = vmatprep.subr.bf16.mxu0 0
    %2628 = vmatpush1.bf16.msra.mxu0 0
    %2629 = vmatprep.subr.bf16.mxu0 0
    %2630 = vmatpush1.bf16.msra.mxu0 0
    %2631 = vmatprep.subr.bf16.mxu0 0
    %2632 = vmatpush1.bf16.msra.mxu0 0
    %2633 = vmatprep.subr.bf16.mxu0 0
    %2634 = vmatpush1.bf16.msra.mxu0 0
    %2635 = vmatprep.subr.bf16.mxu0 0
    %2636 = vmatpush1.bf16.msra.mxu0 0
    %2637 = vmatprep.subr.bf16.mxu0 0
    %2638 = vmatpush1.bf16.msra.mxu0 0
    %2639 = vmatprep.subr.bf16.mxu0 0
    %2640 = vmatpush1.bf16.msra.mxu0 0
    %2641 = vmatprep.subr.bf16.mxu0 0
    %2642 = vmatpush1.bf16.msra.mxu0 0
    %2643 = vmatprep.subr.bf16.mxu0 0
    %2644 = vmatpush1.bf16.msra.mxu0 0
    %2645 = vmatprep.mubr.bf16.mxu0 0
    %2646 = vmatmul.mubr.bf16.gmra.mrb[0].mxu0 %v2481
    %v2647 = vpop.f32.mrb[0].mxu0
    %v2648 = vadd.f32 %v2599, %v2647
    %v2649 = vpop.f32.mrb[0].mxu0
    %v2650 = vpop.f32.mrb[0].mxu0
    %v2651 = vadd.f32 %v2599, %v2650
    %v2652 = vpop.f32.mrb[0].mxu0
    %2653 = vdwg.mxu0
    %v2654 = vpack.c.bf16 %v2525, %v2524
    %v2656 = vunpack.c.l.b16 %v2654
    %v2657 = vunpack.c.h.b16 %v2654
    %v2658 = vpack.c.b16 %v2656, %v2656
    %v2659 = vpack.c.b16 %v2657, %v2657
    %v2660 = vpack.c.bf16 %v2587, %v2584
    %v2662 = vunpack.c.l.b16 %v2660
    %v2663 = vunpack.c.h.b16 %v2660
    %v2664 = vpack.c.b16 %v2662, %v2662
    %v2665 = vpack.c.b16 %v2663, %v2663
    %v2666 = vpack.c.bf16 %v2651, %v2648
    %v2668 = vunpack.c.l.b16 %v2666
    %v2669 = vunpack.c.h.b16 %v2666
    %v2670 = vpack.c.b16 %v2668, %v2668
    %v2671 = vpack.c.b16 %v2669, %v2669
    %v2673 = vsel %vm481, %v2658, 0
    %v2676 = vsel %vm481, %v2664, 0
    %2678 = vmatprep.subr.bf16.mxu0 0
    %2679 = vmatpush1.bf16.xpose.msra.mxu0 %v2676
    %2680 = vmatprep.subr.bf16.mxu0 0
    %2681 = vmatpush1.bf16.xpose.msra.mxu0 0
    %2682 = vmatprep.subr.bf16.mxu0 0
    %2683 = vmatpush1.bf16.xpose.msra.mxu0 0
    %2684 = vmatprep.subr.bf16.mxu0 0
    %2685 = vmatpush1.bf16.xpose.msra.mxu0 0
    %2686 = vmatprep.subr.bf16.mxu0 0
    %2687 = vmatpush1.bf16.xpose.msra.mxu0 0
    %2688 = vmatprep.subr.bf16.mxu0 0
    %2689 = vmatpush1.bf16.xpose.msra.mxu0 0
    %2690 = vmatprep.subr.bf16.mxu0 0
    %2691 = vmatpush1.bf16.xpose.msra.mxu0 0
    %2692 = vmatprep.subr.bf16.mxu0 0
    %2693 = vmatpush1.bf16.xpose.msra.mxu0 0
    %2694 = vmatprep.subr.bf16.mxu0 0
    %2695 = vmatpush1.bf16.xpose.msra.mxu0 0
    %2696 = vmatprep.subr.bf16.mxu0 0
    %2697 = vmatpush1.bf16.xpose.msra.mxu0 0
    %2698 = vmatprep.subr.bf16.mxu0 0
    %2699 = vmatpush1.bf16.xpose.msra.mxu0 0
    %2700 = vmatprep.subr.bf16.mxu0 0
    %2701 = vmatpush1.bf16.xpose.msra.mxu0 0
    %2702 = vmatprep.subr.bf16.mxu0 0
    %2703 = vmatpush1.bf16.xpose.msra.mxu0 0
    %2704 = vmatprep.subr.bf16.mxu0 0
    %2705 = vmatpush1.bf16.xpose.msra.mxu0 0
    %2706 = vmatprep.subr.bf16.mxu0 0
    %2707 = vmatpush1.bf16.xpose.msra.mxu0 0
    %2708 = vmatprep.subr.bf16.mxu0 0
    %2709 = vmatpush1.bf16.xpose.msra.mxu0 0
    %2710 = vmatprep.mubr.bf16.mxu0 0
    %2711 = vmatmul.mubr.bf16.gmra.mrb[0].mxu0 %v2673
    %v2712 = vpop.f32.mrb[0].mxu0
    %v2713 = vadd.f32 0.0, %v2712
    %v2714 = vpop.f32.mrb[0].mxu0
    %v2715 = vpop.f32.mrb[0].mxu0
    %v2716 = vpop.f32.mrb[0].mxu0
    %2717 = vdwg.mxu0
    %v2719 = vsel %vm481, %v2659, 0
    %v2722 = vsel %vm481, %v2665, 0
    %2724 = vmatprep.subr.bf16.mxu0 0
    %2725 = vmatpush1.bf16.xpose.msra.mxu0 %v2722
    %2726 = vmatprep.subr.bf16.mxu0 0
    %2727 = vmatpush1.bf16.xpose.msra.mxu0 0
    %2728 = vmatprep.subr.bf16.mxu0 0
    %2729 = vmatpush1.bf16.xpose.msra.mxu0 0
    %2730 = vmatprep.subr.bf16.mxu0 0
    %2731 = vmatpush1.bf16.xpose.msra.mxu0 0
    %2732 = vmatprep.subr.bf16.mxu0 0
    %2733 = vmatpush1.bf16.xpose.msra.mxu0 0
    %2734 = vmatprep.subr.bf16.mxu0 0
    %2735 = vmatpush1.bf16.xpose.msra.mxu0 0
    %2736 = vmatprep.subr.bf16.mxu0 0
    %2737 = vmatpush1.bf16.xpose.msra.mxu0 0
    %2738 = vmatprep.subr.bf16.mxu0 0
    %2739 = vmatpush1.bf16.xpose.msra.mxu0 0
    %2740 = vmatprep.subr.bf16.mxu0 0
    %2741 = vmatpush1.bf16.xpose.msra.mxu0 0
    %2742 = vmatprep.subr.bf16.mxu0 0
    %2743 = vmatpush1.bf16.xpose.msra.mxu0 0
    %2744 = vmatprep.subr.bf16.mxu0 0
    %2745 = vmatpush1.bf16.xpose.msra.mxu0 0
    %2746 = vmatprep.subr.bf16.mxu0 0
    %2747 = vmatpush1.bf16.xpose.msra.mxu0 0
    %2748 = vmatprep.subr.bf16.mxu0 0
    %2749 = vmatpush1.bf16.xpose.msra.mxu0 0
    %2750 = vmatprep.subr.bf16.mxu0 0
    %2751 = vmatpush1.bf16.xpose.msra.mxu0 0
    %2752 = vmatprep.subr.bf16.mxu0 0
    %2753 = vmatpush1.bf16.xpose.msra.mxu0 0
    %2754 = vmatprep.subr.bf16.mxu0 0
    %2755 = vmatpush1.bf16.xpose.msra.mxu0 0
    %2756 = vmatprep.mubr.bf16.mxu0 0
    %2757 = vmatmul.mubr.bf16.gmra.mrb[0].mxu0 %v2719
    %v2758 = vpop.f32.mrb[0].mxu0
    %v2759 = vadd.f32 0.0, %v2758
    %v2760 = vpop.f32.mrb[0].mxu0
    %v2761 = vpop.f32.mrb[0].mxu0
    %v2762 = vpop.f32.mrb[0].mxu0
    %2763 = vdwg.mxu0
    %v2764 = vsel %vm481, %v2713, -inf
    %2765 = vmax.xlane.f32.xlu0 %v2764
    %v2766 = vpop.xlane.xlu0 %2765
    %v2767 = vsel %vm481, %v2759, -inf
    %2768 = vmax.xlane.f32.xlu0 %v2767
    %v2769 = vpop.xlane.xlu0 %2768
    %v2770 = vsub.f32 %v2713, %v2766
    %v2771 = vsub.f32 %v2759, %v2769
    %v2772 = vmul.f32 %v2770, 1.442695
    %v2773 = vpow.pop %v2772
    %v2774 = vmul.f32 %v2771, 1.442695
    %v2775 = vpow.pop %v2774
    %v2776 = vsel %vm481, %v2773, 0.0
    %2777 = vadd.xlane.f32.xlu0 %v2776
    %v2778 = vpop.xlane.xlu0 %2777
    %v2779 = vsel %vm481, %v2775, 0.0
    %2780 = vadd.xlane.f32.xlu0 %v2779
    %v2781 = vpop.xlane.xlu0 %2780
    %v2782 = vrcp.pop %v2778
    %v2783 = vrcp.pop %v2781
    %v2784 = vmul.f32 %v2773, %v2782
    %v2785 = vmul.f32 %v2775, %v2783
    %v2786 = vpack.c.bf16 %v2784, %v2784
    %v2787 = vpack.c.bf16 %v2785, %v2785
    %v2789 = vsel %vm481, %v2786, 0
    %v2792 = vsel %vm601, %v2670, 0
    %2794 = vmatprep.subr.bf16.mxu0 0
    %2795 = vmatpush1.bf16.msra.mxu0 %v2792
    %2796 = vmatprep.subr.bf16.mxu0 0
    %2797 = vmatpush1.bf16.msra.mxu0 0
    %2798 = vmatprep.subr.bf16.mxu0 0
    %2799 = vmatpush1.bf16.msra.mxu0 0
    %2800 = vmatprep.subr.bf16.mxu0 0
    %2801 = vmatpush1.bf16.msra.mxu0 0
    %2802 = vmatprep.subr.bf16.mxu0 0
    %2803 = vmatpush1.bf16.msra.mxu0 0
    %2804 = vmatprep.subr.bf16.mxu0 0
    %2805 = vmatpush1.bf16.msra.mxu0 0
    %2806 = vmatprep.subr.bf16.mxu0 0
    %2807 = vmatpush1.bf16.msra.mxu0 0
    %2808 = vmatprep.subr.bf16.mxu0 0
    %2809 = vmatpush1.bf16.msra.mxu0 0
    %2810 = vmatprep.subr.bf16.mxu0 0
    %2811 = vmatpush1.bf16.msra.mxu0 0
    %2812 = vmatprep.subr.bf16.mxu0 0
    %2813 = vmatpush1.bf16.msra.mxu0 0
    %2814 = vmatprep.subr.bf16.mxu0 0
    %2815 = vmatpush1.bf16.msra.mxu0 0
    %2816 = vmatprep.subr.bf16.mxu0 0
    %2817 = vmatpush1.bf16.msra.mxu0 0
    %2818 = vmatprep.subr.bf16.mxu0 0
    %2819 = vmatpush1.bf16.msra.mxu0 0
    %2820 = vmatprep.subr.bf16.mxu0 0
    %2821 = vmatpush1.bf16.msra.mxu0 0
    %2822 = vmatprep.subr.bf16.mxu0 0
    %2823 = vmatpush1.bf16.msra.mxu0 0
    %2824 = vmatprep.subr.bf16.mxu0 0
    %2825 = vmatpush1.bf16.msra.mxu0 0
    %2826 = vmatprep.mubr.bf16.mxu0 0
    %2827 = vmatmul.mubr.bf16.gmra.mrb[0].mxu0 %v2789
    %v2828 = vpop.f32.mrb[0].mxu0
    %v2829 = vadd.f32 0.0, %v2828
    %v2830 = vpop.f32.mrb[0].mxu0
    %v2831 = vpop.f32.mrb[0].mxu0
    %v2832 = vpop.f32.mrb[0].mxu0
    %2833 = vdwg.mxu0
    %v2835 = vsel %vm481, %v2787, 0
    %v2838 = vsel %vm601, %v2671, 0
    %2840 = vmatprep.subr.bf16.mxu0 0
    %2841 = vmatpush1.bf16.msra.mxu0 %v2838
    %2842 = vmatprep.subr.bf16.mxu0 0
    %2843 = vmatpush1.bf16.msra.mxu0 0
    %2844 = vmatprep.subr.bf16.mxu0 0
    %2845 = vmatpush1.bf16.msra.mxu0 0
    %2846 = vmatprep.subr.bf16.mxu0 0
    %2847 = vmatpush1.bf16.msra.mxu0 0
    %2848 = vmatprep.subr.bf16.mxu0 0
    %2849 = vmatpush1.bf16.msra.mxu0 0
    %2850 = vmatprep.subr.bf16.mxu0 0
    %2851 = vmatpush1.bf16.msra.mxu0 0
    %2852 = vmatprep.subr.bf16.mxu0 0
    %2853 = vmatpush1.bf16.msra.mxu0 0
    %2854 = vmatprep.subr.bf16.mxu0 0
    %2855 = vmatpush1.bf16.msra.mxu0 0
    %2856 = vmatprep.subr.bf16.mxu0 0
    %2857 = vmatpush1.bf16.msra.mxu0 0
    %2858 = vmatprep.subr.bf16.mxu0 0
    %2859 = vmatpush1.bf16.msra.mxu0 0
    %2860 = vmatprep.subr.bf16.mxu0 0
    %2861 = vmatpush1.bf16.msra.mxu0 0
    %2862 = vmatprep.subr.bf16.mxu0 0
    %2863 = vmatpush1.bf16.msra.mxu0 0
    %2864 = vmatprep.subr.bf16.mxu0 0
    %2865 = vmatpush1.bf16.msra.mxu0 0
    %2866 = vmatprep.subr.bf16.mxu0 0
    %2867 = vmatpush1.bf16.msra.mxu0 0
    %2868 = vmatprep.subr.bf16.mxu0 0
    %2869 = vmatpush1.bf16.msra.mxu0 0
    %2870 = vmatprep.subr.bf16.mxu0 0
    %2871 = vmatpush1.bf16.msra.mxu0 0
    %2872 = vmatprep.mubr.bf16.mxu0 0
    %2873 = vmatmul.mubr.bf16.gmra.mrb[0].mxu0 %v2835
    %v2874 = vpop.f32.mrb[0].mxu0
    %v2875 = vadd.f32 0.0, %v2874
    %v2876 = vpop.f32.mrb[0].mxu0
    %v2877 = vpop.f32.mrb[0].mxu0
    %v2878 = vpop.f32.mrb[0].mxu0
    %2879 = vdwg.mxu0
    %v2880 = vpack.c.bf16 %v2875, %v2829
    %v2881 = vld [vmem:[%s55] sm:$0xf]
    %s2882 = scalar_lea.vmem %s43, 16
    %v2883 = vld [vmem:[%s2882] sm:$0xf]
    %v2884 = vld [vmem:[%s2882 + $0x4] sm:$0xf]
    %v2885 = vld [vmem:[%s2882 + $0x8] sm:$0xf]
    %v2886 = vld [vmem:[%s2882 + $0xc] sm:$0xf]
    %s2887 = scalar_lea.vmem %s45, 1
    %v2888 = vld [vmem:[%s2887] sm:$0x1]
    %v2890 = vlaneseq
    %v2891 = vshrl.u32 %v2890, 7
    %v2892 = vsub.s32 0, %v2891
    %v2893 = vrot.slane %v2888, %v2892
    %v2899 = vunpack.c.l.b16 %v2883
    %v2900 = vunpack.c.l.b16 %v2884
    %v2901 = vunpack.c.l.b16 %v2885
    %v2902 = vunpack.c.l.b16 %v2886
    %v2903 = vpack.c.b16 %v2900, %v2899
    %v2904 = vpack.c.b16 %v2902, %v2901
    %2907 = vmatprep.subr.bf16.mxu0 0
    %2908 = vmatpush1.bf16.msra.mxu0 %v2903
    %2909 = vmatprep.subr.bf16.mxu0 0
    %2910 = vmatpush1.bf16.msra.mxu0 %v2904
    %2911 = vmatprep.subr.bf16.mxu0 0
    %2912 = vmatpush1.bf16.msra.mxu0 0
    %2913 = vmatprep.subr.bf16.mxu0 0
    %2914 = vmatpush1.bf16.msra.mxu0 0
    %2915 = vmatprep.subr.bf16.mxu0 0
    %2916 = vmatpush1.bf16.msra.mxu0 0
    %2917 = vmatprep.subr.bf16.mxu0 0
    %2918 = vmatpush1.bf16.msra.mxu0 0
    %2919 = vmatprep.subr.bf16.mxu0 0
    %2920 = vmatpush1.bf16.msra.mxu0 0
    %2921 = vmatprep.subr.bf16.mxu0 0
    %2922 = vmatpush1.bf16.msra.mxu0 0
    %2923 = vmatprep.subr.bf16.mxu0 0
    %2924 = vmatpush1.bf16.msra.mxu0 0
    %2925 = vmatprep.subr.bf16.mxu0 0
    %2926 = vmatpush1.bf16.msra.mxu0 0
    %2927 = vmatprep.subr.bf16.mxu0 0
    %2928 = vmatpush1.bf16.msra.mxu0 0
    %2929 = vmatprep.subr.bf16.mxu0 0
    %2930 = vmatpush1.bf16.msra.mxu0 0
    %2931 = vmatprep.subr.bf16.mxu0 0
    %2932 = vmatpush1.bf16.msra.mxu0 0
    %2933 = vmatprep.subr.bf16.mxu0 0
    %2934 = vmatpush1.bf16.msra.mxu0 0
    %2935 = vmatprep.subr.bf16.mxu0 0
    %2936 = vmatpush1.bf16.msra.mxu0 0
    %2937 = vmatprep.subr.bf16.mxu0 0
    %2938 = vmatpush1.bf16.msra.mxu0 0
    %2939 = vmatprep.mubr.bf16.mxu0 0
    %2940 = vmatmul.mubr.bf16.gmra.mrb[0].mxu0 %v2481
    %v2941 = vpop.f32.mrb[0].mxu0
    %v2942 = vadd.f32 %v2893, %v2941
    %v2943 = vpop.f32.mrb[0].mxu0
    %v2944 = vpop.f32.mrb[0].mxu0
    %v2945 = vadd.f32 %v2893, %v2944
    %v2946 = vpop.f32.mrb[0].mxu0
    %2947 = vdwg.mxu0
    %v2948 = vmul.f32 %v2942, 0.35355338
    %v2949 = vmul.f32 %v2945, 0.35355338
    %s2950 = scalar_lea.vmem %s47, 16
    %v2951 = vld [vmem:[%s2950] sm:$0xf]
    %v2952 = vld [vmem:[%s2950 + $0x4] sm:$0xf]
    %v2953 = vld [vmem:[%s2950 + $0x8] sm:$0xf]
    %v2954 = vld [vmem:[%s2950 + $0xc] sm:$0xf]
    %s2955 = scalar_lea.vmem %s49, 1
    %v2956 = vld [vmem:[%s2955] sm:$0x1]
    %v2958 = vlaneseq
    %v2959 = vshrl.u32 %v2958, 7
    %v2960 = vsub.s32 0, %v2959
    %v2961 = vrot.slane %v2956, %v2960
    %v2967 = vunpack.c.l.b16 %v2951
    %v2968 = vunpack.c.l.b16 %v2952
    %v2969 = vunpack.c.l.b16 %v2953
    %v2970 = vunpack.c.l.b16 %v2954
    %v2971 = vpack.c.b16 %v2968, %v2967
    %v2972 = vpack.c.b16 %v2970, %v2969
    %2975 = vmatprep.subr.bf16.mxu0 0
    %2976 = vmatpush1.bf16.msra.mxu0 %v2971
    %2977 = vmatprep.subr.bf16.mxu0 0
    %2978 = vmatpush1.bf16.msra.mxu0 %v2972
    %2979 = vmatprep.subr.bf16.mxu0 0
    %2980 = vmatpush1.bf16.msra.mxu0 0
    %2981 = vmatprep.subr.bf16.mxu0 0
    %2982 = vmatpush1.bf16.msra.mxu0 0
    %2983 = vmatprep.subr.bf16.mxu0 0
    %2984 = vmatpush1.bf16.msra.mxu0 0
    %2985 = vmatprep.subr.bf16.mxu0 0
    %2986 = vmatpush1.bf16.msra.mxu0 0
    %2987 = vmatprep.subr.bf16.mxu0 0
    %2988 = vmatpush1.bf16.msra.mxu0 0
    %2989 = vmatprep.subr.bf16.mxu0 0
    %2990 = vmatpush1.bf16.msra.mxu0 0
    %2991 = vmatprep.subr.bf16.mxu0 0
    %2992 = vmatpush1.bf16.msra.mxu0 0
    %2993 = vmatprep.subr.bf16.mxu0 0
    %2994 = vmatpush1.bf16.msra.mxu0 0
    %2995 = vmatprep.subr.bf16.mxu0 0
    %2996 = vmatpush1.bf16.msra.mxu0 0
    %2997 = vmatprep.subr.bf16.mxu0 0
    %2998 = vmatpush1.bf16.msra.mxu0 0
    %2999 = vmatprep.subr.bf16.mxu0 0
    %3000 = vmatpush1.bf16.msra.mxu0 0
    %3001 = vmatprep.subr.bf16.mxu0 0
    %3002 = vmatpush1.bf16.msra.mxu0 0
    %3003 = vmatprep.subr.bf16.mxu0 0
    %3004 = vmatpush1.bf16.msra.mxu0 0
    %3005 = vmatprep.subr.bf16.mxu0 0
    %3006 = vmatpush1.bf16.msra.mxu0 0
    %3007 = vmatprep.mubr.bf16.mxu0 0
    %3008 = vmatmul.mubr.bf16.gmra.mrb[0].mxu0 %v2481
    %v3009 = vpop.f32.mrb[0].mxu0
    %v3010 = vadd.f32 %v2961, %v3009
    %v3011 = vpop.f32.mrb[0].mxu0
    %v3012 = vpop.f32.mrb[0].mxu0
    %v3013 = vadd.f32 %v2961, %v3012
    %v3014 = vpop.f32.mrb[0].mxu0
    %3015 = vdwg.mxu0
    %s3016 = scalar_lea.vmem %s51, 16
    %v3017 = vld [vmem:[%s3016] sm:$0xf]
    %v3018 = vld [vmem:[%s3016 + $0x4] sm:$0xf]
    %v3019 = vld [vmem:[%s3016 + $0x8] sm:$0xf]
    %v3020 = vld [vmem:[%s3016 + $0xc] sm:$0xf]
    %s3021 = scalar_lea.vmem %s53, 1
    %v3022 = vld [vmem:[%s3021] sm:$0x1]
    %v3024 = vlaneseq
    %v3025 = vshrl.u32 %v3024, 7
    %v3026 = vsub.s32 0, %v3025
    %v3027 = vrot.slane %v3022, %v3026
    %v3033 = vunpack.c.l.b16 %v3017
    %v3034 = vunpack.c.l.b16 %v3018
    %v3035 = vunpack.c.l.b16 %v3019
    %v3036 = vunpack.c.l.b16 %v3020
    %v3037 = vpack.c.b16 %v3034, %v3033
    %v3038 = vpack.c.b16 %v3036, %v3035
    %3041 = vmatprep.subr.bf16.mxu0 0
    %3042 = vmatpush1.bf16.msra.mxu0 %v3037
    %3043 = vmatprep.subr.bf16.mxu0 0
    %3044 = vmatpush1.bf16.msra.mxu0 %v3038
    %3045 = vmatprep.subr.bf16.mxu0 0
    %3046 = vmatpush1.bf16.msra.mxu0 0
    %3047 = vmatprep.subr.bf16.mxu0 0
    %3048 = vmatpush1.bf16.msra.mxu0 0
    %3049 = vmatprep.subr.bf16.mxu0 0
    %3050 = vmatpush1.bf16.msra.mxu0 0
    %3051 = vmatprep.subr.bf16.mxu0 0
    %3052 = vmatpush1.bf16.msra.mxu0 0
    %3053 = vmatprep.subr.bf16.mxu0 0
    %3054 = vmatpush1.bf16.msra.mxu0 0
    %3055 = vmatprep.subr.bf16.mxu0 0
    %3056 = vmatpush1.bf16.msra.mxu0 0
    %3057 = vmatprep.subr.bf16.mxu0 0
    %3058 = vmatpush1.bf16.msra.mxu0 0
    %3059 = vmatprep.subr.bf16.mxu0 0
    %3060 = vmatpush1.bf16.msra.mxu0 0
    %3061 = vmatprep.subr.bf16.mxu0 0
    %3062 = vmatpush1.bf16.msra.mxu0 0
    %3063 = vmatprep.subr.bf16.mxu0 0
    %3064 = vmatpush1.bf16.msra.mxu0 0
    %3065 = vmatprep.subr.bf16.mxu0 0
    %3066 = vmatpush1.bf16.msra.mxu0 0
    %3067 = vmatprep.subr.bf16.mxu0 0
    %3068 = vmatpush1.bf16.msra.mxu0 0
    %3069 = vmatprep.subr.bf16.mxu0 0
    %3070 = vmatpush1.bf16.msra.mxu0 0
    %3071 = vmatprep.subr.bf16.mxu0 0
    %3072 = vmatpush1.bf16.msra.mxu0 0
    %3073 = vmatprep.mubr.bf16.mxu0 0
    %3074 = vmatmul.mubr.bf16.gmra.mrb[0].mxu0 %v2481
    %v3075 = vpop.f32.mrb[0].mxu0
    %v3076 = vadd.f32 %v3027, %v3075
    %v3077 = vpop.f32.mrb[0].mxu0
    %v3078 = vpop.f32.mrb[0].mxu0
    %v3079 = vadd.f32 %v3027, %v3078
    %v3080 = vpop.f32.mrb[0].mxu0
    %3081 = vdwg.mxu0
    %v3082 = vpack.c.bf16 %v2949, %v2948
    %v3084 = vunpack.c.l.b16 %v3082
    %v3085 = vunpack.c.h.b16 %v3082
    %v3086 = vpack.c.b16 %v3084, %v3084
    %v3087 = vpack.c.b16 %v3085, %v3085
    %v3088 = vpack.c.bf16 %v3013, %v3010
    %v3090 = vunpack.c.l.b16 %v3088
    %v3091 = vunpack.c.h.b16 %v3088
    %v3092 = vpack.c.b16 %v3090, %v3090
    %v3093 = vpack.c.b16 %v3091, %v3091
    %v3094 = vpack.c.bf16 %v3079, %v3076
    %v3096 = vunpack.c.l.b16 %v3094
    %v3097 = vunpack.c.h.b16 %v3094
    %v3098 = vpack.c.b16 %v3096, %v3096
    %v3099 = vpack.c.b16 %v3097, %v3097
    %v3101 = vsel %vm481, %v3086, 0
    %v3104 = vsel %vm481, %v3092, 0
    %3106 = vmatprep.subr.bf16.mxu0 0
    %3107 = vmatpush1.bf16.xpose.msra.mxu0 %v3104
    %3108 = vmatprep.subr.bf16.mxu0 0
    %3109 = vmatpush1.bf16.xpose.msra.mxu0 0
    %3110 = vmatprep.subr.bf16.mxu0 0
    %3111 = vmatpush1.bf16.xpose.msra.mxu0 0
    %3112 = vmatprep.subr.bf16.mxu0 0
    %3113 = vmatpush1.bf16.xpose.msra.mxu0 0
    %3114 = vmatprep.subr.bf16.mxu0 0
    %3115 = vmatpush1.bf16.xpose.msra.mxu0 0
    %3116 = vmatprep.subr.bf16.mxu0 0
    %3117 = vmatpush1.bf16.xpose.msra.mxu0 0
    %3118 = vmatprep.subr.bf16.mxu0 0
    %3119 = vmatpush1.bf16.xpose.msra.mxu0 0
    %3120 = vmatprep.subr.bf16.mxu0 0
    %3121 = vmatpush1.bf16.xpose.msra.mxu0 0
    %3122 = vmatprep.subr.bf16.mxu0 0
    %3123 = vmatpush1.bf16.xpose.msra.mxu0 0
    %3124 = vmatprep.subr.bf16.mxu0 0
    %3125 = vmatpush1.bf16.xpose.msra.mxu0 0
    %3126 = vmatprep.subr.bf16.mxu0 0
    %3127 = vmatpush1.bf16.xpose.msra.mxu0 0
    %3128 = vmatprep.subr.bf16.mxu0 0
    %3129 = vmatpush1.bf16.xpose.msra.mxu0 0
    %3130 = vmatprep.subr.bf16.mxu0 0
    %3131 = vmatpush1.bf16.xpose.msra.mxu0 0
    %3132 = vmatprep.subr.bf16.mxu0 0
    %3133 = vmatpush1.bf16.xpose.msra.mxu0 0
    %3134 = vmatprep.subr.bf16.mxu0 0
    %3135 = vmatpush1.bf16.xpose.msra.mxu0 0
    %3136 = vmatprep.subr.bf16.mxu0 0
    %3137 = vmatpush1.bf16.xpose.msra.mxu0 0
    %3138 = vmatprep.mubr.bf16.mxu0 0
    %3139 = vmatmul.mubr.bf16.gmra.mrb[0].mxu0 %v3101
    %v3140 = vpop.f32.mrb[0].mxu0
    %v3141 = vadd.f32 0.0, %v3140
    %v3142 = vpop.f32.mrb[0].mxu0
    %v3143 = vpop.f32.mrb[0].mxu0
    %v3144 = vpop.f32.mrb[0].mxu0
    %3145 = vdwg.mxu0
    %v3147 = vsel %vm481, %v3087, 0
    %v3150 = vsel %vm481, %v3093, 0
    %3152 = vmatprep.subr.bf16.mxu0 0
    %3153 = vmatpush1.bf16.xpose.msra.mxu0 %v3150
    %3154 = vmatprep.subr.bf16.mxu0 0
    %3155 = vmatpush1.bf16.xpose.msra.mxu0 0
    %3156 = vmatprep.subr.bf16.mxu0 0
    %3157 = vmatpush1.bf16.xpose.msra.mxu0 0
    %3158 = vmatprep.subr.bf16.mxu0 0
    %3159 = vmatpush1.bf16.xpose.msra.mxu0 0
    %3160 = vmatprep.subr.bf16.mxu0 0
    %3161 = vmatpush1.bf16.xpose.msra.mxu0 0
    %3162 = vmatprep.subr.bf16.mxu0 0
    %3163 = vmatpush1.bf16.xpose.msra.mxu0 0
    %3164 = vmatprep.subr.bf16.mxu0 0
    %3165 = vmatpush1.bf16.xpose.msra.mxu0 0
    %3166 = vmatprep.subr.bf16.mxu0 0
    %3167 = vmatpush1.bf16.xpose.msra.mxu0 0
    %3168 = vmatprep.subr.bf16.mxu0 0
    %3169 = vmatpush1.bf16.xpose.msra.mxu0 0
    %3170 = vmatprep.subr.bf16.mxu0 0
    %3171 = vmatpush1.bf16.xpose.msra.mxu0 0
    %3172 = vmatprep.subr.bf16.mxu0 0
    %3173 = vmatpush1.bf16.xpose.msra.mxu0 0
    %3174 = vmatprep.subr.bf16.mxu0 0
    %3175 = vmatpush1.bf16.xpose.msra.mxu0 0
    %3176 = vmatprep.subr.bf16.mxu0 0
    %3177 = vmatpush1.bf16.xpose.msra.mxu0 0
    %3178 = vmatprep.subr.bf16.mxu0 0
    %3179 = vmatpush1.bf16.xpose.msra.mxu0 0
    %3180 = vmatprep.subr.bf16.mxu0 0
    %3181 = vmatpush1.bf16.xpose.msra.mxu0 0
    %3182 = vmatprep.subr.bf16.mxu0 0
    %3183 = vmatpush1.bf16.xpose.msra.mxu0 0
    %3184 = vmatprep.mubr.bf16.mxu0 0
    %3185 = vmatmul.mubr.bf16.gmra.mrb[0].mxu0 %v3147
    %v3186 = vpop.f32.mrb[0].mxu0
    %v3187 = vadd.f32 0.0, %v3186
    %v3188 = vpop.f32.mrb[0].mxu0
    %v3189 = vpop.f32.mrb[0].mxu0
    %v3190 = vpop.f32.mrb[0].mxu0
    %3191 = vdwg.mxu0
    %v3192 = vsel %vm481, %v3141, -inf
    %3193 = vmax.xlane.f32.xlu0 %v3192
    %v3194 = vpop.xlane.xlu0 %3193
    %v3195 = vsel %vm481, %v3187, -inf
    %3196 = vmax.xlane.f32.xlu0 %v3195
    %v3197 = vpop.xlane.xlu0 %3196
    %v3198 = vsub.f32 %v3141, %v3194
    %v3199 = vsub.f32 %v3187, %v3197
    %v3200 = vmul.f32 %v3198, 1.442695
    %v3201 = vpow.pop %v3200
    %v3202 = vmul.f32 %v3199, 1.442695
    %v3203 = vpow.pop %v3202
    %v3204 = vsel %vm481, %v3201, 0.0
    %3205 = vadd.xlane.f32.xlu0 %v3204
    %v3206 = vpop.xlane.xlu0 %3205
    %v3207 = vsel %vm481, %v3203, 0.0
    %3208 = vadd.xlane.f32.xlu0 %v3207
    %v3209 = vpop.xlane.xlu0 %3208
    %v3210 = vrcp.pop %v3206
    %v3211 = vrcp.pop %v3209
    %v3212 = vmul.f32 %v3201, %v3210
    %v3213 = vmul.f32 %v3203, %v3211
    %v3214 = vpack.c.bf16 %v3212, %v3212
    %v3215 = vpack.c.bf16 %v3213, %v3213
    %v3217 = vsel %vm481, %v3214, 0
    %v3220 = vsel %vm601, %v3098, 0
    %3222 = vmatprep.subr.bf16.mxu0 0
    %3223 = vmatpush1.bf16.msra.mxu0 %v3220
    %3224 = vmatprep.subr.bf16.mxu0 0
    %3225 = vmatpush1.bf16.msra.mxu0 0
    %3226 = vmatprep.subr.bf16.mxu0 0
    %3227 = vmatpush1.bf16.msra.mxu0 0
    %3228 = vmatprep.subr.bf16.mxu0 0
    %3229 = vmatpush1.bf16.msra.mxu0 0
    %3230 = vmatprep.subr.bf16.mxu0 0
    %3231 = vmatpush1.bf16.msra.mxu0 0
    %3232 = vmatprep.subr.bf16.mxu0 0
    %3233 = vmatpush1.bf16.msra.mxu0 0
    %3234 = vmatprep.subr.bf16.mxu0 0
    %3235 = vmatpush1.bf16.msra.mxu0 0
    %3236 = vmatprep.subr.bf16.mxu0 0
    %3237 = vmatpush1.bf16.msra.mxu0 0
    %3238 = vmatprep.subr.bf16.mxu0 0
    %3239 = vmatpush1.bf16.msra.mxu0 0
    %3240 = vmatprep.subr.bf16.mxu0 0
    %3241 = vmatpush1.bf16.msra.mxu0 0
    %3242 = vmatprep.subr.bf16.mxu0 0
    %3243 = vmatpush1.bf16.msra.mxu0 0
    %3244 = vmatprep.subr.bf16.mxu0 0
    %3245 = vmatpush1.bf16.msra.mxu0 0
    %3246 = vmatprep.subr.bf16.mxu0 0
    %3247 = vmatpush1.bf16.msra.mxu0 0
    %3248 = vmatprep.subr.bf16.mxu0 0
    %3249 = vmatpush1.bf16.msra.mxu0 0
    %3250 = vmatprep.subr.bf16.mxu0 0
    %3251 = vmatpush1.bf16.msra.mxu0 0
    %3252 = vmatprep.subr.bf16.mxu0 0
    %3253 = vmatpush1.bf16.msra.mxu0 0
    %3254 = vmatprep.mubr.bf16.mxu0 0
    %3255 = vmatmul.mubr.bf16.gmra.mrb[0].mxu0 %v3217
    %v3256 = vpop.f32.mrb[0].mxu0
    %v3257 = vadd.f32 0.0, %v3256
    %v3258 = vpop.f32.mrb[0].mxu0
    %v3259 = vpop.f32.mrb[0].mxu0
    %v3260 = vpop.f32.mrb[0].mxu0
    %3261 = vdwg.mxu0
    %v3263 = vsel %vm481, %v3215, 0
    %v3266 = vsel %vm601, %v3099, 0
    %3268 = vmatprep.subr.bf16.mxu0 0
    %3269 = vmatpush1.bf16.msra.mxu0 %v3266
    %3270 = vmatprep.subr.bf16.mxu0 0
    %3271 = vmatpush1.bf16.msra.mxu0 0
    %3272 = vmatprep.subr.bf16.mxu0 0
    %3273 = vmatpush1.bf16.msra.mxu0 0
    %3274 = vmatprep.subr.bf16.mxu0 0
    %3275 = vmatpush1.bf16.msra.mxu0 0
    %3276 = vmatprep.subr.bf16.mxu0 0
    %3277 = vmatpush1.bf16.msra.mxu0 0
    %3278 = vmatprep.subr.bf16.mxu0 0
    %3279 = vmatpush1.bf16.msra.mxu0 0
    %3280 = vmatprep.subr.bf16.mxu0 0
    %3281 = vmatpush1.bf16.msra.mxu0 0
    %3282 = vmatprep.subr.bf16.mxu0 0
    %3283 = vmatpush1.bf16.msra.mxu0 0
    %3284 = vmatprep.subr.bf16.mxu0 0
    %3285 = vmatpush1.bf16.msra.mxu0 0
    %3286 = vmatprep.subr.bf16.mxu0 0
    %3287 = vmatpush1.bf16.msra.mxu0 0
    %3288 = vmatprep.subr.bf16.mxu0 0
    %3289 = vmatpush1.bf16.msra.mxu0 0
    %3290 = vmatprep.subr.bf16.mxu0 0
    %3291 = vmatpush1.bf16.msra.mxu0 0
    %3292 = vmatprep.subr.bf16.mxu0 0
    %3293 = vmatpush1.bf16.msra.mxu0 0
    %3294 = vmatprep.subr.bf16.mxu0 0
    %3295 = vmatpush1.bf16.msra.mxu0 0
    %3296 = vmatprep.subr.bf16.mxu0 0
    %3297 = vmatpush1.bf16.msra.mxu0 0
    %3298 = vmatprep.subr.bf16.mxu0 0
    %3299 = vmatpush1.bf16.msra.mxu0 0
    %3300 = vmatprep.mubr.bf16.mxu0 0
    %3301 = vmatmul.mubr.bf16.gmra.mrb[0].mxu0 %v3263
    %v3302 = vpop.f32.mrb[0].mxu0
    %v3303 = vadd.f32 0.0, %v3302
    %v3304 = vpop.f32.mrb[0].mxu0
    %v3305 = vpop.f32.mrb[0].mxu0
    %v3306 = vpop.f32.mrb[0].mxu0
    %3307 = vdwg.mxu0
    %v3308 = vpack.c.bf16 %v3303, %v3257
    %s3309 = scalar_lea.vmem %s55, 4
    %v3310 = vld [vmem:[%s3309] sm:$0xf]
    %v3312 = vsel %vm481, %v3308, 0
    %v3315 = vsel %vm601, %v3310, 0
    %3317 = vmatprep.subr.bf16.mxu0 0
    %3318 = vmatpush1.bf16.msra.mxu0 %v3315
    %3319 = vmatprep.subr.bf16.mxu0 0
    %3320 = vmatpush1.bf16.msra.mxu0 0
    %3321 = vmatprep.subr.bf16.mxu0 0
    %3322 = vmatpush1.bf16.msra.mxu0 0
    %3323 = vmatprep.subr.bf16.mxu0 0
    %3324 = vmatpush1.bf16.msra.mxu0 0
    %3325 = vmatprep.subr.bf16.mxu0 0
    %3326 = vmatpush1.bf16.msra.mxu0 0
    %3327 = vmatprep.subr.bf16.mxu0 0
    %3328 = vmatpush1.bf16.msra.mxu0 0
    %3329 = vmatprep.subr.bf16.mxu0 0
    %3330 = vmatpush1.bf16.msra.mxu0 0
    %3331 = vmatprep.subr.bf16.mxu0 0
    %3332 = vmatpush1.bf16.msra.mxu0 0
    %3333 = vmatprep.subr.bf16.mxu0 0
    %3334 = vmatpush1.bf16.msra.mxu0 0
    %3335 = vmatprep.subr.bf16.mxu0 0
    %3336 = vmatpush1.bf16.msra.mxu0 0
    %3337 = vmatprep.subr.bf16.mxu0 0
    %3338 = vmatpush1.bf16.msra.mxu0 0
    %3339 = vmatprep.subr.bf16.mxu0 0
    %3340 = vmatpush1.bf16.msra.mxu0 0
    %3341 = vmatprep.subr.bf16.mxu0 0
    %3342 = vmatpush1.bf16.msra.mxu0 0
    %3343 = vmatprep.subr.bf16.mxu0 0
    %3344 = vmatpush1.bf16.msra.mxu0 0
    %3345 = vmatprep.subr.bf16.mxu0 0
    %3346 = vmatpush1.bf16.msra.mxu0 0
    %3347 = vmatprep.subr.bf16.mxu0 0
    %3348 = vmatpush1.bf16.msra.mxu0 0
    %3349 = vmatprep.mubr.bf16.mxu0 0
    %3350 = vmatmul.mubr.bf16.gmra.mrb[0].mxu0 %v3312
    %v3351 = vpop.f32.mrb[0].mxu0
    %v3352 = vadd.f32 0.0, %v3351
    %v3353 = vpop.f32.mrb[0].mxu0
    %v3354 = vpop.f32.mrb[0].mxu0
    %v3355 = vadd.f32 0.0, %v3354
    %v3356 = vpop.f32.mrb[0].mxu0
    %3357 = vdwg.mxu0
    %v3359 = vsel %vm481, %v2880, 0
    %v3362 = vsel %vm601, %v2881, 0
    %3364 = vmatprep.subr.bf16.mxu0 0
    %3365 = vmatpush1.bf16.msra.mxu0 %v3362
    %3366 = vmatprep.subr.bf16.mxu0 0
    %3367 = vmatpush1.bf16.msra.mxu0 0
    %3368 = vmatprep.subr.bf16.mxu0 0
    %3369 = vmatpush1.bf16.msra.mxu0 0
    %3370 = vmatprep.subr.bf16.mxu0 0
    %3371 = vmatpush1.bf16.msra.mxu0 0
    %3372 = vmatprep.subr.bf16.mxu0 0
    %3373 = vmatpush1.bf16.msra.mxu0 0
    %3374 = vmatprep.subr.bf16.mxu0 0
    %3375 = vmatpush1.bf16.msra.mxu0 0
    %3376 = vmatprep.subr.bf16.mxu0 0
    %3377 = vmatpush1.bf16.msra.mxu0 0
    %3378 = vmatprep.subr.bf16.mxu0 0
    %3379 = vmatpush1.bf16.msra.mxu0 0
    %3380 = vmatprep.subr.bf16.mxu0 0
    %3381 = vmatpush1.bf16.msra.mxu0 0
    %3382 = vmatprep.subr.bf16.mxu0 0
    %3383 = vmatpush1.bf16.msra.mxu0 0
    %3384 = vmatprep.subr.bf16.mxu0 0
    %3385 = vmatpush1.bf16.msra.mxu0 0
    %3386 = vmatprep.subr.bf16.mxu0 0
    %3387 = vmatpush1.bf16.msra.mxu0 0
    %3388 = vmatprep.subr.bf16.mxu0 0
    %3389 = vmatpush1.bf16.msra.mxu0 0
    %3390 = vmatprep.subr.bf16.mxu0 0
    %3391 = vmatpush1.bf16.msra.mxu0 0
    %3392 = vmatprep.subr.bf16.mxu0 0
    %3393 = vmatpush1.bf16.msra.mxu0 0
    %3394 = vmatprep.subr.bf16.mxu0 0
    %3395 = vmatpush1.bf16.msra.mxu0 0
    %3396 = vmatprep.mubr.bf16.mxu0 0
    %3397 = vmatmul.mubr.bf16.gmra.mrb[0].mxu0 %v3359
    %v3398 = vpop.f32.mrb[0].mxu0
    %v3399 = vadd.f32 %v3352, %v3398
    %v3400 = vpop.f32.mrb[0].mxu0
    %v3401 = vpop.f32.mrb[0].mxu0
    %v3402 = vadd.f32 %v3355, %v3401
    %v3403 = vpop.f32.mrb[0].mxu0
    %3404 = vdwg.mxu0
    %s3405 = scalar_lea.vmem %s43, 32
    %v3406 = vld [vmem:[%s3405] sm:$0xf]
    %v3407 = vld [vmem:[%s3405 + $0x4] sm:$0xf]
    %v3408 = vld [vmem:[%s3405 + $0x8] sm:$0xf]
    %v3409 = vld [vmem:[%s3405 + $0xc] sm:$0xf]
    %s3410 = scalar_lea.vmem %s45, 2
    %v3411 = vld [vmem:[%s3410] sm:$0x1]
    %v3413 = vlaneseq
    %v3414 = vshrl.u32 %v3413, 7
    %v3415 = vsub.s32 0, %v3414
    %v3416 = vrot.slane %v3411, %v3415
    %v3422 = vunpack.c.l.b16 %v3406
    %v3423 = vunpack.c.l.b16 %v3407
    %v3424 = vunpack.c.l.b16 %v3408
    %v3425 = vunpack.c.l.b16 %v3409
    %v3426 = vpack.c.b16 %v3423, %v3422
    %v3427 = vpack.c.b16 %v3425, %v3424
    %3430 = vmatprep.subr.bf16.mxu0 0
    %3431 = vmatpush1.bf16.msra.mxu0 %v3426
    %3432 = vmatprep.subr.bf16.mxu0 0
    %3433 = vmatpush1.bf16.msra.mxu0 %v3427
    %3434 = vmatprep.subr.bf16.mxu0 0
    %3435 = vmatpush1.bf16.msra.mxu0 0
    %3436 = vmatprep.subr.bf16.mxu0 0
    %3437 = vmatpush1.bf16.msra.mxu0 0
    %3438 = vmatprep.subr.bf16.mxu0 0
    %3439 = vmatpush1.bf16.msra.mxu0 0
    %3440 = vmatprep.subr.bf16.mxu0 0
    %3441 = vmatpush1.bf16.msra.mxu0 0
    %3442 = vmatprep.subr.bf16.mxu0 0
    %3443 = vmatpush1.bf16.msra.mxu0 0
    %3444 = vmatprep.subr.bf16.mxu0 0
    %3445 = vmatpush1.bf16.msra.mxu0 0
    %3446 = vmatprep.subr.bf16.mxu0 0
    %3447 = vmatpush1.bf16.msra.mxu0 0
    %3448 = vmatprep.subr.bf16.mxu0 0
    %3449 = vmatpush1.bf16.msra.mxu0 0
    %3450 = vmatprep.subr.bf16.mxu0 0
    %3451 = vmatpush1.bf16.msra.mxu0 0
    %3452 = vmatprep.subr.bf16.mxu0 0
    %3453 = vmatpush1.bf16.msra.mxu0 0
    %3454 = vmatprep.subr.bf16.mxu0 0
    %3455 = vmatpush1.bf16.msra.mxu0 0
    %3456 = vmatprep.subr.bf16.mxu0 0
    %3457 = vmatpush1.bf16.msra.mxu0 0
    %3458 = vmatprep.subr.bf16.mxu0 0
    %3459 = vmatpush1.bf16.msra.mxu0 0
    %3460 = vmatprep.subr.bf16.mxu0 0
    %3461 = vmatpush1.bf16.msra.mxu0 0
    %3462 = vmatprep.mubr.bf16.mxu0 0
    %3463 = vmatmul.mubr.bf16.gmra.mrb[0].mxu0 %v2481
    %v3464 = vpop.f32.mrb[0].mxu0
    %v3465 = vadd.f32 %v3416, %v3464
    %v3466 = vpop.f32.mrb[0].mxu0
    %v3467 = vpop.f32.mrb[0].mxu0
    %v3468 = vadd.f32 %v3416, %v3467
    %v3469 = vpop.f32.mrb[0].mxu0
    %3470 = vdwg.mxu0
    %v3471 = vmul.f32 %v3465, 0.35355338
    %v3472 = vmul.f32 %v3468, 0.35355338
    %s3473 = scalar_lea.vmem %s47, 32
    %v3474 = vld [vmem:[%s3473] sm:$0xf]
    %v3475 = vld [vmem:[%s3473 + $0x4] sm:$0xf]
    %v3476 = vld [vmem:[%s3473 + $0x8] sm:$0xf]
    %v3477 = vld [vmem:[%s3473 + $0xc] sm:$0xf]
    %s3478 = scalar_lea.vmem %s49, 2
    %v3479 = vld [vmem:[%s3478] sm:$0x1]
    %v3481 = vlaneseq
    %v3482 = vshrl.u32 %v3481, 7
    %v3483 = vsub.s32 0, %v3482
    %v3484 = vrot.slane %v3479, %v3483
    %v3490 = vunpack.c.l.b16 %v3474
    %v3491 = vunpack.c.l.b16 %v3475
    %v3492 = vunpack.c.l.b16 %v3476
    %v3493 = vunpack.c.l.b16 %v3477
    %v3494 = vpack.c.b16 %v3491, %v3490
    %v3495 = vpack.c.b16 %v3493, %v3492
    %3498 = vmatprep.subr.bf16.mxu0 0
    %3499 = vmatpush1.bf16.msra.mxu0 %v3494
    %3500 = vmatprep.subr.bf16.mxu0 0
    %3501 = vmatpush1.bf16.msra.mxu0 %v3495
    %3502 = vmatprep.subr.bf16.mxu0 0
    %3503 = vmatpush1.bf16.msra.mxu0 0
    %3504 = vmatprep.subr.bf16.mxu0 0
    %3505 = vmatpush1.bf16.msra.mxu0 0
    %3506 = vmatprep.subr.bf16.mxu0 0
    %3507 = vmatpush1.bf16.msra.mxu0 0
    %3508 = vmatprep.subr.bf16.mxu0 0
    %3509 = vmatpush1.bf16.msra.mxu0 0
    %3510 = vmatprep.subr.bf16.mxu0 0
    %3511 = vmatpush1.bf16.msra.mxu0 0
    %3512 = vmatprep.subr.bf16.mxu0 0
    %3513 = vmatpush1.bf16.msra.mxu0 0
    %3514 = vmatprep.subr.bf16.mxu0 0
    %3515 = vmatpush1.bf16.msra.mxu0 0
    %3516 = vmatprep.subr.bf16.mxu0 0
    %3517 = vmatpush1.bf16.msra.mxu0 0
    %3518 = vmatprep.subr.bf16.mxu0 0
    %3519 = vmatpush1.bf16.msra.mxu0 0
    %3520 = vmatprep.subr.bf16.mxu0 0
    %3521 = vmatpush1.bf16.msra.mxu0 0
    %3522 = vmatprep.subr.bf16.mxu0 0
    %3523 = vmatpush1.bf16.msra.mxu0 0
    %3524 = vmatprep.subr.bf16.mxu0 0
    %3525 = vmatpush1.bf16.msra.mxu0 0
    %3526 = vmatprep.subr.bf16.mxu0 0
    %3527 = vmatpush1.bf16.msra.mxu0 0
    %3528 = vmatprep.subr.bf16.mxu0 0
    %3529 = vmatpush1.bf16.msra.mxu0 0
    %3530 = vmatprep.mubr.bf16.mxu0 0
    %3531 = vmatmul.mubr.bf16.gmra.mrb[0].mxu0 %v2481
    %v3532 = vpop.f32.mrb[0].mxu0
    %v3533 = vadd.f32 %v3484, %v3532
    %v3534 = vpop.f32.mrb[0].mxu0
    %v3535 = vpop.f32.mrb[0].mxu0
    %v3536 = vadd.f32 %v3484, %v3535
    %v3537 = vpop.f32.mrb[0].mxu0
    %3538 = vdwg.mxu0
    %s3539 = scalar_lea.vmem %s51, 32
    %v3540 = vld [vmem:[%s3539] sm:$0xf]
    %v3541 = vld [vmem:[%s3539 + $0x4] sm:$0xf]
    %v3542 = vld [vmem:[%s3539 + $0x8] sm:$0xf]
    %v3543 = vld [vmem:[%s3539 + $0xc] sm:$0xf]
    %s3544 = scalar_lea.vmem %s53, 2
    %v3545 = vld [vmem:[%s3544] sm:$0x1]
    %v3547 = vlaneseq
    %v3548 = vshrl.u32 %v3547, 7
    %v3549 = vsub.s32 0, %v3548
    %v3550 = vrot.slane %v3545, %v3549
    %v3556 = vunpack.c.l.b16 %v3540
    %v3557 = vunpack.c.l.b16 %v3541
    %v3558 = vunpack.c.l.b16 %v3542
    %v3559 = vunpack.c.l.b16 %v3543
    %v3560 = vpack.c.b16 %v3557, %v3556
    %v3561 = vpack.c.b16 %v3559, %v3558
    %3564 = vmatprep.subr.bf16.mxu0 0
    %3565 = vmatpush1.bf16.msra.mxu0 %v3560
    %3566 = vmatprep.subr.bf16.mxu0 0
    %3567 = vmatpush1.bf16.msra.mxu0 %v3561
    %3568 = vmatprep.subr.bf16.mxu0 0
    %3569 = vmatpush1.bf16.msra.mxu0 0
    %3570 = vmatprep.subr.bf16.mxu0 0
    %3571 = vmatpush1.bf16.msra.mxu0 0
    %3572 = vmatprep.subr.bf16.mxu0 0
    %3573 = vmatpush1.bf16.msra.mxu0 0
    %3574 = vmatprep.subr.bf16.mxu0 0
    %3575 = vmatpush1.bf16.msra.mxu0 0
    %3576 = vmatprep.subr.bf16.mxu0 0
    %3577 = vmatpush1.bf16.msra.mxu0 0
    %3578 = vmatprep.subr.bf16.mxu0 0
    %3579 = vmatpush1.bf16.msra.mxu0 0
    %3580 = vmatprep.subr.bf16.mxu0 0
    %3581 = vmatpush1.bf16.msra.mxu0 0
    %3582 = vmatprep.subr.bf16.mxu0 0
    %3583 = vmatpush1.bf16.msra.mxu0 0
    %3584 = vmatprep.subr.bf16.mxu0 0
    %3585 = vmatpush1.bf16.msra.mxu0 0
    %3586 = vmatprep.subr.bf16.mxu0 0
    %3587 = vmatpush1.bf16.msra.mxu0 0
    %3588 = vmatprep.subr.bf16.mxu0 0
    %3589 = vmatpush1.bf16.msra.mxu0 0
    %3590 = vmatprep.subr.bf16.mxu0 0
    %3591 = vmatpush1.bf16.msra.mxu0 0
    %3592 = vmatprep.subr.bf16.mxu0 0
    %3593 = vmatpush1.bf16.msra.mxu0 0
    %3594 = vmatprep.subr.bf16.mxu0 0
    %3595 = vmatpush1.bf16.msra.mxu0 0
    %3596 = vmatprep.mubr.bf16.mxu0 0
    %3597 = vmatmul.mubr.bf16.gmra.mrb[0].mxu0 %v2481
    %v3598 = vpop.f32.mrb[0].mxu0
    %v3599 = vadd.f32 %v3550, %v3598
    %v3600 = vpop.f32.mrb[0].mxu0
    %v3601 = vpop.f32.mrb[0].mxu0
    %v3602 = vadd.f32 %v3550, %v3601
    %v3603 = vpop.f32.mrb[0].mxu0
    %3604 = vdwg.mxu0
    %v3605 = vpack.c.bf16 %v3472, %v3471
    %v3607 = vunpack.c.l.b16 %v3605
    %v3608 = vunpack.c.h.b16 %v3605
    %v3609 = vpack.c.b16 %v3607, %v3607
    %v3610 = vpack.c.b16 %v3608, %v3608
    %v3611 = vpack.c.bf16 %v3536, %v3533
    %v3613 = vunpack.c.l.b16 %v3611
    %v3614 = vunpack.c.h.b16 %v3611
    %v3615 = vpack.c.b16 %v3613, %v3613
    %v3616 = vpack.c.b16 %v3614, %v3614
    %v3617 = vpack.c.bf16 %v3602, %v3599
    %v3619 = vunpack.c.l.b16 %v3617
    %v3620 = vunpack.c.h.b16 %v3617
    %v3621 = vpack.c.b16 %v3619, %v3619
    %v3622 = vpack.c.b16 %v3620, %v3620
    %v3624 = vsel %vm481, %v3609, 0
    %v3627 = vsel %vm481, %v3615, 0
    %3629 = vmatprep.subr.bf16.mxu0 0
    %3630 = vmatpush1.bf16.xpose.msra.mxu0 %v3627
    %3631 = vmatprep.subr.bf16.mxu0 0
    %3632 = vmatpush1.bf16.xpose.msra.mxu0 0
    %3633 = vmatprep.subr.bf16.mxu0 0
    %3634 = vmatpush1.bf16.xpose.msra.mxu0 0
    %3635 = vmatprep.subr.bf16.mxu0 0
    %3636 = vmatpush1.bf16.xpose.msra.mxu0 0
    %3637 = vmatprep.subr.bf16.mxu0 0
    %3638 = vmatpush1.bf16.xpose.msra.mxu0 0
    %3639 = vmatprep.subr.bf16.mxu0 0
    %3640 = vmatpush1.bf16.xpose.msra.mxu0 0
    %3641 = vmatprep.subr.bf16.mxu0 0
    %3642 = vmatpush1.bf16.xpose.msra.mxu0 0
    %3643 = vmatprep.subr.bf16.mxu0 0
    %3644 = vmatpush1.bf16.xpose.msra.mxu0 0
    %3645 = vmatprep.subr.bf16.mxu0 0
    %3646 = vmatpush1.bf16.xpose.msra.mxu0 0
    %3647 = vmatprep.subr.bf16.mxu0 0
    %3648 = vmatpush1.bf16.xpose.msra.mxu0 0
    %3649 = vmatprep.subr.bf16.mxu0 0
    %3650 = vmatpush1.bf16.xpose.msra.mxu0 0
    %3651 = vmatprep.subr.bf16.mxu0 0
    %3652 = vmatpush1.bf16.xpose.msra.mxu0 0
    %3653 = vmatprep.subr.bf16.mxu0 0
    %3654 = vmatpush1.bf16.xpose.msra.mxu0 0
    %3655 = vmatprep.subr.bf16.mxu0 0
    %3656 = vmatpush1.bf16.xpose.msra.mxu0 0
    %3657 = vmatprep.subr.bf16.mxu0 0
    %3658 = vmatpush1.bf16.xpose.msra.mxu0 0
    %3659 = vmatprep.subr.bf16.mxu0 0
    %3660 = vmatpush1.bf16.xpose.msra.mxu0 0
    %3661 = vmatprep.mubr.bf16.mxu0 0
    %3662 = vmatmul.mubr.bf16.gmra.mrb[0].mxu0 %v3624
    %v3663 = vpop.f32.mrb[0].mxu0
    %v3664 = vadd.f32 0.0, %v3663
    %v3665 = vpop.f32.mrb[0].mxu0
    %v3666 = vpop.f32.mrb[0].mxu0
    %v3667 = vpop.f32.mrb[0].mxu0
    %3668 = vdwg.mxu0
    %v3670 = vsel %vm481, %v3610, 0
    %v3673 = vsel %vm481, %v3616, 0
    %3675 = vmatprep.subr.bf16.mxu0 0
    %3676 = vmatpush1.bf16.xpose.msra.mxu0 %v3673
    %3677 = vmatprep.subr.bf16.mxu0 0
    %3678 = vmatpush1.bf16.xpose.msra.mxu0 0
    %3679 = vmatprep.subr.bf16.mxu0 0
    %3680 = vmatpush1.bf16.xpose.msra.mxu0 0
    %3681 = vmatprep.subr.bf16.mxu0 0
    %3682 = vmatpush1.bf16.xpose.msra.mxu0 0
    %3683 = vmatprep.subr.bf16.mxu0 0
    %3684 = vmatpush1.bf16.xpose.msra.mxu0 0
    %3685 = vmatprep.subr.bf16.mxu0 0
    %3686 = vmatpush1.bf16.xpose.msra.mxu0 0
    %3687 = vmatprep.subr.bf16.mxu0 0
    %3688 = vmatpush1.bf16.xpose.msra.mxu0 0
    %3689 = vmatprep.subr.bf16.mxu0 0
    %3690 = vmatpush1.bf16.xpose.msra.mxu0 0
    %3691 = vmatprep.subr.bf16.mxu0 0
    %3692 = vmatpush1.bf16.xpose.msra.mxu0 0
    %3693 = vmatprep.subr.bf16.mxu0 0
    %3694 = vmatpush1.bf16.xpose.msra.mxu0 0
    %3695 = vmatprep.subr.bf16.mxu0 0
    %3696 = vmatpush1.bf16.xpose.msra.mxu0 0
    %3697 = vmatprep.subr.bf16.mxu0 0
    %3698 = vmatpush1.bf16.xpose.msra.mxu0 0
    %3699 = vmatprep.subr.bf16.mxu0 0
    %3700 = vmatpush1.bf16.xpose.msra.mxu0 0
    %3701 = vmatprep.subr.bf16.mxu0 0
    %3702 = vmatpush1.bf16.xpose.msra.mxu0 0
    %3703 = vmatprep.subr.bf16.mxu0 0
    %3704 = vmatpush1.bf16.xpose.msra.mxu0 0
    %3705 = vmatprep.subr.bf16.mxu0 0
    %3706 = vmatpush1.bf16.xpose.msra.mxu0 0
    %3707 = vmatprep.mubr.bf16.mxu0 0
    %3708 = vmatmul.mubr.bf16.gmra.mrb[0].mxu0 %v3670
    %v3709 = vpop.f32.mrb[0].mxu0
    %v3710 = vadd.f32 0.0, %v3709
    %v3711 = vpop.f32.mrb[0].mxu0
    %v3712 = vpop.f32.mrb[0].mxu0
    %v3713 = vpop.f32.mrb[0].mxu0
    %3714 = vdwg.mxu0
    %v3715 = vsel %vm481, %v3664, -inf
    %3716 = vmax.xlane.f32.xlu0 %v3715
    %v3717 = vpop.xlane.xlu0 %3716
    %v3718 = vsel %vm481, %v3710, -inf
    %3719 = vmax.xlane.f32.xlu0 %v3718
    %v3720 = vpop.xlane.xlu0 %3719
    %v3721 = vsub.f32 %v3664, %v3717
    %v3722 = vsub.f32 %v3710, %v3720
    %v3723 = vmul.f32 %v3721, 1.442695
    %v3724 = vpow.pop %v3723
    %v3725 = vmul.f32 %v3722, 1.442695
    %v3726 = vpow.pop %v3725
    %v3727 = vsel %vm481, %v3724, 0.0
    %3728 = vadd.xlane.f32.xlu0 %v3727
    %v3729 = vpop.xlane.xlu0 %3728
    %v3730 = vsel %vm481, %v3726, 0.0
    %3731 = vadd.xlane.f32.xlu0 %v3730
    %v3732 = vpop.xlane.xlu0 %3731
    %v3733 = vrcp.pop %v3729
    %v3734 = vrcp.pop %v3732
    %v3735 = vmul.f32 %v3724, %v3733
    %v3736 = vmul.f32 %v3726, %v3734
    %v3737 = vpack.c.bf16 %v3735, %v3735
    %v3738 = vpack.c.bf16 %v3736, %v3736
    %v3740 = vsel %vm481, %v3737, 0
    %v3743 = vsel %vm601, %v3621, 0
    %3745 = vmatprep.subr.bf16.mxu0 0
    %3746 = vmatpush1.bf16.msra.mxu0 %v3743
    %3747 = vmatprep.subr.bf16.mxu0 0
    %3748 = vmatpush1.bf16.msra.mxu0 0
    %3749 = vmatprep.subr.bf16.mxu0 0
    %3750 = vmatpush1.bf16.msra.mxu0 0
    %3751 = vmatprep.subr.bf16.mxu0 0
    %3752 = vmatpush1.bf16.msra.mxu0 0
    %3753 = vmatprep.subr.bf16.mxu0 0
    %3754 = vmatpush1.bf16.msra.mxu0 0
    %3755 = vmatprep.subr.bf16.mxu0 0
    %3756 = vmatpush1.bf16.msra.mxu0 0
    %3757 = vmatprep.subr.bf16.mxu0 0
    %3758 = vmatpush1.bf16.msra.mxu0 0
    %3759 = vmatprep.subr.bf16.mxu0 0
    %3760 = vmatpush1.bf16.msra.mxu0 0
    %3761 = vmatprep.subr.bf16.mxu0 0
    %3762 = vmatpush1.bf16.msra.mxu0 0
    %3763 = vmatprep.subr.bf16.mxu0 0
    %3764 = vmatpush1.bf16.msra.mxu0 0
    %3765 = vmatprep.subr.bf16.mxu0 0
    %3766 = vmatpush1.bf16.msra.mxu0 0
    %3767 = vmatprep.subr.bf16.mxu0 0
    %3768 = vmatpush1.bf16.msra.mxu0 0
    %3769 = vmatprep.subr.bf16.mxu0 0
    %3770 = vmatpush1.bf16.msra.mxu0 0
    %3771 = vmatprep.subr.bf16.mxu0 0
    %3772 = vmatpush1.bf16.msra.mxu0 0
    %3773 = vmatprep.subr.bf16.mxu0 0
    %3774 = vmatpush1.bf16.msra.mxu0 0
    %3775 = vmatprep.subr.bf16.mxu0 0
    %3776 = vmatpush1.bf16.msra.mxu0 0
    %3777 = vmatprep.mubr.bf16.mxu0 0
    %3778 = vmatmul.mubr.bf16.gmra.mrb[0].mxu0 %v3740
    %v3779 = vpop.f32.mrb[0].mxu0
    %v3780 = vadd.f32 0.0, %v3779
    %v3781 = vpop.f32.mrb[0].mxu0
    %v3782 = vpop.f32.mrb[0].mxu0
    %v3783 = vpop.f32.mrb[0].mxu0
    %3784 = vdwg.mxu0
    %v3786 = vsel %vm481, %v3738, 0
    %v3789 = vsel %vm601, %v3622, 0
    %3791 = vmatprep.subr.bf16.mxu0 0
    %3792 = vmatpush1.bf16.msra.mxu0 %v3789
    %3793 = vmatprep.subr.bf16.mxu0 0
    %3794 = vmatpush1.bf16.msra.mxu0 0
    %3795 = vmatprep.subr.bf16.mxu0 0
    %3796 = vmatpush1.bf16.msra.mxu0 0
    %3797 = vmatprep.subr.bf16.mxu0 0
    %3798 = vmatpush1.bf16.msra.mxu0 0
    %3799 = vmatprep.subr.bf16.mxu0 0
    %3800 = vmatpush1.bf16.msra.mxu0 0
    %3801 = vmatprep.subr.bf16.mxu0 0
    %3802 = vmatpush1.bf16.msra.mxu0 0
    %3803 = vmatprep.subr.bf16.mxu0 0
    %3804 = vmatpush1.bf16.msra.mxu0 0
    %3805 = vmatprep.subr.bf16.mxu0 0
    %3806 = vmatpush1.bf16.msra.mxu0 0
    %3807 = vmatprep.subr.bf16.mxu0 0
    %3808 = vmatpush1.bf16.msra.mxu0 0
    %3809 = vmatprep.subr.bf16.mxu0 0
    %3810 = vmatpush1.bf16.msra.mxu0 0
    %3811 = vmatprep.subr.bf16.mxu0 0
    %3812 = vmatpush1.bf16.msra.mxu0 0
    %3813 = vmatprep.subr.bf16.mxu0 0
    %3814 = vmatpush1.bf16.msra.mxu0 0
    %3815 = vmatprep.subr.bf16.mxu0 0
    %3816 = vmatpush1.bf16.msra.mxu0 0
    %3817 = vmatprep.subr.bf16.mxu0 0
    %3818 = vmatpush1.bf16.msra.mxu0 0
    %3819 = vmatprep.subr.bf16.mxu0 0
    %3820 = vmatpush1.bf16.msra.mxu0 0
    %3821 = vmatprep.subr.bf16.mxu0 0
    %3822 = vmatpush1.bf16.msra.mxu0 0
    %3823 = vmatprep.mubr.bf16.mxu0 0
    %3824 = vmatmul.mubr.bf16.gmra.mrb[0].mxu0 %v3786
    %v3825 = vpop.f32.mrb[0].mxu0
    %v3826 = vadd.f32 0.0, %v3825
    %v3827 = vpop.f32.mrb[0].mxu0
    %v3828 = vpop.f32.mrb[0].mxu0
    %v3829 = vpop.f32.mrb[0].mxu0
    %3830 = vdwg.mxu0
    %v3831 = vpack.c.bf16 %v3826, %v3780
    %s3832 = scalar_lea.vmem %s55, 8
    %v3833 = vld [vmem:[%s3832] sm:$0xf]
    %v3835 = vsel %vm481, %v3831, 0
    %v3838 = vsel %vm601, %v3833, 0
    %3840 = vmatprep.subr.bf16.mxu0 0
    %3841 = vmatpush1.bf16.msra.mxu0 %v3838
    %3842 = vmatprep.subr.bf16.mxu0 0
    %3843 = vmatpush1.bf16.msra.mxu0 0
    %3844 = vmatprep.subr.bf16.mxu0 0
    %3845 = vmatpush1.bf16.msra.mxu0 0
    %3846 = vmatprep.subr.bf16.mxu0 0
    %3847 = vmatpush1.bf16.msra.mxu0 0
    %3848 = vmatprep.subr.bf16.mxu0 0
    %3849 = vmatpush1.bf16.msra.mxu0 0
    %3850 = vmatprep.subr.bf16.mxu0 0
    %3851 = vmatpush1.bf16.msra.mxu0 0
    %3852 = vmatprep.subr.bf16.mxu0 0
    %3853 = vmatpush1.bf16.msra.mxu0 0
    %3854 = vmatprep.subr.bf16.mxu0 0
    %3855 = vmatpush1.bf16.msra.mxu0 0
    %3856 = vmatprep.subr.bf16.mxu0 0
    %3857 = vmatpush1.bf16.msra.mxu0 0
    %3858 = vmatprep.subr.bf16.mxu0 0
    %3859 = vmatpush1.bf16.msra.mxu0 0
    %3860 = vmatprep.subr.bf16.mxu0 0
    %3861 = vmatpush1.bf16.msra.mxu0 0
    %3862 = vmatprep.subr.bf16.mxu0 0
    %3863 = vmatpush1.bf16.msra.mxu0 0
    %3864 = vmatprep.subr.bf16.mxu0 0
    %3865 = vmatpush1.bf16.msra.mxu0 0
    %3866 = vmatprep.subr.bf16.mxu0 0
    %3867 = vmatpush1.bf16.msra.mxu0 0
    %3868 = vmatprep.subr.bf16.mxu0 0
    %3869 = vmatpush1.bf16.msra.mxu0 0
    %3870 = vmatprep.subr.bf16.mxu0 0
    %3871 = vmatpush1.bf16.msra.mxu0 0
    %3872 = vmatprep.mubr.bf16.mxu0 0
    %3873 = vmatmul.mubr.bf16.gmra.mrb[0].mxu0 %v3835
    %v3874 = vpop.f32.mrb[0].mxu0
    %v3875 = vadd.f32 0.0, %v3874
    %v3876 = vpop.f32.mrb[0].mxu0
    %v3877 = vpop.f32.mrb[0].mxu0
    %v3878 = vadd.f32 0.0, %v3877
    %v3879 = vpop.f32.mrb[0].mxu0
    %3880 = vdwg.mxu0
    %v3881 = vadd.f32 %v3399, %v3875
    %v3882 = vadd.f32 %v3402, %v3878
    %s3883 = scalar_lea.vmem %s43, 48
    %v3884 = vld [vmem:[%s3883] sm:$0xf]
    %v3885 = vld [vmem:[%s3883 + $0x4] sm:$0xf]
    %v3886 = vld [vmem:[%s3883 + $0x8] sm:$0xf]
    %v3887 = vld [vmem:[%s3883 + $0xc] sm:$0xf]
    %s3888 = scalar_lea.vmem %s45, 3
    %v3889 = vld [vmem:[%s3888] sm:$0x1]
    %v3891 = vlaneseq
    %v3892 = vshrl.u32 %v3891, 7
    %v3893 = vsub.s32 0, %v3892
    %v3894 = vrot.slane %v3889, %v3893
    %v3900 = vunpack.c.l.b16 %v3884
    %v3901 = vunpack.c.l.b16 %v3885
    %v3902 = vunpack.c.l.b16 %v3886
    %v3903 = vunpack.c.l.b16 %v3887
    %v3904 = vpack.c.b16 %v3901, %v3900
    %v3905 = vpack.c.b16 %v3903, %v3902
    %3908 = vmatprep.subr.bf16.mxu0 0
    %3909 = vmatpush1.bf16.msra.mxu0 %v3904
    %3910 = vmatprep.subr.bf16.mxu0 0
    %3911 = vmatpush1.bf16.msra.mxu0 %v3905
    %3912 = vmatprep.subr.bf16.mxu0 0
    %3913 = vmatpush1.bf16.msra.mxu0 0
    %3914 = vmatprep.subr.bf16.mxu0 0
    %3915 = vmatpush1.bf16.msra.mxu0 0
    %3916 = vmatprep.subr.bf16.mxu0 0
    %3917 = vmatpush1.bf16.msra.mxu0 0
    %3918 = vmatprep.subr.bf16.mxu0 0
    %3919 = vmatpush1.bf16.msra.mxu0 0
    %3920 = vmatprep.subr.bf16.mxu0 0
    %3921 = vmatpush1.bf16.msra.mxu0 0
    %3922 = vmatprep.subr.bf16.mxu0 0
    %3923 = vmatpush1.bf16.msra.mxu0 0
    %3924 = vmatprep.subr.bf16.mxu0 0
    %3925 = vmatpush1.bf16.msra.mxu0 0
    %3926 = vmatprep.subr.bf16.mxu0 0
    %3927 = vmatpush1.bf16.msra.mxu0 0
    %3928 = vmatprep.subr.bf16.mxu0 0
    %3929 = vmatpush1.bf16.msra.mxu0 0
    %3930 = vmatprep.subr.bf16.mxu0 0
    %3931 = vmatpush1.bf16.msra.mxu0 0
    %3932 = vmatprep.subr.bf16.mxu0 0
    %3933 = vmatpush1.bf16.msra.mxu0 0
    %3934 = vmatprep.subr.bf16.mxu0 0
    %3935 = vmatpush1.bf16.msra.mxu0 0
    %3936 = vmatprep.subr.bf16.mxu0 0
    %3937 = vmatpush1.bf16.msra.mxu0 0
    %3938 = vmatprep.subr.bf16.mxu0 0
    %3939 = vmatpush1.bf16.msra.mxu0 0
    %3940 = vmatprep.mubr.bf16.mxu0 0
    %3941 = vmatmul.mubr.bf16.gmra.mrb[0].mxu0 %v2481
    %v3942 = vpop.f32.mrb[0].mxu0
    %v3943 = vadd.f32 %v3894, %v3942
    %v3944 = vpop.f32.mrb[0].mxu0
    %v3945 = vpop.f32.mrb[0].mxu0
    %v3946 = vadd.f32 %v3894, %v3945
    %v3947 = vpop.f32.mrb[0].mxu0
    %3948 = vdwg.mxu0
    %v3949 = vmul.f32 %v3943, 0.35355338
    %v3950 = vmul.f32 %v3946, 0.35355338
    %s3951 = scalar_lea.vmem %s47, 48
    %v3952 = vld [vmem:[%s3951] sm:$0xf]
    %v3953 = vld [vmem:[%s3951 + $0x4] sm:$0xf]
    %v3954 = vld [vmem:[%s3951 + $0x8] sm:$0xf]
    %v3955 = vld [vmem:[%s3951 + $0xc] sm:$0xf]
    %s3956 = scalar_lea.vmem %s49, 3
    %v3957 = vld [vmem:[%s3956] sm:$0x1]
    %v3959 = vlaneseq
    %v3960 = vshrl.u32 %v3959, 7
    %v3961 = vsub.s32 0, %v3960
    %v3962 = vrot.slane %v3957, %v3961
    %v3968 = vunpack.c.l.b16 %v3952
    %v3969 = vunpack.c.l.b16 %v3953
    %v3970 = vunpack.c.l.b16 %v3954
    %v3971 = vunpack.c.l.b16 %v3955
    %v3972 = vpack.c.b16 %v3969, %v3968
    %v3973 = vpack.c.b16 %v3971, %v3970
    %3976 = vmatprep.subr.bf16.mxu0 0
    %3977 = vmatpush1.bf16.msra.mxu0 %v3972
    %3978 = vmatprep.subr.bf16.mxu0 0
    %3979 = vmatpush1.bf16.msra.mxu0 %v3973
    %3980 = vmatprep.subr.bf16.mxu0 0
    %3981 = vmatpush1.bf16.msra.mxu0 0
    %3982 = vmatprep.subr.bf16.mxu0 0
    %3983 = vmatpush1.bf16.msra.mxu0 0
    %3984 = vmatprep.subr.bf16.mxu0 0
    %3985 = vmatpush1.bf16.msra.mxu0 0
    %3986 = vmatprep.subr.bf16.mxu0 0
    %3987 = vmatpush1.bf16.msra.mxu0 0
    %3988 = vmatprep.subr.bf16.mxu0 0
    %3989 = vmatpush1.bf16.msra.mxu0 0
    %3990 = vmatprep.subr.bf16.mxu0 0
    %3991 = vmatpush1.bf16.msra.mxu0 0
    %3992 = vmatprep.subr.bf16.mxu0 0
    %3993 = vmatpush1.bf16.msra.mxu0 0
    %3994 = vmatprep.subr.bf16.mxu0 0
    %3995 = vmatpush1.bf16.msra.mxu0 0
    %3996 = vmatprep.subr.bf16.mxu0 0
    %3997 = vmatpush1.bf16.msra.mxu0 0
    %3998 = vmatprep.subr.bf16.mxu0 0
    %3999 = vmatpush1.bf16.msra.mxu0 0
    %4000 = vmatprep.subr.bf16.mxu0 0
    %4001 = vmatpush1.bf16.msra.mxu0 0
    %4002 = vmatprep.subr.bf16.mxu0 0
    %4003 = vmatpush1.bf16.msra.mxu0 0
    %4004 = vmatprep.subr.bf16.mxu0 0
    %4005 = vmatpush1.bf16.msra.mxu0 0
    %4006 = vmatprep.subr.bf16.mxu0 0
    %4007 = vmatpush1.bf16.msra.mxu0 0
    %4008 = vmatprep.mubr.bf16.mxu0 0
    %4009 = vmatmul.mubr.bf16.gmra.mrb[0].mxu0 %v2481
    %v4010 = vpop.f32.mrb[0].mxu0
    %v4011 = vadd.f32 %v3962, %v4010
    %v4012 = vpop.f32.mrb[0].mxu0
    %v4013 = vpop.f32.mrb[0].mxu0
    %v4014 = vadd.f32 %v3962, %v4013
    %v4015 = vpop.f32.mrb[0].mxu0
    %4016 = vdwg.mxu0
    %s4017 = scalar_lea.vmem %s51, 48
    %v4018 = vld [vmem:[%s4017] sm:$0xf]
    %v4019 = vld [vmem:[%s4017 + $0x4] sm:$0xf]
    %v4020 = vld [vmem:[%s4017 + $0x8] sm:$0xf]
    %v4021 = vld [vmem:[%s4017 + $0xc] sm:$0xf]
    %s4022 = scalar_lea.vmem %s53, 3
    %v4023 = vld [vmem:[%s4022] sm:$0x1]
    %v4025 = vlaneseq
    %v4026 = vshrl.u32 %v4025, 7
    %v4027 = vsub.s32 0, %v4026
    %v4028 = vrot.slane %v4023, %v4027
    %v4034 = vunpack.c.l.b16 %v4018
    %v4035 = vunpack.c.l.b16 %v4019
    %v4036 = vunpack.c.l.b16 %v4020
    %v4037 = vunpack.c.l.b16 %v4021
    %v4038 = vpack.c.b16 %v4035, %v4034
    %v4039 = vpack.c.b16 %v4037, %v4036
    %4042 = vmatprep.subr.bf16.mxu0 0
    %4043 = vmatpush1.bf16.msra.mxu0 %v4038
    %4044 = vmatprep.subr.bf16.mxu0 0
    %4045 = vmatpush1.bf16.msra.mxu0 %v4039
    %4046 = vmatprep.subr.bf16.mxu0 0
    %4047 = vmatpush1.bf16.msra.mxu0 0
    %4048 = vmatprep.subr.bf16.mxu0 0
    %4049 = vmatpush1.bf16.msra.mxu0 0
    %4050 = vmatprep.subr.bf16.mxu0 0
    %4051 = vmatpush1.bf16.msra.mxu0 0
    %4052 = vmatprep.subr.bf16.mxu0 0
    %4053 = vmatpush1.bf16.msra.mxu0 0
    %4054 = vmatprep.subr.bf16.mxu0 0
    %4055 = vmatpush1.bf16.msra.mxu0 0
    %4056 = vmatprep.subr.bf16.mxu0 0
    %4057 = vmatpush1.bf16.msra.mxu0 0
    %4058 = vmatprep.subr.bf16.mxu0 0
    %4059 = vmatpush1.bf16.msra.mxu0 0
    %4060 = vmatprep.subr.bf16.mxu0 0
    %4061 = vmatpush1.bf16.msra.mxu0 0
    %4062 = vmatprep.subr.bf16.mxu0 0
    %4063 = vmatpush1.bf16.msra.mxu0 0
    %4064 = vmatprep.subr.bf16.mxu0 0
    %4065 = vmatpush1.bf16.msra.mxu0 0
    %4066 = vmatprep.subr.bf16.mxu0 0
    %4067 = vmatpush1.bf16.msra.mxu0 0
    %4068 = vmatprep.subr.bf16.mxu0 0
    %4069 = vmatpush1.bf16.msra.mxu0 0
    %4070 = vmatprep.subr.bf16.mxu0 0
    %4071 = vmatpush1.bf16.msra.mxu0 0
    %4072 = vmatprep.subr.bf16.mxu0 0
    %4073 = vmatpush1.bf16.msra.mxu0 0
    %4074 = vmatprep.mubr.bf16.mxu0 0
    %4075 = vmatmul.mubr.bf16.gmra.mrb[0].mxu0 %v2481
    %v4076 = vpop.f32.mrb[0].mxu0
    %v4077 = vadd.f32 %v4028, %v4076
    %v4078 = vpop.f32.mrb[0].mxu0
    %v4079 = vpop.f32.mrb[0].mxu0
    %v4080 = vadd.f32 %v4028, %v4079
    %v4081 = vpop.f32.mrb[0].mxu0
    %4082 = vdwg.mxu0
    %v4083 = vpack.c.bf16 %v3950, %v3949
    %v4085 = vunpack.c.l.b16 %v4083
    %v4086 = vunpack.c.h.b16 %v4083
    %v4087 = vpack.c.b16 %v4085, %v4085
    %v4088 = vpack.c.b16 %v4086, %v4086
    %v4089 = vpack.c.bf16 %v4014, %v4011
    %v4091 = vunpack.c.l.b16 %v4089
    %v4092 = vunpack.c.h.b16 %v4089
    %v4093 = vpack.c.b16 %v4091, %v4091
    %v4094 = vpack.c.b16 %v4092, %v4092
    %v4095 = vpack.c.bf16 %v4080, %v4077
    %v4097 = vunpack.c.l.b16 %v4095
    %v4098 = vunpack.c.h.b16 %v4095
    %v4099 = vpack.c.b16 %v4097, %v4097
    %v4100 = vpack.c.b16 %v4098, %v4098
    %v4102 = vsel %vm481, %v4087, 0
    %v4105 = vsel %vm481, %v4093, 0
    %4107 = vmatprep.subr.bf16.mxu0 0
    %4108 = vmatpush1.bf16.xpose.msra.mxu0 %v4105
    %4109 = vmatprep.subr.bf16.mxu0 0
    %4110 = vmatpush1.bf16.xpose.msra.mxu0 0
    %4111 = vmatprep.subr.bf16.mxu0 0
    %4112 = vmatpush1.bf16.xpose.msra.mxu0 0
    %4113 = vmatprep.subr.bf16.mxu0 0
    %4114 = vmatpush1.bf16.xpose.msra.mxu0 0
    %4115 = vmatprep.subr.bf16.mxu0 0
    %4116 = vmatpush1.bf16.xpose.msra.mxu0 0
    %4117 = vmatprep.subr.bf16.mxu0 0
    %4118 = vmatpush1.bf16.xpose.msra.mxu0 0
    %4119 = vmatprep.subr.bf16.mxu0 0
    %4120 = vmatpush1.bf16.xpose.msra.mxu0 0
    %4121 = vmatprep.subr.bf16.mxu0 0
    %4122 = vmatpush1.bf16.xpose.msra.mxu0 0
    %4123 = vmatprep.subr.bf16.mxu0 0
    %4124 = vmatpush1.bf16.xpose.msra.mxu0 0
    %4125 = vmatprep.subr.bf16.mxu0 0
    %4126 = vmatpush1.bf16.xpose.msra.mxu0 0
    %4127 = vmatprep.subr.bf16.mxu0 0
    %4128 = vmatpush1.bf16.xpose.msra.mxu0 0
    %4129 = vmatprep.subr.bf16.mxu0 0
    %4130 = vmatpush1.bf16.xpose.msra.mxu0 0
    %4131 = vmatprep.subr.bf16.mxu0 0
    %4132 = vmatpush1.bf16.xpose.msra.mxu0 0
    %4133 = vmatprep.subr.bf16.mxu0 0
    %4134 = vmatpush1.bf16.xpose.msra.mxu0 0
    %4135 = vmatprep.subr.bf16.mxu0 0
    %4136 = vmatpush1.bf16.xpose.msra.mxu0 0
    %4137 = vmatprep.subr.bf16.mxu0 0
    %4138 = vmatpush1.bf16.xpose.msra.mxu0 0
    %4139 = vmatprep.mubr.bf16.mxu0 0
    %4140 = vmatmul.mubr.bf16.gmra.mrb[0].mxu0 %v4102
    %v4141 = vpop.f32.mrb[0].mxu0
    %v4142 = vadd.f32 0.0, %v4141
    %v4143 = vpop.f32.mrb[0].mxu0
    %v4144 = vpop.f32.mrb[0].mxu0
    %v4145 = vpop.f32.mrb[0].mxu0
    %4146 = vdwg.mxu0
    %v4148 = vsel %vm481, %v4088, 0
    %v4151 = vsel %vm481, %v4094, 0
    %4153 = vmatprep.subr.bf16.mxu0 0
    %4154 = vmatpush1.bf16.xpose.msra.mxu0 %v4151
    %4155 = vmatprep.subr.bf16.mxu0 0
    %4156 = vmatpush1.bf16.xpose.msra.mxu0 0
    %4157 = vmatprep.subr.bf16.mxu0 0
    %4158 = vmatpush1.bf16.xpose.msra.mxu0 0
    %4159 = vmatprep.subr.bf16.mxu0 0
    %4160 = vmatpush1.bf16.xpose.msra.mxu0 0
    %4161 = vmatprep.subr.bf16.mxu0 0
    %4162 = vmatpush1.bf16.xpose.msra.mxu0 0
    %4163 = vmatprep.subr.bf16.mxu0 0
    %4164 = vmatpush1.bf16.xpose.msra.mxu0 0
    %4165 = vmatprep.subr.bf16.mxu0 0
    %4166 = vmatpush1.bf16.xpose.msra.mxu0 0
    %4167 = vmatprep.subr.bf16.mxu0 0
    %4168 = vmatpush1.bf16.xpose.msra.mxu0 0
    %4169 = vmatprep.subr.bf16.mxu0 0
    %4170 = vmatpush1.bf16.xpose.msra.mxu0 0
    %4171 = vmatprep.subr.bf16.mxu0 0
    %4172 = vmatpush1.bf16.xpose.msra.mxu0 0
    %4173 = vmatprep.subr.bf16.mxu0 0
    %4174 = vmatpush1.bf16.xpose.msra.mxu0 0
    %4175 = vmatprep.subr.bf16.mxu0 0
    %4176 = vmatpush1.bf16.xpose.msra.mxu0 0
    %4177 = vmatprep.subr.bf16.mxu0 0
    %4178 = vmatpush1.bf16.xpose.msra.mxu0 0
    %4179 = vmatprep.subr.bf16.mxu0 0
    %4180 = vmatpush1.bf16.xpose.msra.mxu0 0
    %4181 = vmatprep.subr.bf16.mxu0 0
    %4182 = vmatpush1.bf16.xpose.msra.mxu0 0
    %4183 = vmatprep.subr.bf16.mxu0 0
    %4184 = vmatpush1.bf16.xpose.msra.mxu0 0
    %4185 = vmatprep.mubr.bf16.mxu0 0
    %4186 = vmatmul.mubr.bf16.gmra.mrb[0].mxu0 %v4148
    %v4187 = vpop.f32.mrb[0].mxu0
    %v4188 = vadd.f32 0.0, %v4187
    %v4189 = vpop.f32.mrb[0].mxu0
    %v4190 = vpop.f32.mrb[0].mxu0
    %v4191 = vpop.f32.mrb[0].mxu0
    %4192 = vdwg.mxu0
    %v4193 = vsel %vm481, %v4142, -inf
    %4194 = vmax.xlane.f32.xlu0 %v4193
    %v4195 = vpop.xlane.xlu0 %4194
    %v4196 = vsel %vm481, %v4188, -inf
    %4197 = vmax.xlane.f32.xlu0 %v4196
    %v4198 = vpop.xlane.xlu0 %4197
    %v4199 = vsub.f32 %v4142, %v4195
    %v4200 = vsub.f32 %v4188, %v4198
    %v4201 = vmul.f32 %v4199, 1.442695
    %v4202 = vpow.pop %v4201
    %v4203 = vmul.f32 %v4200, 1.442695
    %v4204 = vpow.pop %v4203
    %v4205 = vsel %vm481, %v4202, 0.0
    %4206 = vadd.xlane.f32.xlu0 %v4205
    %v4207 = vpop.xlane.xlu0 %4206
    %v4208 = vsel %vm481, %v4204, 0.0
    %4209 = vadd.xlane.f32.xlu0 %v4208
    %v4210 = vpop.xlane.xlu0 %4209
    %v4211 = vrcp.pop %v4207
    %v4212 = vrcp.pop %v4210
    %v4213 = vmul.f32 %v4202, %v4211
    %v4214 = vmul.f32 %v4204, %v4212
    %v4215 = vpack.c.bf16 %v4213, %v4213
    %v4216 = vpack.c.bf16 %v4214, %v4214
    %v4218 = vsel %vm481, %v4215, 0
    %v4221 = vsel %vm601, %v4099, 0
    %4223 = vmatprep.subr.bf16.mxu0 0
    %4224 = vmatpush1.bf16.msra.mxu0 %v4221
    %4225 = vmatprep.subr.bf16.mxu0 0
    %4226 = vmatpush1.bf16.msra.mxu0 0
    %4227 = vmatprep.subr.bf16.mxu0 0
    %4228 = vmatpush1.bf16.msra.mxu0 0
    %4229 = vmatprep.subr.bf16.mxu0 0
    %4230 = vmatpush1.bf16.msra.mxu0 0
    %4231 = vmatprep.subr.bf16.mxu0 0
    %4232 = vmatpush1.bf16.msra.mxu0 0
    %4233 = vmatprep.subr.bf16.mxu0 0
    %4234 = vmatpush1.bf16.msra.mxu0 0
    %4235 = vmatprep.subr.bf16.mxu0 0
    %4236 = vmatpush1.bf16.msra.mxu0 0
    %4237 = vmatprep.subr.bf16.mxu0 0
    %4238 = vmatpush1.bf16.msra.mxu0 0
    %4239 = vmatprep.subr.bf16.mxu0 0
    %4240 = vmatpush1.bf16.msra.mxu0 0
    %4241 = vmatprep.subr.bf16.mxu0 0
    %4242 = vmatpush1.bf16.msra.mxu0 0
    %4243 = vmatprep.subr.bf16.mxu0 0
    %4244 = vmatpush1.bf16.msra.mxu0 0
    %4245 = vmatprep.subr.bf16.mxu0 0
    %4246 = vmatpush1.bf16.msra.mxu0 0
    %4247 = vmatprep.subr.bf16.mxu0 0
    %4248 = vmatpush1.bf16.msra.mxu0 0
    %4249 = vmatprep.subr.bf16.mxu0 0
    %4250 = vmatpush1.bf16.msra.mxu0 0
    %4251 = vmatprep.subr.bf16.mxu0 0
    %4252 = vmatpush1.bf16.msra.mxu0 0
    %4253 = vmatprep.subr.bf16.mxu0 0
    %4254 = vmatpush1.bf16.msra.mxu0 0
    %4255 = vmatprep.mubr.bf16.mxu0 0
    %4256 = vmatmul.mubr.bf16.gmra.mrb[0].mxu0 %v4218
    %v4257 = vpop.f32.mrb[0].mxu0
    %v4258 = vadd.f32 0.0, %v4257
    %v4259 = vpop.f32.mrb[0].mxu0
    %v4260 = vpop.f32.mrb[0].mxu0
    %v4261 = vpop.f32.mrb[0].mxu0
    %4262 = vdwg.mxu0
    %v4264 = vsel %vm481, %v4216, 0
    %v4267 = vsel %vm601, %v4100, 0
    %4269 = vmatprep.subr.bf16.mxu0 0
    %4270 = vmatpush1.bf16.msra.mxu0 %v4267
    %4271 = vmatprep.subr.bf16.mxu0 0
    %4272 = vmatpush1.bf16.msra.mxu0 0
    %4273 = vmatprep.subr.bf16.mxu0 0
    %4274 = vmatpush1.bf16.msra.mxu0 0
    %4275 = vmatprep.subr.bf16.mxu0 0
    %4276 = vmatpush1.bf16.msra.mxu0 0
    %4277 = vmatprep.subr.bf16.mxu0 0
    %4278 = vmatpush1.bf16.msra.mxu0 0
    %4279 = vmatprep.subr.bf16.mxu0 0
    %4280 = vmatpush1.bf16.msra.mxu0 0
    %4281 = vmatprep.subr.bf16.mxu0 0
    %4282 = vmatpush1.bf16.msra.mxu0 0
    %4283 = vmatprep.subr.bf16.mxu0 0
    %4284 = vmatpush1.bf16.msra.mxu0 0
    %4285 = vmatprep.subr.bf16.mxu0 0
    %4286 = vmatpush1.bf16.msra.mxu0 0
    %4287 = vmatprep.subr.bf16.mxu0 0
    %4288 = vmatpush1.bf16.msra.mxu0 0
    %4289 = vmatprep.subr.bf16.mxu0 0
    %4290 = vmatpush1.bf16.msra.mxu0 0
    %4291 = vmatprep.subr.bf16.mxu0 0
    %4292 = vmatpush1.bf16.msra.mxu0 0
    %4293 = vmatprep.subr.bf16.mxu0 0
    %4294 = vmatpush1.bf16.msra.mxu0 0
    %4295 = vmatprep.subr.bf16.mxu0 0
    %4296 = vmatpush1.bf16.msra.mxu0 0
    %4297 = vmatprep.subr.bf16.mxu0 0
    %4298 = vmatpush1.bf16.msra.mxu0 0
    %4299 = vmatprep.subr.bf16.mxu0 0
    %4300 = vmatpush1.bf16.msra.mxu0 0
    %4301 = vmatprep.mubr.bf16.mxu0 0
    %4302 = vmatmul.mubr.bf16.gmra.mrb[0].mxu0 %v4264
    %v4303 = vpop.f32.mrb[0].mxu0
    %v4304 = vadd.f32 0.0, %v4303
    %v4305 = vpop.f32.mrb[0].mxu0
    %v4306 = vpop.f32.mrb[0].mxu0
    %v4307 = vpop.f32.mrb[0].mxu0
    %4308 = vdwg.mxu0
    %v4309 = vpack.c.bf16 %v4304, %v4258
    %s4310 = scalar_lea.vmem %s55, 12
    %v4311 = vld [vmem:[%s4310] sm:$0xf]
    %v4313 = vsel %vm481, %v4309, 0
    %v4316 = vsel %vm601, %v4311, 0
    %4318 = vmatprep.subr.bf16.mxu0 0
    %4319 = vmatpush1.bf16.msra.mxu0 %v4316
    %4320 = vmatprep.subr.bf16.mxu0 0
    %4321 = vmatpush1.bf16.msra.mxu0 0
    %4322 = vmatprep.subr.bf16.mxu0 0
    %4323 = vmatpush1.bf16.msra.mxu0 0
    %4324 = vmatprep.subr.bf16.mxu0 0
    %4325 = vmatpush1.bf16.msra.mxu0 0
    %4326 = vmatprep.subr.bf16.mxu0 0
    %4327 = vmatpush1.bf16.msra.mxu0 0
    %4328 = vmatprep.subr.bf16.mxu0 0
    %4329 = vmatpush1.bf16.msra.mxu0 0
    %4330 = vmatprep.subr.bf16.mxu0 0
    %4331 = vmatpush1.bf16.msra.mxu0 0
    %4332 = vmatprep.subr.bf16.mxu0 0
    %4333 = vmatpush1.bf16.msra.mxu0 0
    %4334 = vmatprep.subr.bf16.mxu0 0
    %4335 = vmatpush1.bf16.msra.mxu0 0
    %4336 = vmatprep.subr.bf16.mxu0 0
    %4337 = vmatpush1.bf16.msra.mxu0 0
    %4338 = vmatprep.subr.bf16.mxu0 0
    %4339 = vmatpush1.bf16.msra.mxu0 0
    %4340 = vmatprep.subr.bf16.mxu0 0
    %4341 = vmatpush1.bf16.msra.mxu0 0
    %4342 = vmatprep.subr.bf16.mxu0 0
    %4343 = vmatpush1.bf16.msra.mxu0 0
    %4344 = vmatprep.subr.bf16.mxu0 0
    %4345 = vmatpush1.bf16.msra.mxu0 0
    %4346 = vmatprep.subr.bf16.mxu0 0
    %4347 = vmatpush1.bf16.msra.mxu0 0
    %4348 = vmatprep.subr.bf16.mxu0 0
    %4349 = vmatpush1.bf16.msra.mxu0 0
    %4350 = vmatprep.mubr.bf16.mxu0 0
    %4351 = vmatmul.mubr.bf16.gmra.mrb[0].mxu0 %v4313
    %v4352 = vpop.f32.mrb[0].mxu0
    %v4353 = vadd.f32 0.0, %v4352
    %v4354 = vpop.f32.mrb[0].mxu0
    %v4355 = vpop.f32.mrb[0].mxu0
    %v4356 = vadd.f32 0.0, %v4355
    %v4357 = vpop.f32.mrb[0].mxu0
    %4358 = vdwg.mxu0
    %v4359 = vadd.f32 %v3881, %v4353
    %v4360 = vadd.f32 %v3882, %v4356
    %v4361 = vadd.f32 %v2410, %v4359
    %v4362 = vadd.f32 %v2411, %v4360
    %v4363 = vld [vmem:[%s57] sm:$0x1]
    %v4365 = vlaneseq
    %v4366 = vshrl.u32 %v4365, 7
    %v4367 = vsub.s32 0, %v4366
    %v4368 = vrot.slane %v4363, %v4367
    %v4370 = vadd.f32 %v4361, %v4368
    %v4371 = vadd.f32 %v4362, %v4368
    %v4372 = vld [vmem:[%s59] sm:$0x1]
    %v4373 = vld [vmem:[%s61] sm:$0x1]
    %v4374 = vsel %vm221, %v4370, 0.0
    %4375 = vadd.xlane.f32.xlu0 %v4374
    %v4376 = vpop.xlane.xlu0 %4375
    %v4377 = vsel %vm221, %v4371, 0.0
    %4378 = vadd.xlane.f32.xlu0 %v4377
    %v4379 = vpop.xlane.xlu0 %4378
    %v4380 = vmul.f32 %v4376, %v228
    %v4381 = vmul.f32 %v4379, %v228
    %v4382 = vsub.f32 %v4370, %v4380
    %v4383 = vsub.f32 %v4371, %v4381
    %v4384 = vmul.f32 %v4382, %v4382
    %v4385 = vmul.f32 %v4383, %v4383
    %v4386 = vsel %vm221, %v4384, 0.0
    %4387 = vadd.xlane.f32.xlu0 %v4386
    %v4388 = vpop.xlane.xlu0 %4387
    %v4389 = vsel %vm221, %v4385, 0.0
    %4390 = vadd.xlane.f32.xlu0 %v4389
    %v4391 = vpop.xlane.xlu0 %4390
    %v4392 = vmul.f32 %v4388, %v228
    %v4393 = vmul.f32 %v4391, %v228
    %v4394 = vadd.f32 %v4392, 1e-05
    %v4395 = vadd.f32 %v4393, 1e-05
    %v4396 = vrsqrt.pop %v4394
    %v4397 = vrsqrt.pop %v4395
    %v4398 = vmul.f32 %v4382, %v4396
    %v4399 = vmul.f32 %v4383, %v4397
    %v4401 = vlaneseq
    %v4402 = vshrl.u32 %v4401, 7
    %v4403 = vsub.s32 0, %v4402
    %v4404 = vrot.slane %v4372, %v4403
    %v4406 = vmul.f32 %v4398, %v4404
    %v4407 = vmul.f32 %v4399, %v4404
    %v4409 = vlaneseq
    %v4410 = vshrl.u32 %v4409, 7
    %v4411 = vsub.s32 0, %v4410
    %v4412 = vrot.slane %v4373, %v4411
    %v4414 = vadd.f32 %v4406, %v4412
    %v4415 = vadd.f32 %v4407, %v4412
    %v4416 = vpack.c.bf16 %v4415, %v4414
    %v4417 = vld [vmem:[%s63] sm:$0xf]
    %v4418 = vld [vmem:[%s63 + $0x4] sm:$0xf]
    %v4419 = vld [vmem:[%s63 + $0x8] sm:$0xf]
    %v4420 = vld [vmem:[%s63 + $0xc] sm:$0xf]
    %v4421 = vld [vmem:[%s65] sm:$0x1]
    %v4423 = vlaneseq
    %v4424 = vshrl.u32 %v4423, 7
    %v4425 = vsub.s32 0, %v4424
    %v4426 = vrot.slane %v4421, %v4425
    %v4432 = vunpack.c.l.b16 %v4417
    %v4433 = vunpack.c.l.b16 %v4418
    %v4434 = vunpack.c.l.b16 %v4419
    %v4435 = vunpack.c.l.b16 %v4420
    %v4436 = vpack.c.b16 %v4433, %v4432
    %v4437 = vpack.c.b16 %v4435, %v4434
    %v4441 = vsel %vm221, %v4416, 0
    %4443 = vmatprep.subr.bf16.mxu0 0
    %4444 = vmatpush1.bf16.msra.mxu0 %v4436
    %4445 = vmatprep.subr.bf16.mxu0 0
    %4446 = vmatpush1.bf16.msra.mxu0 %v4437
    %4447 = vmatprep.subr.bf16.mxu0 0
    %4448 = vmatpush1.bf16.msra.mxu0 0
    %4449 = vmatprep.subr.bf16.mxu0 0
    %4450 = vmatpush1.bf16.msra.mxu0 0
    %4451 = vmatprep.subr.bf16.mxu0 0
    %4452 = vmatpush1.bf16.msra.mxu0 0
    %4453 = vmatprep.subr.bf16.mxu0 0
    %4454 = vmatpush1.bf16.msra.mxu0 0
    %4455 = vmatprep.subr.bf16.mxu0 0
    %4456 = vmatpush1.bf16.msra.mxu0 0
    %4457 = vmatprep.subr.bf16.mxu0 0
    %4458 = vmatpush1.bf16.msra.mxu0 0
    %4459 = vmatprep.subr.bf16.mxu0 0
    %4460 = vmatpush1.bf16.msra.mxu0 0
    %4461 = vmatprep.subr.bf16.mxu0 0
    %4462 = vmatpush1.bf16.msra.mxu0 0
    %4463 = vmatprep.subr.bf16.mxu0 0
    %4464 = vmatpush1.bf16.msra.mxu0 0
    %4465 = vmatprep.subr.bf16.mxu0 0
    %4466 = vmatpush1.bf16.msra.mxu0 0
    %4467 = vmatprep.subr.bf16.mxu0 0
    %4468 = vmatpush1.bf16.msra.mxu0 0
    %4469 = vmatprep.subr.bf16.mxu0 0
    %4470 = vmatpush1.bf16.msra.mxu0 0
    %4471 = vmatprep.subr.bf16.mxu0 0
    %4472 = vmatpush1.bf16.msra.mxu0 0
    %4473 = vmatprep.subr.bf16.mxu0 0
    %4474 = vmatpush1.bf16.msra.mxu0 0
    %4475 = vmatprep.mubr.bf16.mxu0 0
    %4476 = vmatmul.mubr.bf16.gmra.mrb[0].mxu0 %v4441
    %v4477 = vpop.f32.mrb[0].mxu0
    %v4478 = vadd.f32 %v4426, %v4477
    %v4479 = vpop.f32.mrb[0].mxu0
    %v4480 = vpop.f32.mrb[0].mxu0
    %v4481 = vadd.f32 %v4426, %v4480
    %v4482 = vpop.f32.mrb[0].mxu0
    %4483 = vdwg.mxu0
    %v4484 = vmax.f32 %v4478, 0.0
    %v4485 = vmax.f32 %v4481, 0.0
    %v4486 = vpack.c.bf16 %v4485, %v4484
    %v4487 = vld [vmem:[%s67] sm:$0xf]
    %v4488 = vld [vmem:[%s67 + $0x4] sm:$0xf]
    %v4489 = vld [vmem:[%s67 + $0x8] sm:$0xf]
    %v4490 = vld [vmem:[%s67 + $0xc] sm:$0xf]
    %v4491 = vld [vmem:[%s67 + $0x10] sm:$0xf]
    %v4492 = vld [vmem:[%s67 + $0x14] sm:$0xf]
    %v4493 = vld [vmem:[%s67 + $0x18] sm:$0xf]
    %v4494 = vld [vmem:[%s67 + $0x1c] sm:$0xf]
    %v4495 = vld [vmem:[%s67 + $0x20] sm:$0xf]
    %v4496 = vld [vmem:[%s67 + $0x24] sm:$0xf]
    %v4497 = vld [vmem:[%s67 + $0x28] sm:$0xf]
    %v4498 = vld [vmem:[%s67 + $0x2c] sm:$0xf]
    %v4499 = vld [vmem:[%s67 + $0x30] sm:$0xf]
    %v4500 = vld [vmem:[%s67 + $0x34] sm:$0xf]
    %v4501 = vld [vmem:[%s67 + $0x38] sm:$0xf]
    %v4502 = vld [vmem:[%s67 + $0x3c] sm:$0xf]
    %v4503 = vld [vmem:[%s69] sm:$0x1]
    %v4505 = vlaneseq
    %v4506 = vshrl.u32 %v4505, 7
    %v4507 = vsub.s32 0, %v4506
    %v4508 = vrot.slane %v4503, %v4507
    %v4526 = vunpack.c.l.b16 %v4487
    %v4527 = vunpack.c.l.b16 %v4488
    %v4528 = vunpack.c.l.b16 %v4489
    %v4529 = vunpack.c.l.b16 %v4490
    %v4530 = vunpack.c.l.b16 %v4491
    %v4531 = vunpack.c.l.b16 %v4492
    %v4532 = vunpack.c.l.b16 %v4493
    %v4533 = vunpack.c.l.b16 %v4494
    %v4534 = vunpack.c.l.b16 %v4495
    %v4535 = vunpack.c.l.b16 %v4496
    %v4536 = vunpack.c.l.b16 %v4497
    %v4537 = vunpack.c.l.b16 %v4498
    %v4538 = vunpack.c.l.b16 %v4499
    %v4539 = vunpack.c.l.b16 %v4500
    %v4540 = vunpack.c.l.b16 %v4501
    %v4541 = vunpack.c.l.b16 %v4502
    %v4542 = vpack.c.b16 %v4527, %v4526
    %v4543 = vpack.c.b16 %v4529, %v4528
    %v4544 = vpack.c.b16 %v4531, %v4530
    %v4545 = vpack.c.b16 %v4533, %v4532
    %v4546 = vpack.c.b16 %v4535, %v4534
    %v4547 = vpack.c.b16 %v4537, %v4536
    %v4548 = vpack.c.b16 %v4539, %v4538
    %v4549 = vpack.c.b16 %v4541, %v4540
    %4558 = vmatprep.subr.bf16.mxu0 0
    %4559 = vmatpush1.bf16.msra.mxu0 %v4542
    %4560 = vmatprep.subr.bf16.mxu0 0
    %4561 = vmatpush1.bf16.msra.mxu0 %v4543
    %4562 = vmatprep.subr.bf16.mxu0 0
    %4563 = vmatpush1.bf16.msra.mxu0 %v4544
    %4564 = vmatprep.subr.bf16.mxu0 0
    %4565 = vmatpush1.bf16.msra.mxu0 %v4545
    %4566 = vmatprep.subr.bf16.mxu0 0
    %4567 = vmatpush1.bf16.msra.mxu0 %v4546
    %4568 = vmatprep.subr.bf16.mxu0 0
    %4569 = vmatpush1.bf16.msra.mxu0 %v4547
    %4570 = vmatprep.subr.bf16.mxu0 0
    %4571 = vmatpush1.bf16.msra.mxu0 %v4548
    %4572 = vmatprep.subr.bf16.mxu0 0
    %4573 = vmatpush1.bf16.msra.mxu0 %v4549
    %4574 = vmatprep.subr.bf16.mxu0 0
    %4575 = vmatpush1.bf16.msra.mxu0 0
    %4576 = vmatprep.subr.bf16.mxu0 0
    %4577 = vmatpush1.bf16.msra.mxu0 0
    %4578 = vmatprep.subr.bf16.mxu0 0
    %4579 = vmatpush1.bf16.msra.mxu0 0
    %4580 = vmatprep.subr.bf16.mxu0 0
    %4581 = vmatpush1.bf16.msra.mxu0 0
    %4582 = vmatprep.subr.bf16.mxu0 0
    %4583 = vmatpush1.bf16.msra.mxu0 0
    %4584 = vmatprep.subr.bf16.mxu0 0
    %4585 = vmatpush1.bf16.msra.mxu0 0
    %4586 = vmatprep.subr.bf16.mxu0 0
    %4587 = vmatpush1.bf16.msra.mxu0 0
    %4588 = vmatprep.subr.bf16.mxu0 0
    %4589 = vmatpush1.bf16.msra.mxu0 0
    %4590 = vmatprep.mubr.bf16.mxu0 0
    %4591 = vmatmul.mubr.bf16.gmra.mrb[0].mxu0 %v4486
    %v4592 = vpop.f32.mrb[0].mxu0
    %v4593 = vadd.f32 %v4508, %v4592
    %v4594 = vpop.f32.mrb[0].mxu0
    %v4595 = vpop.f32.mrb[0].mxu0
    %v4596 = vadd.f32 %v4508, %v4595
    %v4597 = vpop.f32.mrb[0].mxu0
    %4598 = vdwg.mxu0
    %v4599 = vadd.f32 %v4370, %v4593
    %v4600 = vadd.f32 %v4371, %v4596
    %v4601 = vsel %vm221, %v4599, 0.0
    %v4602 = vrot.slane %v4601, 4
    %v4603 = vadd.f32 %v4601, %v4602
    %v4604 = vrot.slane %v4603, 2
    %v4605 = vadd.f32 %v4603, %v4604
    %v4606 = vrot.slane %v4605, 1
    %v4607 = vadd.f32 %v4605, %v4606
    %v4608 = vsel %vm221, %v4600, 0.0
    %v4609 = vrot.slane %v4608, 4
    %v4610 = vadd.f32 %v4608, %v4609
    %v4611 = vrot.slane %v4610, 2
    %v4612 = vadd.f32 %v4610, %v4611
    %v4613 = vrot.slane %v4612, 1
    %v4614 = vadd.f32 %v4612, %v4613
    %v4615 = vrcp.pop 8.0
    %v4616 = vmul.f32 %v4607, %v4615
    %v4617 = vmul.f32 %v4614, %v4615
    %v4618 = vpack.c.bf16 %v4616, %v4616
    %v4619 = vpack.c.bf16 %v4617, %v4617
    %v4620 = vld [vmem:[%s71] sm:$0xf]
    %v4621 = vld [vmem:[%s71 + $0x4] sm:$0xf]
    %v4622 = vld [vmem:[%s71 + $0x8] sm:$0xf]
    %v4623 = vld [vmem:[%s71 + $0xc] sm:$0xf]
    %v4624 = vld [vmem:[%s73] sm:$0x1]
    %v4626 = vlaneseq
    %v4627 = vshrl.u32 %v4626, 7
    %v4628 = vsub.s32 0, %v4627
    %v4629 = vrot.slane %v4624, %v4628
    %v4633 = vunpack.c.l.b16 %v4618
    %v4634 = vunpack.c.l.b16 %v4619
    %vm4635 = vcmask 1041409
    %v4636 = vsel %vm4635, %v4634, %v4633
    %v4637 = vpack.c.b16 %v4636, %v4636
    %v4642 = vunpack.c.l.b16 %v4620
    %v4643 = vunpack.c.l.b16 %v4621
    %v4644 = vunpack.c.l.b16 %v4622
    %v4645 = vunpack.c.l.b16 %v4623
    %v4646 = vpack.c.b16 %v4643, %v4642
    %v4647 = vpack.c.b16 %v4645, %v4644
    %v4651 = vsel %vm221, %v4637, 0
    %4653 = vmatprep.subr.bf16.mxu0 0
    %4654 = vmatpush1.bf16.msra.mxu0 %v4646
    %4655 = vmatprep.subr.bf16.mxu0 0
    %4656 = vmatpush1.bf16.msra.mxu0 %v4647
    %4657 = vmatprep.subr.bf16.mxu0 0
    %4658 = vmatpush1.bf16.msra.mxu0 0
    %4659 = vmatprep.subr.bf16.mxu0 0
    %4660 = vmatpush1.bf16.msra.mxu0 0
    %4661 = vmatprep.subr.bf16.mxu0 0
    %4662 = vmatpush1.bf16.msra.mxu0 0
    %4663 = vmatprep.subr.bf16.mxu0 0
    %4664 = vmatpush1.bf16.msra.mxu0 0
    %4665 = vmatprep.subr.bf16.mxu0 0
    %4666 = vmatpush1.bf16.msra.mxu0 0
    %4667 = vmatprep.subr.bf16.mxu0 0
    %4668 = vmatpush1.bf16.msra.mxu0 0
    %4669 = vmatprep.subr.bf16.mxu0 0
    %4670 = vmatpush1.bf16.msra.mxu0 0
    %4671 = vmatprep.subr.bf16.mxu0 0
    %4672 = vmatpush1.bf16.msra.mxu0 0
    %4673 = vmatprep.subr.bf16.mxu0 0
    %4674 = vmatpush1.bf16.msra.mxu0 0
    %4675 = vmatprep.subr.bf16.mxu0 0
    %4676 = vmatpush1.bf16.msra.mxu0 0
    %4677 = vmatprep.subr.bf16.mxu0 0
    %4678 = vmatpush1.bf16.msra.mxu0 0
    %4679 = vmatprep.subr.bf16.mxu0 0
    %4680 = vmatpush1.bf16.msra.mxu0 0
    %4681 = vmatprep.subr.bf16.mxu0 0
    %4682 = vmatpush1.bf16.msra.mxu0 0
    %4683 = vmatprep.subr.bf16.mxu0 0
    %4684 = vmatpush1.bf16.msra.mxu0 0
    %4685 = vmatprep.mubr.bf16.mxu0 0
    %4686 = vmatmul.mubr.bf16.gmra.mrb[0].mxu0 %v4651
    %v4687 = vpop.f32.mrb[0].mxu0
    %v4688 = vadd.f32 %v4629, %v4687
    %v4689 = vpop.f32.mrb[0].mxu0
    %v4690 = vpop.f32.mrb[0].mxu0
    %v4691 = vpop.f32.mrb[0].mxu0
    %4692 = vdwg.mxu0
    %vm4693 = vcmask 41984
    %4694 = vst.msk [vmem:[#allocation2] sm:$0x3] %vm4693, %v4688
    // Predicated region
    $region150: #{tpu_custom_call.1} parent=1 // pred_check
      _
    $region151: #{tpu_custom_call.1} parent=1 // pred_check_branch
      %4696 = sbr.rel (0) target = $region153
    $region152: #{tpu_custom_call.1} parent=1 // pred_region
      %s4698 = ssub.s32 32, 32
      %4699 = vsyncadd [#allocation3], %s4698
      %s4701 = sshll.u32 [#allocation2], 4
      %s4702 = int_to_ptr.vmem [resolvable:$true] %s4701
      %4704 = dma.vmem_to_hbm [thread:$0]  %s4702, 32, %s75, [#allocation3]
    $region153: #{tpu_custom_call.1} parent=1 // pred_fallthru
      _
    // Predicated region
    $region154: #{tpu_custom_call.1} parent=1 // pred_check
      _
    $region155: #{tpu_custom_call.1} parent=1 // pred_check_branch
      %4706 = sbr.rel (0) target = $region157
    $region156: #{tpu_custom_call.1} parent=1 // pred_region
      %4707 = dma.done [#allocation3], 32
    $region157: #{tpu_custom_call.1} parent=1 // pred_fallthru
      _
    %4708 = vsyncpa [#allocation3], 1

</llo_original>
